<compile_context>
chip_gen: v6e
topology: v6e:2x2x1
jax: 0.10.0
libtpu: 0.0.40
codegen_flags: <defaults>
</compile_context>

<pallas_src>
import functools

import jax
import jax.numpy as jnp
from jax.experimental import pallas as pl
from jax.experimental.pallas import tpu as pltpu


# ----------------------------------------------------------------------------
# Helpers
# ----------------------------------------------------------------------------
_VMEM_LIMIT = 32 * 1024 * 1024  # safe scoped-VMEM budget on v5e/v6e/v7x


def _round_up(x, m):
    return ((x + m - 1) // m) * m


def _tile_and_pad(n, target):
    """Pick a 128-multiple point tile <= target and the padded point count."""
    n128 = _round_up(n, 128)
    top = max(1, min(max(target, 128) // 128, n128 // 128))
    for k in range(top, 0, -1):
        tile = k * 128
        pad = _round_up(n, tile) - n
        if pad * 8 <= n or tile == 128:     # keep padding waste <= 12.5% of N
            return tile, _round_up(n, tile)
    return 128, n128


def _const_spec(a, grid_rank):
    """Full-array block, constant index map (resident across the grid)."""
    zeros = (0,) * a.ndim
    if grid_rank == 1:
        return pl.BlockSpec(a.shape, lambda i, _z=zeros: _z)
    return pl.BlockSpec(a.shape, lambda i, j, _z=zeros: _z)


# ----------------------------------------------------------------------------
# Encoder pass 1: per-tile partial sums for aggregate() (fully parallel grid).
# Layout: channels on sublanes (rows 0..2 = xyz), points on lanes.
# ----------------------------------------------------------------------------
def _encode_partials_kernel(x_ref, pu_ref, pdw_ref, *, inner_r, outer_r):
    blk = x_ref[...]                                  # (B, C, TILE)
    xx = blk[:, 0:1, :]
    yy = blk[:, 1:2, :]
    zz = blk[:, 2:3, :]
    sq = xx * xx + yy * yy + zz * zz                  # |xyz|^2, (B, 1, TILE)
    inv_sq = pl.reciprocal(sq + 1e-16, approx=True)   # ~= (1/(norm + 1e-8))**2

    # aggregate() distance weight (un-normalized; normalized once in the tail).
    inv_rng = 1.0 / (outer_r ** 2 - inner_r ** 2)
    dw = 1.0 - (sq - inner_r ** 2) * inv_rng
    dw = jnp.where(sq > 0.0, jnp.maximum(dw, 0.0), 0.0)   # zero-padded points -> 0

    # axes: +z, -z, +y, -y, +x, -x  (same order as the PyTorch `axis` table)
    comps = (zz, -zz, yy, -yy, xx, -xx)
    sums = []
    for a in range(6):
        c = jnp.maximum(comps[a], 0.0)
        wa = c * c * inv_sq * dw                      # (B, 1, TILE)
        sums.append(jnp.sum(blk * wa, axis=2))        # (B, C)
    pu_ref[...] = jnp.concatenate(sums, axis=1)[None]     # (1, B, 6*C)
    pdw_ref[...] = jnp.sum(dw, axis=2)[None]               # (1, B, 1)


# ----------------------------------------------------------------------------
# Encoder tail (runs once): reduce partials, fused direction_mlp (single
# stacked matmul), BNs (batch stats over B), fc01, GeoDeConv.center_mlp.
# ----------------------------------------------------------------------------
def _encode_tail_kernel(pu_ref, pdw_ref, cxyz_ref,
                        wdir_ref, bn1g_ref, bn1b_ref,
                        wdir2_ref, bn2g_ref, bn2b_ref,
                        wfc_ref, bfc_ref,
                        wcs_ref, wcx_ref, bc_ref,
                        z_ref, center_ref):
    U = jnp.sum(pu_ref[...], axis=0)                  # (B, 6*C)
    dwsum = jnp.sum(pdw_ref[...], axis=0)             # (B, 1)

    # direction_mlp + aggregate fused into one (B, 6C) @ (6C, mid) matmul.
    agg = jnp.dot(U, wdir_ref[...], preferred_element_type=jnp.float32)
    # dist_weight normalization (safe denominator; reference would NaN at 0).
    agg = agg / jnp.maximum(dwsum, 1e-12)

    # direction_bn (training-mode batch stats over B) + ReLU
    m1 = jnp.mean(agg, axis=0, keepdims=True)
    v1 = jnp.mean((agg - m1) ** 2, axis=0, keepdims=True)
    h = (agg - m1) * jax.lax.rsqrt(v1 + 1e-5) * bn1g_ref[...] + bn1b_ref[...]
    h = jnp.maximum(h, 0.0)

    # direction_mlp2
    h = jnp.dot(h, wdir2_ref[...], preferred_element_type=jnp.float32)

    # last_bn (applied to `direction` only, matching the reference) + ReLU
    m2 = jnp.mean(h, axis=0, keepdims=True)
    v2 = jnp.mean((h - m2) ** 2, axis=0, keepdims=True)
    o = (h - m2) * jax.lax.rsqrt(v2 + 1e-5) * bn2g_ref[...] + bn2b_ref[...]
    o = jnp.maximum(o, 0.0)

    # fc01
    zv = jnp.dot(o, wfc_ref[...], preferred_element_type=jnp.float32) + bfc_ref[...]
    z_ref[...] = zv

    # GeoDeConv.center_mlp([z, center_xyz])  (split weight -> no concat needed)
    center_ref[...] = (
        jnp.dot(zv, wcs_ref[...], preferred_element_type=jnp.float32)
        + jnp.dot(cxyz_ref[...], wcx_ref[...], preferred_element_type=jnp.float32)
        + bc_ref[...])


def encode_forward(x_pad, cxyz, params, *, inner_r, outer_r, tile):
    B, C, Np = x_pad.shape
    T = Np // tile
    vl = params["b_fc01"].shape[1]
    c_last = params["bc"].shape[1]

    kernel = functools.partial(_encode_partials_kernel,
                               inner_r=inner_r, outer_r=outer_r)
    part_u, part_dw = pl.pallas_call(
        kernel,
        out_shape=(jax.ShapeDtypeStruct((T, B, 6 * C), jnp.float32),
                   jax.ShapeDtypeStruct((T, B, 1), jnp.float32)),
        grid=(T,),
        in_specs=[pl.BlockSpec((B, C, tile), lambda t: (0, 0, t))],
        out_specs=(pl.BlockSpec((1, B, 6 * C), lambda t: (t, 0, 0)),
                   pl.BlockSpec((1, B, 1), lambda t: (t, 0, 0))),
        compiler_params=pltpu.CompilerParams(
            dimension_semantics=("parallel",),      # megacore-friendly on v7x
            vmem_limit_bytes=_VMEM_LIMIT),
    )(x_pad)

    tail_args = (part_u, part_dw, cxyz,
                 params["w_dir_stack"], params["bn1_g"], params["bn1_b"],
                 params["w_dir2"], params["bn2_g"], params["bn2_b"],
                 params["w_fc01"], params["b_fc01"],
                 params["wc_sig"], params["wc_xyz"], params["bc"])
    z, center = pl.pallas_call(
        _encode_tail_kernel,
        out_shape=(jax.ShapeDtypeStruct((B, vl), jnp.float32),
                   jax.ShapeDtypeStruct((B, c_last), jnp.float32)),
        grid=(1,),
        in_specs=[_const_spec(a, 1) for a in tail_args],
        out_specs=(pl.BlockSpec((B, vl), lambda i: (0, 0)),
                   pl.BlockSpec((B, c_last), lambda i: (0, 0))),
        compiler_params=pltpu.CompilerParams(
            dimension_semantics=("arbitrary",),
            vmem_limit_bytes=_VMEM_LIMIT),
    )(*tail_args)
    return z, center


# ----------------------------------------------------------------------------
# Decoder: fused DeConv + disperse + mlp[0] as ONE (c_last, 24)@(24, TILE)
# matmul per tile (z folded into a per-batch resident weight), center row
# overwrite, two-pass BatchNorm (batch stats over B*N), ReLU, fc02, sigmoid.
# ----------------------------------------------------------------------------
def _decode_h_tile(xyz_ref, wdec_ref, center_ref, op_ref):
    xyz = xyz_ref[0]                                  # (3, TILE)
    xx = xyz[0:1, :]
    yy = xyz[1:2, :]
    zz = xyz[2:3, :]
    sq = xx * xx + yy * yy + zz * zz
    inv = pl.reciprocal(sq + 1e-16, approx=True)      # ~= (1/(norm + 1e-8))**2

    # Build the (24, TILE) operand in a VMEM scratch:
    #   rows a*3 + j  = xyz[j] * cos2_a   (matches w_dec_xyz column order)
    #   rows 18 + a   = cos2_a            (matches the appended V columns)
    comps = (zz, -zz, yy, -yy, xx, -xx)
    for a in range(6):
        c = jnp.maximum(comps[a], 0.0)
        ca = c * c * inv                              # (1, TILE)
        op_ref[3 * a:3 * a + 3, :] = xyz * ca
        op_ref[18 + a:19 + a, :] = ca

    h = jnp.dot(wdec_ref[0], op_ref[...],
                preferred_element_type=jnp.float32)   # (c_last, TILE)

    # signal[:, 0, :] = center  (lane 0 of the first point-tile of each batch;
    # select cost is hidden under the MXU pass, so no scalar-gated branch).
    lane = jax.lax.broadcasted_iota(jnp.int32, h.shape, 1)
    is_center = (lane == 0) & (pl.program_id(1) == 0)
    return jnp.where(is_center, center_ref[0], h)


def _decode_stats_kernel(xyz_ref, wdec_ref, center_ref, s_ref, op_ref):
    h = _decode_h_tile(xyz_ref, wdec_ref, center_ref, op_ref)
    s1 = jnp.sum(h, axis=1, keepdims=True)            # (c_last, 1)
    s2 = jnp.sum(h * h, axis=1, keepdims=True)
    s_ref[...] = jnp.concatenate([s1, s2], axis=1)[None]   # (1, c_last, 2)


def _decode_apply_kernel(xyz_ref, wdec_ref, center_ref, scale_ref, shift_ref,
                         w2_ref, b2_ref, y_ref, op_ref):
    h = _decode_h_tile(xyz_ref, wdec_ref, center_ref, op_ref)
    h = jnp.maximum(h * scale_ref[...] + shift_ref[...], 0.0)   # BN affine + ReLU
    o = jnp.dot(w2_ref[...], h, preferred_element_type=jnp.float32) + b2_ref[...]
    y_ref[...] = jax.nn.sigmoid(o)[None]                        # (1, outc, TILE)


def decode_forward(z, center, xyz_pad, params, *, tile, n_true):
    B, _, Np = xyz_pad.shape
    T = Np // tile
    c_last = params["bn0_g"].shape[-1]
    outc = params["w_fc02"].shape[0]

    # Fold z into the fused per-batch weight: V[b, :, a] = W_a[:, 3:] @ z[b].
    V = jnp.einsum('bv,acv->bca', z, params["w_dec_z"])          # (B, c_last, 6)
    wdec_b = jnp.concatenate(
        [jnp.broadcast_to(params["w_dec_xyz"][None], (B, c_last, 18)), V],
        axis=-1)                                                 # (B, c_last, 24)
    center_t = center.reshape(B, c_last, 1)

    xyz_spec = pl.BlockSpec((1, 3, tile), lambda b, t: (b, 0, t))
    wdec_spec = pl.BlockSpec((1, c_last, 24), lambda b, t: (b, 0, 0))
    center_spec = pl.BlockSpec((1, c_last, 1), lambda b, t: (b, 0, 0))
    cparams = pltpu.CompilerParams(
        dimension_semantics=("parallel", "parallel"),
        vmem_limit_bytes=_VMEM_LIMIT)

    # Pass 1: per-tile partial BN statistics (merged [sum, sum-of-squares]).
    stats = pl.pallas_call(
        _decode_stats_kernel,
        out_shape=jax.ShapeDtypeStruct((B * T, c_last, 2), jnp.float32),
        grid=(B, T),
        in_specs=[xyz_spec, wdec_spec, center_spec],
        out_specs=pl.BlockSpec((1, c_last, 2),
                               lambda b, t, _T=T: (b * _T + t, 0, 0)),
        scratch_shapes=[pltpu.VMEM((24, tile), jnp.float32)],
        compiler_params=cparams,
    )(xyz_pad, wdec_b, center_t)

    # BatchNorm over the TRUE B*N rows (zero-padded points contribute exactly 0).
    cnt = float(B * n_true)
    sums = jnp.sum(stats, axis=0)                                # (c_last, 2)
    mean = sums[:, 0:1] / cnt
    var = jnp.maximum(sums[:, 1:2] / cnt - mean * mean, 0.0)
    scale = params["bn0_g"].reshape(c_last, 1) * jax.lax.rsqrt(var + 1e-5)
    shift = params["bn0_b"].reshape(c_last, 1) - mean * scale

    # Pass 2: recompute the cheap fused matmul, apply BN + ReLU + fc02 + sigmoid.
    y_t = pl.pallas_call(
        _decode_apply_kernel,
        out_shape=jax.ShapeDtypeStruct((B, outc, Np), jnp.float32),
        grid=(B, T),
        in_specs=[xyz_spec, wdec_spec, center_spec,
                  _const_spec(scale, 2), _const_spec(shift, 2),
                  _const_spec(params["w_fc02"], 2),
                  _const_spec(params["b_fc02"], 2)],
        out_specs=pl.BlockSpec((1, outc, tile), lambda b, t: (b, 0, t)),
        scratch_shapes=[pltpu.VMEM((24, tile), jnp.float32)],
        compiler_params=cparams,
    )(xyz_pad, wdec_b, center_t, scale, shift,
      params["w_fc02"], params["b_fc02"])

    # Small wrapper transpose + un-pad (kept out of the kernel on purpose:
    # a 3-lane-wide output block would cost more than this extra pass).
    return jnp.transpose(y_t, (0, 2, 1))[:, :n_true, :]


# ----------------------------------------------------------------------------
# Parameters (deterministic, synthetic), pre-reorganized for the fused kernels.
# ----------------------------------------------------------------------------
def init_params(key, num_channel, enc_out, vector_length):
    mid = enc_out // 4          # GeoConv mid_channel
    ch0 = enc_out               # GeoDeConv channels[0]
    c_last = enc_out // 4       # GeoDeConv channels[-1]
    assert c_last == 64, "fc02 = nn.Linear(64, ...) requires enc_out // 4 == 64"
    outc = num_channel - 3
    vl = vector_length
    C = num_channel
    F = 3 + vl
    ks = jax.random.split(key, 16)

    def w(k, shape, scale=0.1):
        return (scale * jax.random.normal(k, shape)).astype(jnp.float32)

    # --- GeoConv -------------------------------------------------------------
    # direction_mlp: Linear(C, mid*6, bias=False), PyTorch weight (mid*6, C),
    # acting on dir_input columns [points(C-3), xyz(3)].
    # aggregate() pairs output row d*6+a with axis a.
    w_dir_pt = w(ks[0], (mid * 6, C))
    w_dir_axes = w_dir_pt.reshape(mid, 6, C).transpose(1, 2, 0)      # (6, Cdir, mid)
    # Re-index the input columns to x order [xyz(3), points(C-3)] so the kernel
    # reads x_t directly (no wrapper concat).
    inv_perm = jnp.array([(C - 3) + m if m < 3 else m - 3 for m in range(C)],
                         dtype=jnp.int32)
    w_dir_axes_x = w_dir_axes[:, inv_perm, :]                        # (6, C, mid)
    w_dir_stack = w_dir_axes_x.reshape(6 * C, mid)                   # (6C, mid)
    bn1_g = 1.0 + w(ks[1], (1, mid))
    bn1_b = w(ks[2], (1, mid))
    w_dir2 = w(ks[3], (enc_out, mid)).T                              # (mid, enc_out)
    bn2_g = 1.0 + w(ks[4], (1, enc_out))
    bn2_b = w(ks[5], (1, enc_out))
    w_fc01 = w(ks[6], (vl, enc_out)).T                               # (enc_out, vl)
    b_fc01 = w(ks[7], (1, vl))

    # --- GeoDeConv -----------------------------------------------------------
    # center_mlp: Linear(vl+3, c_last); input order [signal(vl), center_xyz(3)].
    wc_pt = w(ks[8], (c_last, vl + 3))
    bc = w(ks[9], (1, c_last))
    wc_sig = wc_pt[:, :vl].T                                         # (vl, c_last)
    wc_xyz = wc_pt[:, vl:].T                                         # (3, c_last)

    # DeConv: Linear(vl+3, ch0*6, bias=False); input order [xyz(3), signal(vl)].
    # disperse() pairs output row d*6+a with axis a; mlp[0] (bias=False) folded:
    #   W_axes[a, f, k] = sum_d Wd_pt[d*6+a, k] * Wm_pt[f, d]
    wd_pt = w(ks[10], (ch0 * 6, F))
    w_mlp0_pt = w(ks[11], (c_last, ch0))
    wd_reorg = wd_pt.reshape(ch0, 6, F).transpose(1, 2, 0).reshape(6 * F, ch0)
    w_dec_fused = wd_reorg @ w_mlp0_pt.T                             # (6F, c_last)
    w_dec_axes = w_dec_fused.reshape(6, F, c_last).transpose(0, 2, 1)  # (6, c_last, F)
    # Split: static xyz part (column order a*3 + j) and per-axis z part.
    w_dec_xyz = jnp.transpose(w_dec_axes[:, :, :3], (1, 0, 2)).reshape(c_last, 18)
    w_dec_z = w_dec_axes[:, :, 3:]                                   # (6, c_last, vl)

    bn0_g = 1.0 + w(ks[12], (1, c_last))
    bn0_b = w(ks[13], (1, c_last))
    w_fc02 = w(ks[14], (outc, c_last))                               # (outc, c_last)
    b_fc02 = w(ks[15], (outc, 1))                                    # column bias

    return dict(w_dir_stack=w_dir_stack, bn1_g=bn1_g, bn1_b=bn1_b, w_dir2=w_dir2,
                bn2_g=bn2_g, bn2_b=bn2_b, w_fc01=w_fc01, b_fc01=b_fc01,
                wc_sig=wc_sig, wc_xyz=wc_xyz, bc=bc,
                w_dec_xyz=w_dec_xyz, w_dec_z=w_dec_z,
                bn0_g=bn0_g, bn0_b=bn0_b, w_fc02=w_fc02, b_fc02=b_fc02)


# ----------------------------------------------------------------------------
# Full forward: one transpose + pad of the input, shared by encoder & decoder.
# ----------------------------------------------------------------------------
def pointnet_forward(x, params, *, inner_r, outer_r, tile_n=4096):
    B, N, C = x.shape
    tile, n_pad = _tile_and_pad(N, tile_n)
    x_t = jnp.transpose(x, (0, 2, 1))                  # (B, C, N), rows [xyz, pts]
    if n_pad != N:
        x_t = jnp.pad(x_t, ((0, 0), (0, 0), (0, n_pad - N)))
    cxyz = x[:, 0, :3]                                 # (B, 3) true point 0

    z, center = encode_forward(x_t, cxyz, params,
                               inner_r=inner_r, outer_r=outer_r, tile=tile)
    xyz_pad = x_t[:, :3, :]                            # (B, 3, Np) decoder stream
    return decode_forward(z, center, xyz_pad, params, tile=tile, n_true=N)


if __name__ == "__main__":
    key = jax.random.PRNGKey(0)
    B, N = 2, 300          # small; N chosen non-128-multiple to exercise padding
    num_channel = 6        # args.dim (3 xyz + 3 point features)
    enc_out = 256          # args.enc_out (enc_out // 4 == 64 as fc02 requires)
    vector_length = 8      # args.vector_length
    r = 4.0                # args.r -> inner_radius = 0.5*r, outer_radius = r

    k_in, k_par = jax.random.split(key)
    x = jax.random.normal(k_in, (B, N, num_channel), dtype=jnp.float32)
    params = init_params(k_par, num_channel, enc_out, vector_length)

    # tile_n=128 forces a multi-tile pipelined grid (T=3) at this tiny N;
    # production sizes should use the 4096 default (or up to 8192).
    fwd = jax.jit(functools.partial(pointnet_forward,
                                    inner_r=0.5 * r, outer_r=r, tile_n=128))
    y = fwd(x, params)
    y = jax.block_until_ready(y)
    assert y.shape == (B, N, num_channel - 3)
    assert bool(jnp.all(jnp.isfinite(y)))
    print("KERNEL_OK")
</pallas_src>

<mosaic_0001>
module attributes {stable_mosaic.version = 11 : i64} {
  func.func @_encode_partials_kernel(%arg0: i32, %arg1: memref<2x6x128xf32, #tpu.memory_space<vmem>>, %arg2: memref<1x2x36xf32, #tpu.memory_space<vmem>>, %arg3: memref<1x2x1xf32, #tpu.memory_space<vmem>>) attributes {dimension_semantics = [#tpu.dimension_semantics<parallel>], iteration_bounds = array<i64: 3>, scalar_prefetch = 0 : i64, scratch_operands = 0 : i64, tpu.core_type = #tpu.core_type<tc>, window_params = [{transform_indices = @transform_0, window_bounds = array<i64: 2, 6, 128>}, {transform_indices = @transform_1, window_bounds = array<i64: 1, 2, 36>}, {transform_indices = @transform_2, window_bounds = array<i64: 1, 2, 1>}]} {
    %c0 = arith.constant 0 : index
    %c0_0 = arith.constant 0 : index
    %c0_1 = arith.constant 0 : index
    %0 = vector.load %arg1[%c0, %c0_0, %c0_1] : memref<2x6x128xf32, #tpu.memory_space<vmem>>, vector<2x6x128xf32>
    %1 = vector.extract_strided_slice %0 {offsets = [0, 0, 0], sizes = [2, 1, 128], strides = [1, 1, 1]} : vector<2x6x128xf32> to vector<2x1x128xf32>
    %2 = vector.extract_strided_slice %0 {offsets = [0, 1, 0], sizes = [2, 1, 128], strides = [1, 1, 1]} : vector<2x6x128xf32> to vector<2x1x128xf32>
    %3 = vector.extract_strided_slice %0 {offsets = [0, 2, 0], sizes = [2, 1, 128], strides = [1, 1, 1]} : vector<2x6x128xf32> to vector<2x1x128xf32>
    %4 = arith.mulf %1, %1 : vector<2x1x128xf32>
    %5 = arith.mulf %2, %2 : vector<2x1x128xf32>
    %6 = arith.addf %4, %5 : vector<2x1x128xf32>
    %7 = arith.mulf %3, %3 : vector<2x1x128xf32>
    %8 = arith.addf %6, %7 : vector<2x1x128xf32>
    %cst = arith.constant 1.000000e-16 : f32
    %9 = vector.broadcast %cst : f32 to vector<2x1x128xf32>
    %10 = arith.addf %8, %9 : vector<2x1x128xf32>
    %11 = tpu.reciprocal %10 {approx = true} : vector<2x1x128xf32> -> vector<2x1x128xf32>
    %cst_2 = arith.constant 4.000000e+00 : f32
    %12 = vector.broadcast %cst_2 : f32 to vector<2x1x128xf32>
    %13 = arith.subf %8, %12 : vector<2x1x128xf32>
    %cst_3 = arith.constant 0.0833333358 : f32
    %14 = vector.broadcast %cst_3 : f32 to vector<2x1x128xf32>
    %15 = arith.mulf %13, %14 : vector<2x1x128xf32>
    %cst_4 = arith.constant 1.000000e+00 : f32
    %16 = vector.broadcast %cst_4 : f32 to vector<2x1x128xf32>
    %17 = arith.subf %16, %15 : vector<2x1x128xf32>
    %cst_5 = arith.constant 0.000000e+00 : f32
    %18 = vector.broadcast %cst_5 : f32 to vector<2x1x128xf32>
    %19 = arith.cmpf ogt, %8, %18 : vector<2x1x128xf32>
    %cst_6 = arith.constant 0.000000e+00 : f32
    %20 = vector.broadcast %cst_6 : f32 to vector<2x1x128xf32>
    %21 = arith.maximumf %17, %20 : vector<2x1x128xf32>
    %cst_7 = arith.constant 0.000000e+00 : f32
    %22 = vector.broadcast %cst_7 : f32 to vector<2x1x128xf32>
    %23 = arith.select %19, %21, %22 : vector<2x1x128xi1>, vector<2x1x128xf32>
    %cst_8 = arith.constant 0.000000e+00 : f32
    %24 = vector.broadcast %cst_8 : f32 to vector<2x1x128xf32>
    %25 = arith.subf %24, %3 : vector<2x1x128xf32>
    %cst_9 = arith.constant 0.000000e+00 : f32
    %26 = vector.broadcast %cst_9 : f32 to vector<2x1x128xf32>
    %27 = arith.subf %26, %2 : vector<2x1x128xf32>
    %cst_10 = arith.constant 0.000000e+00 : f32
    %28 = vector.broadcast %cst_10 : f32 to vector<2x1x128xf32>
    %29 = arith.subf %28, %1 : vector<2x1x128xf32>
    %cst_11 = arith.constant 0.000000e+00 : f32
    %30 = vector.broadcast %cst_11 : f32 to vector<2x1x128xf32>
    %31 = arith.maximumf %3, %30 : vector<2x1x128xf32>
    %32 = arith.mulf %31, %31 : vector<2x1x128xf32>
    %33 = arith.mulf %32, %11 : vector<2x1x128xf32>
    %34 = arith.mulf %33, %23 : vector<2x1x128xf32>
    %35 = vector.broadcast %34 : vector<2x1x128xf32> to vector<2x6x128xf32>
    %36 = arith.mulf %0, %35 : vector<2x6x128xf32>
    %cst_12 = arith.constant dense<0.000000e+00> : vector<2x6xf32>
    %37 = vector.multi_reduction <add>, %36, %cst_12 [2] : vector<2x6x128xf32> to vector<2x6xf32>
    %cst_13 = arith.constant 0.000000e+00 : f32
    %38 = vector.broadcast %cst_13 : f32 to vector<2x1x128xf32>
    %39 = arith.maximumf %25, %38 : vector<2x1x128xf32>
    %40 = arith.mulf %39, %39 : vector<2x1x128xf32>
    %41 = arith.mulf %40, %11 : vector<2x1x128xf32>
    %42 = arith.mulf %41, %23 : vector<2x1x128xf32>
    %43 = vector.broadcast %42 : vector<2x1x128xf32> to vector<2x6x128xf32>
    %44 = arith.mulf %0, %43 : vector<2x6x128xf32>
    %cst_14 = arith.constant dense<0.000000e+00> : vector<2x6xf32>
    %45 = vector.multi_reduction <add>, %44, %cst_14 [2] : vector<2x6x128xf32> to vector<2x6xf32>
    %cst_15 = arith.constant 0.000000e+00 : f32
    %46 = vector.broadcast %cst_15 : f32 to vector<2x1x128xf32>
    %47 = arith.maximumf %2, %46 : vector<2x1x128xf32>
    %48 = arith.mulf %47, %47 : vector<2x1x128xf32>
    %49 = arith.mulf %48, %11 : vector<2x1x128xf32>
    %50 = arith.mulf %49, %23 : vector<2x1x128xf32>
    %51 = vector.broadcast %50 : vector<2x1x128xf32> to vector<2x6x128xf32>
    %52 = arith.mulf %0, %51 : vector<2x6x128xf32>
    %cst_16 = arith.constant dense<0.000000e+00> : vector<2x6xf32>
    %53 = vector.multi_reduction <add>, %52, %cst_16 [2] : vector<2x6x128xf32> to vector<2x6xf32>
    %cst_17 = arith.constant 0.000000e+00 : f32
    %54 = vector.broadcast %cst_17 : f32 to vector<2x1x128xf32>
    %55 = arith.maximumf %27, %54 : vector<2x1x128xf32>
    %56 = arith.mulf %55, %55 : vector<2x1x128xf32>
    %57 = arith.mulf %56, %11 : vector<2x1x128xf32>
    %58 = arith.mulf %57, %23 : vector<2x1x128xf32>
    %59 = vector.broadcast %58 : vector<2x1x128xf32> to vector<2x6x128xf32>
    %60 = arith.mulf %0, %59 : vector<2x6x128xf32>
    %cst_18 = arith.constant dense<0.000000e+00> : vector<2x6xf32>
    %61 = vector.multi_reduction <add>, %60, %cst_18 [2] : vector<2x6x128xf32> to vector<2x6xf32>
    %cst_19 = arith.constant 0.000000e+00 : f32
    %62 = vector.broadcast %cst_19 : f32 to vector<2x1x128xf32>
    %63 = arith.maximumf %1, %62 : vector<2x1x128xf32>
    %64 = arith.mulf %63, %63 : vector<2x1x128xf32>
    %65 = arith.mulf %64, %11 : vector<2x1x128xf32>
    %66 = arith.mulf %65, %23 : vector<2x1x128xf32>
    %67 = vector.broadcast %66 : vector<2x1x128xf32> to vector<2x6x128xf32>
    %68 = arith.mulf %0, %67 : vector<2x6x128xf32>
    %cst_20 = arith.constant dense<0.000000e+00> : vector<2x6xf32>
    %69 = vector.multi_reduction <add>, %68, %cst_20 [2] : vector<2x6x128xf32> to vector<2x6xf32>
    %cst_21 = arith.constant 0.000000e+00 : f32
    %70 = vector.broadcast %cst_21 : f32 to vector<2x1x128xf32>
    %71 = arith.maximumf %29, %70 : vector<2x1x128xf32>
    %72 = arith.mulf %71, %71 : vector<2x1x128xf32>
    %73 = arith.mulf %72, %11 : vector<2x1x128xf32>
    %74 = arith.mulf %73, %23 : vector<2x1x128xf32>
    %75 = vector.broadcast %74 : vector<2x1x128xf32> to vector<2x6x128xf32>
    %76 = arith.mulf %0, %75 : vector<2x6x128xf32>
    %cst_22 = arith.constant dense<0.000000e+00> : vector<2x6xf32>
    %77 = vector.multi_reduction <add>, %76, %cst_22 [2] : vector<2x6x128xf32> to vector<2x6xf32>
    %78 = tpu.concatenate %37, %45, %53, %61, %69, %77 in 1 : vector<2x6xf32>, vector<2x6xf32>, vector<2x6xf32>, vector<2x6xf32>, vector<2x6xf32>, vector<2x6xf32> -> vector<2x36xf32>
    %79 = vector.shape_cast %78 : vector<2x36xf32> to vector<1x2x36xf32>
    %c0_23 = arith.constant 0 : index
    %c0_24 = arith.constant 0 : index
    %c0_25 = arith.constant 0 : index
    %80 = vector.load %arg2[%c0_23, %c0_24, %c0_25] : memref<1x2x36xf32, #tpu.memory_space<vmem>>, vector<1x2x36xf32>
    tpu.vector_store %arg2[%c0_23, %c0_24, %c0_25], %79 {strides = array<i32>} : memref<1x2x36xf32, #tpu.memory_space<vmem>>, vector<1x2x36xf32>,
    %cst_26 = arith.constant dense<0.000000e+00> : vector<2x1xf32>
    %81 = vector.multi_reduction <add>, %23, %cst_26 [2] : vector<2x1x128xf32> to vector<2x1xf32>
    %82 = vector.shape_cast %81 : vector<2x1xf32> to vector<1x2x1xf32>
    %c0_27 = arith.constant 0 : index
    %c0_28 = arith.constant 0 : index
    %c0_29 = arith.constant 0 : index
    %83 = vector.load %arg3[%c0_27, %c0_28, %c0_29] : memref<1x2x1xf32, #tpu.memory_space<vmem>>, vector<1x2x1xf32>
    tpu.vector_store %arg3[%c0_27, %c0_28, %c0_29], %82 {strides = array<i32>} : memref<1x2x1xf32, #tpu.memory_space<vmem>>, vector<1x2x1xf32>,
    return
  }
  func.func @transform_0(%arg0: i32) -> (i32, i32, i32) {
    %c0_i32 = arith.constant 0 : i32
    %c0_i32_0 = arith.constant 0 : i32
    %c0_i32_1 = arith.constant 0 : i32
    return %c0_i32, %c0_i32_0, %arg0 : i32, i32, i32
  }
  func.func @transform_1(%arg0: i32) -> (i32, i32, i32) {
    %c0_i32 = arith.constant 0 : i32
    %c0_i32_0 = arith.constant 0 : i32
    %c0_i32_1 = arith.constant 0 : i32
    return %arg0, %c0_i32, %c0_i32_0 : i32, i32, i32
  }
  func.func @transform_2(%arg0: i32) -> (i32, i32, i32) {
    %c0_i32 = arith.constant 0 : i32
    %c0_i32_0 = arith.constant 0 : i32
    %c0_i32_1 = arith.constant 0 : i32
    return %arg0, %c0_i32, %c0_i32_0 : i32, i32, i32
  }
}

module attributes {stable_mosaic.version = 11 : i64} {
  func.func @_encode_tail_kernel(%arg0: i32, %arg1: memref<3x2x36xf32, #tpu.memory_space<vmem>>, %arg2: memref<3x2x1xf32, #tpu.memory_space<vmem>>, %arg3: memref<2x3xf32, #tpu.memory_space<vmem>>, %arg4: memref<36x64xf32, #tpu.memory_space<vmem>>, %arg5: memref<1x64xf32, #tpu.memory_space<vmem>>, %arg6: memref<1x64xf32, #tpu.memory_space<vmem>>, %arg7: memref<64x256xf32, #tpu.memory_space<vmem>>, %arg8: memref<1x256xf32, #tpu.memory_space<vmem>>, %arg9: memref<1x256xf32, #tpu.memory_space<vmem>>, %arg10: memref<256x8xf32, #tpu.memory_space<vmem>>, %arg11: memref<1x8xf32, #tpu.memory_space<vmem>>, %arg12: memref<8x64xf32, #tpu.memory_space<vmem>>, %arg13: memref<3x64xf32, #tpu.memory_space<vmem>>, %arg14: memref<1x64xf32, #tpu.memory_space<vmem>>, %arg15: memref<2x8xf32, #tpu.memory_space<vmem>>, %arg16: memref<2x64xf32, #tpu.memory_space<vmem>>) attributes {dimension_semantics = [#tpu.dimension_semantics<arbitrary>], iteration_bounds = array<i64: 1>, scalar_prefetch = 0 : i64, scratch_operands = 0 : i64, tpu.core_type = #tpu.core_type<tc>, window_params = [{pipeline_mode = #tpu.pipeline_mode<synchronous>, transform_indices = @transform_0, window_bounds = array<i64: 3, 2, 36>}, {pipeline_mode = #tpu.pipeline_mode<synchronous>, transform_indices = @transform_1, window_bounds = array<i64: 3, 2, 1>}, {pipeline_mode = #tpu.pipeline_mode<synchronous>, transform_indices = @transform_2, window_bounds = array<i64: 2, 3>}, {pipeline_mode = #tpu.pipeline_mode<synchronous>, transform_indices = @transform_3, window_bounds = array<i64: 36, 64>}, {pipeline_mode = #tpu.pipeline_mode<synchronous>, transform_indices = @transform_4, window_bounds = array<i64: 1, 64>}, {pipeline_mode = #tpu.pipeline_mode<synchronous>, transform_indices = @transform_5, window_bounds = array<i64: 1, 64>}, {pipeline_mode = #tpu.pipeline_mode<synchronous>, transform_indices = @transform_6, window_bounds = array<i64: 64, 256>}, {pipeline_mode = #tpu.pipeline_mode<synchronous>, transform_indices = @transform_7, window_bounds = array<i64: 1, 256>}, {pipeline_mode = #tpu.pipeline_mode<synchronous>, transform_indices = @transform_8, window_bounds = array<i64: 1, 256>}, {pipeline_mode = #tpu.pipeline_mode<synchronous>, transform_indices = @transform_9, window_bounds = array<i64: 256, 8>}, {pipeline_mode = #tpu.pipeline_mode<synchronous>, transform_indices = @transform_10, window_bounds = array<i64: 1, 8>}, {pipeline_mode = #tpu.pipeline_mode<synchronous>, transform_indices = @transform_11, window_bounds = array<i64: 8, 64>}, {pipeline_mode = #tpu.pipeline_mode<synchronous>, transform_indices = @transform_12, window_bounds = array<i64: 3, 64>}, {pipeline_mode = #tpu.pipeline_mode<synchronous>, transform_indices = @transform_13, window_bounds = array<i64: 1, 64>}, {pipeline_mode = #tpu.pipeline_mode<synchronous>, transform_indices = @transform_14, window_bounds = array<i64: 2, 8>}, {pipeline_mode = #tpu.pipeline_mode<synchronous>, transform_indices = @transform_15, window_bounds = array<i64: 2, 64>}]} {
    %c0 = arith.constant 0 : index
    %c0_0 = arith.constant 0 : index
    %c0_1 = arith.constant 0 : index
    %0 = vector.load %arg1[%c0, %c0_0, %c0_1] : memref<3x2x36xf32, #tpu.memory_space<vmem>>, vector<3x2x36xf32>
    %cst = arith.constant dense<0.000000e+00> : vector<2x36xf32>
    %1 = vector.multi_reduction <add>, %0, %cst [0] : vector<3x2x36xf32> to vector<2x36xf32>
    %c0_2 = arith.constant 0 : index
    %c0_3 = arith.constant 0 : index
    %c0_4 = arith.constant 0 : index
    %2 = vector.load %arg2[%c0_2, %c0_3, %c0_4] : memref<3x2x1xf32, #tpu.memory_space<vmem>>, vector<3x2x1xf32>
    %cst_5 = arith.constant dense<0.000000e+00> : vector<2x1xf32>
    %3 = vector.multi_reduction <add>, %2, %cst_5 [0] : vector<3x2x1xf32> to vector<2x1xf32>
    %c0_6 = arith.constant 0 : index
    %c0_7 = arith.constant 0 : index
    %4 = vector.load %arg4[%c0_6, %c0_7] : memref<36x64xf32, #tpu.memory_space<vmem>>, vector<36x64xf32>
    %cst_8 = arith.constant dense<0.000000e+00> : vector<2x64xf32>
    %5 = tpu.matmul %1, %4, %cst_8 {dimension_numbers = #tpu.dot_dimension_numbers<[1], [0], [0], [1], [0, 0, 1, 1], [], []>} : vector<2x36xf32>, vector<36x64xf32>, vector<2x64xf32> -> vector<2x64xf32>
    %cst_9 = arith.constant 9.99999996E-13 : f32
    %6 = vector.broadcast %cst_9 : f32 to vector<2x1xf32>
    %7 = arith.maximumf %3, %6 : vector<2x1xf32>
    %8 = vector.broadcast %7 : vector<2x1xf32> to vector<2x64xf32>
    %9 = arith.divf %5, %8 : vector<2x64xf32>
    %cst_10 = arith.constant dense<0.000000e+00> : vector<64xf32>
    %10 = vector.multi_reduction <add>, %9, %cst_10 [0] : vector<2x64xf32> to vector<64xf32>
    %11 = vector.shape_cast %10 : vector<64xf32> to vector<1x64xf32>
    %cst_11 = arith.constant 2.000000e+00 : f32
    %12 = vector.broadcast %cst_11 : f32 to vector<1x64xf32>
    %13 = arith.divf %11, %12 : vector<1x64xf32>
    %14 = vector.broadcast %13 : vector<1x64xf32> to vector<2x64xf32>
    %15 = arith.subf %9, %14 : vector<2x64xf32>
    %16 = arith.mulf %15, %15 : vector<2x64xf32>
    %cst_12 = arith.constant dense<0.000000e+00> : vector<64xf32>
    %17 = vector.multi_reduction <add>, %16, %cst_12 [0] : vector<2x64xf32> to vector<64xf32>
    %18 = vector.shape_cast %17 : vector<64xf32> to vector<1x64xf32>
    %cst_13 = arith.constant 2.000000e+00 : f32
    %19 = vector.broadcast %cst_13 : f32 to vector<1x64xf32>
    %20 = arith.divf %18, %19 : vector<1x64xf32>
    %21 = vector.broadcast %13 : vector<1x64xf32> to vector<2x64xf32>
    %22 = arith.subf %9, %21 : vector<2x64xf32>
    %cst_14 = arith.constant 9.99999974E-6 : f32
    %23 = vector.broadcast %cst_14 : f32 to vector<1x64xf32>
    %24 = arith.addf %20, %23 : vector<1x64xf32>
    %25 = math.rsqrt %24 : vector<1x64xf32>
    %26 = vector.broadcast %25 : vector<1x64xf32> to vector<2x64xf32>
    %27 = arith.mulf %22, %26 : vector<2x64xf32>
    %c0_15 = arith.constant 0 : index
    %c0_16 = arith.constant 0 : index
    %28 = vector.load %arg5[%c0_15, %c0_16] : memref<1x64xf32, #tpu.memory_space<vmem>>, vector<1x64xf32>
    %29 = vector.broadcast %28 : vector<1x64xf32> to vector<2x64xf32>
    %30 = arith.mulf %27, %29 : vector<2x64xf32>
    %c0_17 = arith.constant 0 : index
    %c0_18 = arith.constant 0 : index
    %31 = vector.load %arg6[%c0_17, %c0_18] : memref<1x64xf32, #tpu.memory_space<vmem>>, vector<1x64xf32>
    %32 = vector.broadcast %31 : vector<1x64xf32> to vector<2x64xf32>
    %33 = arith.addf %30, %32 : vector<2x64xf32>
    %cst_19 = arith.constant 0.000000e+00 : f32
    %34 = vector.broadcast %cst_19 : f32 to vector<2x64xf32>
    %35 = arith.maximumf %33, %34 : vector<2x64xf32>
    %c0_20 = arith.constant 0 : index
    %c0_21 = arith.constant 0 : index
    %36 = vector.load %arg7[%c0_20, %c0_21] : memref<64x256xf32, #tpu.memory_space<vmem>>, vector<64x256xf32>
    %cst_22 = arith.constant dense<0.000000e+00> : vector<2x256xf32>
    %37 = tpu.matmul %35, %36, %cst_22 {dimension_numbers = #tpu.dot_dimension_numbers<[1], [0], [0], [1], [0, 0, 1, 1], [], []>} : vector<2x64xf32>, vector<64x256xf32>, vector<2x256xf32> -> vector<2x256xf32>
    %cst_23 = arith.constant dense<0.000000e+00> : vector<256xf32>
    %38 = vector.multi_reduction <add>, %37, %cst_23 [0] : vector<2x256xf32> to vector<256xf32>
    %39 = vector.shape_cast %38 : vector<256xf32> to vector<1x256xf32>
    %cst_24 = arith.constant 2.000000e+00 : f32
    %40 = vector.broadcast %cst_24 : f32 to vector<1x256xf32>
    %41 = arith.divf %39, %40 : vector<1x256xf32>
    %42 = vector.broadcast %41 : vector<1x256xf32> to vector<2x256xf32>
    %43 = arith.subf %37, %42 : vector<2x256xf32>
    %44 = arith.mulf %43, %43 : vector<2x256xf32>
    %cst_25 = arith.constant dense<0.000000e+00> : vector<256xf32>
    %45 = vector.multi_reduction <add>, %44, %cst_25 [0] : vector<2x256xf32> to vector<256xf32>
    %46 = vector.shape_cast %45 : vector<256xf32> to vector<1x256xf32>
    %cst_26 = arith.constant 2.000000e+00 : f32
    %47 = vector.broadcast %cst_26 : f32 to vector<1x256xf32>
    %48 = arith.divf %46, %47 : vector<1x256xf32>
    %49 = vector.broadcast %41 : vector<1x256xf32> to vector<2x256xf32>
    %50 = arith.subf %37, %49 : vector<2x256xf32>
    %cst_27 = arith.constant 9.99999974E-6 : f32
    %51 = vector.broadcast %cst_27 : f32 to vector<1x256xf32>
    %52 = arith.addf %48, %51 : vector<1x256xf32>
    %53 = math.rsqrt %52 : vector<1x256xf32>
    %54 = vector.broadcast %53 : vector<1x256xf32> to vector<2x256xf32>
    %55 = arith.mulf %50, %54 : vector<2x256xf32>
    %c0_28 = arith.constant 0 : index
    %c0_29 = arith.constant 0 : index
    %56 = vector.load %arg8[%c0_28, %c0_29] : memref<1x256xf32, #tpu.memory_space<vmem>>, vector<1x256xf32>
    %57 = vector.broadcast %56 : vector<1x256xf32> to vector<2x256xf32>
    %58 = arith.mulf %55, %57 : vector<2x256xf32>
    %c0_30 = arith.constant 0 : index
    %c0_31 = arith.constant 0 : index
    %59 = vector.load %arg9[%c0_30, %c0_31] : memref<1x256xf32, #tpu.memory_space<vmem>>, vector<1x256xf32>
    %60 = vector.broadcast %59 : vector<1x256xf32> to vector<2x256xf32>
    %61 = arith.addf %58, %60 : vector<2x256xf32>
    %cst_32 = arith.constant 0.000000e+00 : f32
    %62 = vector.broadcast %cst_32 : f32 to vector<2x256xf32>
    %63 = arith.maximumf %61, %62 : vector<2x256xf32>
    %c0_33 = arith.constant 0 : index
    %c0_34 = arith.constant 0 : index
    %64 = vector.load %arg10[%c0_33, %c0_34] : memref<256x8xf32, #tpu.memory_space<vmem>>, vector<256x8xf32>
    %cst_35 = arith.constant dense<0.000000e+00> : vector<2x8xf32>
    %65 = tpu.matmul %63, %64, %cst_35 {dimension_numbers = #tpu.dot_dimension_numbers<[1], [0], [0], [1], [0, 0, 1, 1], [], []>} : vector<2x256xf32>, vector<256x8xf32>, vector<2x8xf32> -> vector<2x8xf32>
    %c0_36 = arith.constant 0 : index
    %c0_37 = arith.constant 0 : index
    %66 = vector.load %arg11[%c0_36, %c0_37] : memref<1x8xf32, #tpu.memory_space<vmem>>, vector<1x8xf32>
    %67 = vector.broadcast %66 : vector<1x8xf32> to vector<2x8xf32>
    %68 = arith.addf %65, %67 : vector<2x8xf32>
    %c0_38 = arith.constant 0 : index
    %c0_39 = arith.constant 0 : index
    %69 = vector.load %arg15[%c0_38, %c0_39] : memref<2x8xf32, #tpu.memory_space<vmem>>, vector<2x8xf32>
    tpu.vector_store %arg15[%c0_38, %c0_39], %68 {strides = array<i32>} : memref<2x8xf32, #tpu.memory_space<vmem>>, vector<2x8xf32>,
    %c0_40 = arith.constant 0 : index
    %c0_41 = arith.constant 0 : index
    %70 = vector.load %arg12[%c0_40, %c0_41] : memref<8x64xf32, #tpu.memory_space<vmem>>, vector<8x64xf32>
    %cst_42 = arith.constant dense<0.000000e+00> : vector<2x64xf32>
    %71 = tpu.matmul %68, %70, %cst_42 {dimension_numbers = #tpu.dot_dimension_numbers<[1], [0], [0], [1], [0, 0, 1, 1], [], []>} : vector<2x8xf32>, vector<8x64xf32>, vector<2x64xf32> -> vector<2x64xf32>
    %c0_43 = arith.constant 0 : index
    %c0_44 = arith.constant 0 : index
    %72 = vector.load %arg3[%c0_43, %c0_44] : memref<2x3xf32, #tpu.memory_space<vmem>>, vector<2x3xf32>
    %c0_45 = arith.constant 0 : index
    %c0_46 = arith.constant 0 : index
    %73 = vector.load %arg13[%c0_45, %c0_46] : memref<3x64xf32, #tpu.memory_space<vmem>>, vector<3x64xf32>
    %cst_47 = arith.constant dense<0.000000e+00> : vector<2x64xf32>
    %74 = tpu.matmul %72, %73, %cst_47 {dimension_numbers = #tpu.dot_dimension_numbers<[1], [0], [0], [1], [0, 0, 1, 1], [], []>} : vector<2x3xf32>, vector<3x64xf32>, vector<2x64xf32> -> vector<2x64xf32>
    %75 = arith.addf %71, %74 : vector<2x64xf32>
    %c0_48 = arith.constant 0 : index
    %c0_49 = arith.constant 0 : index
    %76 = vector.load %arg14[%c0_48, %c0_49] : memref<1x64xf32, #tpu.memory_space<vmem>>, vector<1x64xf32>
    %77 = vector.broadcast %76 : vector<1x64xf32> to vector<2x64xf32>
    %78 = arith.addf %75, %77 : vector<2x64xf32>
    %c0_50 = arith.constant 0 : index
    %c0_51 = arith.constant 0 : index
    %79 = vector.load %arg16[%c0_50, %c0_51] : memref<2x64xf32, #tpu.memory_space<vmem>>, vector<2x64xf32>
    tpu.vector_store %arg16[%c0_50, %c0_51], %78 {strides = array<i32>} : memref<2x64xf32, #tpu.memory_space<vmem>>, vector<2x64xf32>,
    return
  }
  func.func @transform_0(%arg0: i32) -> (i32, i32, i32) {
    %c0_i32 = arith.constant 0 : i32
    %c0_i32_0 = arith.constant 0 : i32
    %c0_i32_1 = arith.constant 0 : i32
    %c0_i32_2 = arith.constant 0 : i32
    return %c0_i32, %c0_i32_0, %c0_i32_1 : i32, i32, i32
  }
  func.func @transform_1(%arg0: i32) -> (i32, i32, i32) {
    %c0_i32 = arith.constant 0 : i32
    %c0_i32_0 = arith.constant 0 : i32
    %c0_i32_1 = arith.constant 0 : i32
    %c0_i32_2 = arith.constant 0 : i32
    return %c0_i32, %c0_i32_0, %c0_i32_1 : i32, i32, i32
  }
  func.func @transform_2(%arg0: i32) -> (i32, i32) {
    %c0_i32 = arith.constant 0 : i32
    %c0_i32_0 = arith.constant 0 : i32
    %c0_i32_1 = arith.constant 0 : i32
    return %c0_i32, %c0_i32_0 : i32, i32
  }
  func.func @transform_3(%arg0: i32) -> (i32, i32) {
    %c0_i32 = arith.constant 0 : i32
    %c0_i32_0 = arith.constant 0 : i32
    %c0_i32_1 = arith.constant 0 : i32
    return %c0_i32, %c0_i32_0 : i32, i32
  }
  func.func @transform_4(%arg0: i32) -> (i32, i32) {
    %c0_i32 = arith.constant 0 : i32
    %c0_i32_0 = arith.constant 0 : i32
    %c0_i32_1 = arith.constant 0 : i32
    return %c0_i32, %c0_i32_0 : i32, i32
  }
  func.func @transform_5(%arg0: i32) -> (i32, i32) {
    %c0_i32 = arith.constant 0 : i32
    %c0_i32_0 = arith.constant 0 : i32
    %c0_i32_1 = arith.constant 0 : i32
    return %c0_i32, %c0_i32_0 : i32, i32
  }
  func.func @transform_6(%arg0: i32) -> (i32, i32) {
    %c0_i32 = arith.constant 0 : i32
    %c0_i32_0 = arith.constant 0 : i32
    %c0_i32_1 = arith.constant 0 : i32
    return %c0_i32, %c0_i32_0 : i32, i32
  }
  func.func @transform_7(%arg0: i32) -> (i32, i32) {
    %c0_i32 = arith.constant 0 : i32
    %c0_i32_0 = arith.constant 0 : i32
    %c0_i32_1 = arith.constant 0 : i32
    return %c0_i32, %c0_i32_0 : i32, i32
  }
  func.func @transform_8(%arg0: i32) -> (i32, i32) {
    %c0_i32 = arith.constant 0 : i32
    %c0_i32_0 = arith.constant 0 : i32
    %c0_i32_1 = arith.constant 0 : i32
    return %c0_i32, %c0_i32_0 : i32, i32
  }
  func.func @transform_9(%arg0: i32) -> (i32, i32) {
    %c0_i32 = arith.constant 0 : i32
    %c0_i32_0 = arith.constant 0 : i32
    %c0_i32_1 = arith.constant 0 : i32
    return %c0_i32, %c0_i32_0 : i32, i32
  }
  func.func @transform_10(%arg0: i32) -> (i32, i32) {
    %c0_i32 = arith.constant 0 : i32
    %c0_i32_0 = arith.constant 0 : i32
    %c0_i32_1 = arith.constant 0 : i32
    return %c0_i32, %c0_i32_0 : i32, i32
  }
  func.func @transform_11(%arg0: i32) -> (i32, i32) {
    %c0_i32 = arith.constant 0 : i32
    %c0_i32_0 = arith.constant 0 : i32
    %c0_i32_1 = arith.constant 0 : i32
    return %c0_i32, %c0_i32_0 : i32, i32
  }
  func.func @transform_12(%arg0: i32) -> (i32, i32) {
    %c0_i32 = arith.constant 0 : i32
    %c0_i32_0 = arith.constant 0 : i32
    %c0_i32_1 = arith.constant 0 : i32
    return %c0_i32, %c0_i32_0 : i32, i32
  }
  func.func @transform_13(%arg0: i32) -> (i32, i32) {
    %c0_i32 = arith.constant 0 : i32
    %c0_i32_0 = arith.constant 0 : i32
    %c0_i32_1 = arith.constant 0 : i32
    return %c0_i32, %c0_i32_0 : i32, i32
  }
  func.func @transform_14(%arg0: i32) -> (i32, i32) {
    %c0_i32 = arith.constant 0 : i32
    %c0_i32_0 = arith.constant 0 : i32
    %c0_i32_1 = arith.constant 0 : i32
    return %c0_i32, %c0_i32_0 : i32, i32
  }
  func.func @transform_15(%arg0: i32) -> (i32, i32) {
    %c0_i32 = arith.constant 0 : i32
    %c0_i32_0 = arith.constant 0 : i32
    %c0_i32_1 = arith.constant 0 : i32
    return %c0_i32, %c0_i32_0 : i32, i32
  }
}

module attributes {stable_mosaic.version = 11 : i64} {
  func.func @_decode_stats_kernel(%arg0: i32, %arg1: i32, %arg2: memref<1x3x128xf32, #tpu.memory_space<vmem>>, %arg3: memref<1x64x24xf32, #tpu.memory_space<vmem>>, %arg4: memref<1x64x1xf32, #tpu.memory_space<vmem>>, %arg5: memref<1x64x2xf32, #tpu.memory_space<vmem>>, %arg6: memref<24x128xf32, #tpu.memory_space<vmem>>) attributes {dimension_semantics = [#tpu.dimension_semantics<parallel>, #tpu.dimension_semantics<parallel>], iteration_bounds = array<i64: 2, 3>, scalar_prefetch = 0 : i64, scratch_operands = 1 : i64, tpu.core_type = #tpu.core_type<tc>, window_params = [{transform_indices = @transform_0, window_bounds = array<i64: 1, 3, 128>}, {transform_indices = @transform_1, window_bounds = array<i64: 1, 64, 24>}, {transform_indices = @transform_2, window_bounds = array<i64: 1, 64, 1>}, {transform_indices = @transform_3, window_bounds = array<i64: 1, 64, 2>}]} {
    %c0 = arith.constant 0 : index
    %c0_0 = arith.constant 0 : index
    %c0_1 = arith.constant 0 : index
    %0 = vector.load %arg2[%c0, %c0_0, %c0_1] : memref<1x3x128xf32, #tpu.memory_space<vmem>>, vector<1x3x128xf32>
    %1 = vector.shape_cast %0 : vector<1x3x128xf32> to vector<3x128xf32>
    %2 = vector.extract_strided_slice %1 {offsets = [0, 0], sizes = [1, 128], strides = [1, 1]} : vector<3x128xf32> to vector<1x128xf32>
    %3 = vector.extract_strided_slice %1 {offsets = [1, 0], sizes = [1, 128], strides = [1, 1]} : vector<3x128xf32> to vector<1x128xf32>
    %4 = vector.extract_strided_slice %1 {offsets = [2, 0], sizes = [1, 128], strides = [1, 1]} : vector<3x128xf32> to vector<1x128xf32>
    %5 = arith.mulf %2, %2 : vector<1x128xf32>
    %6 = arith.mulf %3, %3 : vector<1x128xf32>
    %7 = arith.addf %5, %6 : vector<1x128xf32>
    %8 = arith.mulf %4, %4 : vector<1x128xf32>
    %9 = arith.addf %7, %8 : vector<1x128xf32>
    %cst = arith.constant 1.000000e-16 : f32
    %10 = vector.broadcast %cst : f32 to vector<1x128xf32>
    %11 = arith.addf %9, %10 : vector<1x128xf32>
    %12 = tpu.reciprocal %11 {approx = true} : vector<1x128xf32> -> vector<1x128xf32>
    %cst_2 = arith.constant 0.000000e+00 : f32
    %13 = vector.broadcast %cst_2 : f32 to vector<1x128xf32>
    %14 = arith.subf %13, %4 : vector<1x128xf32>
    %cst_3 = arith.constant 0.000000e+00 : f32
    %15 = vector.broadcast %cst_3 : f32 to vector<1x128xf32>
    %16 = arith.subf %15, %3 : vector<1x128xf32>
    %cst_4 = arith.constant 0.000000e+00 : f32
    %17 = vector.broadcast %cst_4 : f32 to vector<1x128xf32>
    %18 = arith.subf %17, %2 : vector<1x128xf32>
    %cst_5 = arith.constant 0.000000e+00 : f32
    %19 = vector.broadcast %cst_5 : f32 to vector<1x128xf32>
    %20 = arith.maximumf %4, %19 : vector<1x128xf32>
    %21 = arith.mulf %20, %20 : vector<1x128xf32>
    %22 = arith.mulf %21, %12 : vector<1x128xf32>
    %23 = vector.broadcast %22 : vector<1x128xf32> to vector<3x128xf32>
    %24 = arith.mulf %1, %23 : vector<3x128xf32>
    %c0_6 = arith.constant 0 : index
    %c0_7 = arith.constant 0 : index
    %25 = vector.load %arg6[%c0_6, %c0_7] : memref<24x128xf32, #tpu.memory_space<vmem>>, vector<3x128xf32>
    tpu.vector_store %arg6[%c0_6, %c0_7], %24 {strides = array<i32>} : memref<24x128xf32, #tpu.memory_space<vmem>>, vector<3x128xf32>,
    %c18 = arith.constant 18 : index
    %c0_8 = arith.constant 0 : index
    %26 = vector.load %arg6[%c18, %c0_8] : memref<24x128xf32, #tpu.memory_space<vmem>>, vector<1x128xf32>
    tpu.vector_store %arg6[%c18, %c0_8], %22 {strides = array<i32>} : memref<24x128xf32, #tpu.memory_space<vmem>>, vector<1x128xf32>,
    %cst_9 = arith.constant 0.000000e+00 : f32
    %27 = vector.broadcast %cst_9 : f32 to vector<1x128xf32>
    %28 = arith.maximumf %14, %27 : vector<1x128xf32>
    %29 = arith.mulf %28, %28 : vector<1x128xf32>
    %30 = arith.mulf %29, %12 : vector<1x128xf32>
    %31 = vector.broadcast %30 : vector<1x128xf32> to vector<3x128xf32>
    %32 = arith.mulf %1, %31 : vector<3x128xf32>
    %c3 = arith.constant 3 : index
    %c0_10 = arith.constant 0 : index
    %33 = vector.load %arg6[%c3, %c0_10] : memref<24x128xf32, #tpu.memory_space<vmem>>, vector<3x128xf32>
    tpu.vector_store %arg6[%c3, %c0_10], %32 {strides = array<i32>} : memref<24x128xf32, #tpu.memory_space<vmem>>, vector<3x128xf32>,
    %c19 = arith.constant 19 : index
    %c0_11 = arith.constant 0 : index
    %34 = vector.load %arg6[%c19, %c0_11] : memref<24x128xf32, #tpu.memory_space<vmem>>, vector<1x128xf32>
    tpu.vector_store %arg6[%c19, %c0_11], %30 {strides = array<i32>} : memref<24x128xf32, #tpu.memory_space<vmem>>, vector<1x128xf32>,
    %cst_12 = arith.constant 0.000000e+00 : f32
    %35 = vector.broadcast %cst_12 : f32 to vector<1x128xf32>
    %36 = arith.maximumf %3, %35 : vector<1x128xf32>
    %37 = arith.mulf %36, %36 : vector<1x128xf32>
    %38 = arith.mulf %37, %12 : vector<1x128xf32>
    %39 = vector.broadcast %38 : vector<1x128xf32> to vector<3x128xf32>
    %40 = arith.mulf %1, %39 : vector<3x128xf32>
    %c6 = arith.constant 6 : index
    %c0_13 = arith.constant 0 : index
    %41 = vector.load %arg6[%c6, %c0_13] : memref<24x128xf32, #tpu.memory_space<vmem>>, vector<3x128xf32>
    tpu.vector_store %arg6[%c6, %c0_13], %40 {strides = array<i32>} : memref<24x128xf32, #tpu.memory_space<vmem>>, vector<3x128xf32>,
    %c20 = arith.constant 20 : index
    %c0_14 = arith.constant 0 : index
    %42 = vector.load %arg6[%c20, %c0_14] : memref<24x128xf32, #tpu.memory_space<vmem>>, vector<1x128xf32>
    tpu.vector_store %arg6[%c20, %c0_14], %38 {strides = array<i32>} : memref<24x128xf32, #tpu.memory_space<vmem>>, vector<1x128xf32>,
    %cst_15 = arith.constant 0.000000e+00 : f32
    %43 = vector.broadcast %cst_15 : f32 to vector<1x128xf32>
    %44 = arith.maximumf %16, %43 : vector<1x128xf32>
    %45 = arith.mulf %44, %44 : vector<1x128xf32>
    %46 = arith.mulf %45, %12 : vector<1x128xf32>
    %47 = vector.broadcast %46 : vector<1x128xf32> to vector<3x128xf32>
    %48 = arith.mulf %1, %47 : vector<3x128xf32>
    %c9 = arith.constant 9 : index
    %c0_16 = arith.constant 0 : index
    %49 = vector.load %arg6[%c9, %c0_16] : memref<24x128xf32, #tpu.memory_space<vmem>>, vector<3x128xf32>
    tpu.vector_store %arg6[%c9, %c0_16], %48 {strides = array<i32>} : memref<24x128xf32, #tpu.memory_space<vmem>>, vector<3x128xf32>,
    %c21 = arith.constant 21 : index
    %c0_17 = arith.constant 0 : index
    %50 = vector.load %arg6[%c21, %c0_17] : memref<24x128xf32, #tpu.memory_space<vmem>>, vector<1x128xf32>
    tpu.vector_store %arg6[%c21, %c0_17], %46 {strides = array<i32>} : memref<24x128xf32, #tpu.memory_space<vmem>>, vector<1x128xf32>,
    %cst_18 = arith.constant 0.000000e+00 : f32
    %51 = vector.broadcast %cst_18 : f32 to vector<1x128xf32>
    %52 = arith.maximumf %2, %51 : vector<1x128xf32>
    %53 = arith.mulf %52, %52 : vector<1x128xf32>
    %54 = arith.mulf %53, %12 : vector<1x128xf32>
    %55 = vector.broadcast %54 : vector<1x128xf32> to vector<3x128xf32>
    %56 = arith.mulf %1, %55 : vector<3x128xf32>
    %c12 = arith.constant 12 : index
    %c0_19 = arith.constant 0 : index
    %57 = vector.load %arg6[%c12, %c0_19] : memref<24x128xf32, #tpu.memory_space<vmem>>, vector<3x128xf32>
    tpu.vector_store %arg6[%c12, %c0_19], %56 {strides = array<i32>} : memref<24x128xf32, #tpu.memory_space<vmem>>, vector<3x128xf32>,
    %c22 = arith.constant 22 : index
    %c0_20 = arith.constant 0 : index
    %58 = vector.load %arg6[%c22, %c0_20] : memref<24x128xf32, #tpu.memory_space<vmem>>, vector<1x128xf32>
    tpu.vector_store %arg6[%c22, %c0_20], %54 {strides = array<i32>} : memref<24x128xf32, #tpu.memory_space<vmem>>, vector<1x128xf32>,
    %cst_21 = arith.constant 0.000000e+00 : f32
    %59 = vector.broadcast %cst_21 : f32 to vector<1x128xf32>
    %60 = arith.maximumf %18, %59 : vector<1x128xf32>
    %61 = arith.mulf %60, %60 : vector<1x128xf32>
    %62 = arith.mulf %61, %12 : vector<1x128xf32>
    %63 = vector.broadcast %62 : vector<1x128xf32> to vector<3x128xf32>
    %64 = arith.mulf %1, %63 : vector<3x128xf32>
    %c15 = arith.constant 15 : index
    %c0_22 = arith.constant 0 : index
    %65 = vector.load %arg6[%c15, %c0_22] : memref<24x128xf32, #tpu.memory_space<vmem>>, vector<3x128xf32>
    tpu.vector_store %arg6[%c15, %c0_22], %64 {strides = array<i32>} : memref<24x128xf32, #tpu.memory_space<vmem>>, vector<3x128xf32>,
    %c23 = arith.constant 23 : index
    %c0_23 = arith.constant 0 : index
    %66 = vector.load %arg6[%c23, %c0_23] : memref<24x128xf32, #tpu.memory_space<vmem>>, vector<1x128xf32>
    tpu.vector_store %arg6[%c23, %c0_23], %62 {strides = array<i32>} : memref<24x128xf32, #tpu.memory_space<vmem>>, vector<1x128xf32>,
    %c0_24 = arith.constant 0 : index
    %c0_25 = arith.constant 0 : index
    %c0_26 = arith.constant 0 : index
    %67 = vector.load %arg3[%c0_24, %c0_25, %c0_26] : memref<1x64x24xf32, #tpu.memory_space<vmem>>, vector<1x64x24xf32>
    %68 = vector.shape_cast %67 : vector<1x64x24xf32> to vector<64x24xf32>
    %c0_27 = arith.constant 0 : index
    %c0_28 = arith.constant 0 : index
    %69 = vector.load %arg6[%c0_27, %c0_28] : memref<24x128xf32, #tpu.memory_space<vmem>>, vector<24x128xf32>
    %cst_29 = arith.constant dense<0.000000e+00> : vector<64x128xf32>
    %70 = tpu.matmul %68, %69, %cst_29 {dimension_numbers = #tpu.dot_dimension_numbers<[1], [0], [0], [1], [0, 0, 1, 1], [], []>} : vector<64x24xf32>, vector<24x128xf32>, vector<64x128xf32> -> vector<64x128xf32>
    %71 = tpu.iota {dimensions = array<i32: 1>} : vector<64x128xi32>
    %c0_i32 = arith.constant 0 : i32
    %72 = vector.broadcast %c0_i32 : i32 to vector<64x128xi32>
    %73 = arith.cmpi eq, %71, %72 : vector<64x128xi32>
    %c0_i32_30 = arith.constant 0 : i32
    %74 = arith.cmpi eq, %arg1, %c0_i32_30 : i32
    %75 = vector.broadcast %74 : i1 to vector<64x128xi1>
    %76 = arith.andi %73, %75 : vector<64x128xi1>
    %c0_31 = arith.constant 0 : index
    %c0_32 = arith.constant 0 : index
    %c0_33 = arith.constant 0 : index
    %77 = vector.load %arg4[%c0_31, %c0_32, %c0_33] : memref<1x64x1xf32, #tpu.memory_space<vmem>>, vector<1x64x1xf32>
    %78 = vector.shape_cast %77 : vector<1x64x1xf32> to vector<64x1xf32>
    %79 = vector.shape_cast %78 : vector<64x1xf32> to vector<64x1xf32>
    %80 = vector.broadcast %79 : vector<64x1xf32> to vector<64x128xf32>
    %81 = arith.select %76, %80, %70 : vector<64x128xi1>, vector<64x128xf32>
    %cst_34 = arith.constant dense<0.000000e+00> : vector<64xf32>
    %82 = vector.multi_reduction <add>, %81, %cst_34 [1] : vector<64x128xf32> to vector<64xf32>
    %83 = vector.shape_cast %82 : vector<64xf32> to vector<64x1xf32>
    %84 = arith.mulf %81, %81 : vector<64x128xf32>
    %cst_35 = arith.constant dense<0.000000e+00> : vector<64xf32>
    %85 = vector.multi_reduction <add>, %84, %cst_35 [1] : vector<64x128xf32> to vector<64xf32>
    %86 = vector.shape_cast %85 : vector<64xf32> to vector<64x1xf32>
    %87 = tpu.concatenate %83, %86 in 1 : vector<64x1xf32>, vector<64x1xf32> -> vector<64x2xf32>
    %88 = vector.shape_cast %87 : vector<64x2xf32> to vector<1x64x2xf32>
    %c0_36 = arith.constant 0 : index
    %c0_37 = arith.constant 0 : index
    %c0_38 = arith.constant 0 : index
    %89 = vector.load %arg5[%c0_36, %c0_37, %c0_38] : memref<1x64x2xf32, #tpu.memory_space<vmem>>, vector<1x64x2xf32>
    tpu.vector_store %arg5[%c0_36, %c0_37, %c0_38], %88 {strides = array<i32>} : memref<1x64x2xf32, #tpu.memory_space<vmem>>, vector<1x64x2xf32>,
    return
  }
  func.func @transform_0(%arg0: i32, %arg1: i32) -> (i32, i32, i32) {
    %c0_i32 = arith.constant 0 : i32
    %c0_i32_0 = arith.constant 0 : i32
    return %arg0, %c0_i32, %arg1 : i32, i32, i32
  }
  func.func @transform_1(%arg0: i32, %arg1: i32) -> (i32, i32, i32) {
    %c0_i32 = arith.constant 0 : i32
    %c0_i32_0 = arith.constant 0 : i32
    %c0_i32_1 = arith.constant 0 : i32
    return %arg0, %c0_i32, %c0_i32_0 : i32, i32, i32
  }
  func.func @transform_2(%arg0: i32, %arg1: i32) -> (i32, i32, i32) {
    %c0_i32 = arith.constant 0 : i32
    %c0_i32_0 = arith.constant 0 : i32
    %c0_i32_1 = arith.constant 0 : i32
    return %arg0, %c0_i32, %c0_i32_0 : i32, i32, i32
  }
  func.func @transform_3(%arg0: i32, %arg1: i32) -> (i32, i32, i32) {
    %c3_i32 = arith.constant 3 : i32
    %0 = arith.muli %arg0, %c3_i32 : i32
    %1 = arith.addi %0, %arg1 : i32
    %c0_i32 = arith.constant 0 : i32
    %c0_i32_0 = arith.constant 0 : i32
    %c0_i32_1 = arith.constant 0 : i32
    return %1, %c0_i32, %c0_i32_0 : i32, i32, i32
  }
}

module attributes {stable_mosaic.version = 11 : i64} {
  func.func @_decode_apply_kernel(%arg0: i32, %arg1: i32, %arg2: memref<1x3x128xf32, #tpu.memory_space<vmem>>, %arg3: memref<1x64x24xf32, #tpu.memory_space<vmem>>, %arg4: memref<1x64x1xf32, #tpu.memory_space<vmem>>, %arg5: memref<64x1xf32, #tpu.memory_space<vmem>>, %arg6: memref<64x1xf32, #tpu.memory_space<vmem>>, %arg7: memref<3x64xf32, #tpu.memory_space<vmem>>, %arg8: memref<3x1xf32, #tpu.memory_space<vmem>>, %arg9: memref<1x3x128xf32, #tpu.memory_space<vmem>>, %arg10: memref<24x128xf32, #tpu.memory_space<vmem>>) attributes {dimension_semantics = [#tpu.dimension_semantics<parallel>, #tpu.dimension_semantics<parallel>], iteration_bounds = array<i64: 2, 3>, scalar_prefetch = 0 : i64, scratch_operands = 1 : i64, tpu.core_type = #tpu.core_type<tc>, window_params = [{transform_indices = @transform_0, window_bounds = array<i64: 1, 3, 128>}, {transform_indices = @transform_1, window_bounds = array<i64: 1, 64, 24>}, {transform_indices = @transform_2, window_bounds = array<i64: 1, 64, 1>}, {pipeline_mode = #tpu.pipeline_mode<synchronous>, transform_indices = @transform_3, window_bounds = array<i64: 64, 1>}, {pipeline_mode = #tpu.pipeline_mode<synchronous>, transform_indices = @transform_4, window_bounds = array<i64: 64, 1>}, {pipeline_mode = #tpu.pipeline_mode<synchronous>, transform_indices = @transform_5, window_bounds = array<i64: 3, 64>}, {pipeline_mode = #tpu.pipeline_mode<synchronous>, transform_indices = @transform_6, window_bounds = array<i64: 3, 1>}, {transform_indices = @transform_7, window_bounds = array<i64: 1, 3, 128>}]} {
    %c0 = arith.constant 0 : index
    %c0_0 = arith.constant 0 : index
    %c0_1 = arith.constant 0 : index
    %0 = vector.load %arg2[%c0, %c0_0, %c0_1] : memref<1x3x128xf32, #tpu.memory_space<vmem>>, vector<1x3x128xf32>
    %1 = vector.shape_cast %0 : vector<1x3x128xf32> to vector<3x128xf32>
    %2 = vector.extract_strided_slice %1 {offsets = [0, 0], sizes = [1, 128], strides = [1, 1]} : vector<3x128xf32> to vector<1x128xf32>
    %3 = vector.extract_strided_slice %1 {offsets = [1, 0], sizes = [1, 128], strides = [1, 1]} : vector<3x128xf32> to vector<1x128xf32>
    %4 = vector.extract_strided_slice %1 {offsets = [2, 0], sizes = [1, 128], strides = [1, 1]} : vector<3x128xf32> to vector<1x128xf32>
    %5 = arith.mulf %2, %2 : vector<1x128xf32>
    %6 = arith.mulf %3, %3 : vector<1x128xf32>
    %7 = arith.addf %5, %6 : vector<1x128xf32>
    %8 = arith.mulf %4, %4 : vector<1x128xf32>
    %9 = arith.addf %7, %8 : vector<1x128xf32>
    %cst = arith.constant 1.000000e-16 : f32
    %10 = vector.broadcast %cst : f32 to vector<1x128xf32>
    %11 = arith.addf %9, %10 : vector<1x128xf32>
    %12 = tpu.reciprocal %11 {approx = true} : vector<1x128xf32> -> vector<1x128xf32>
    %cst_2 = arith.constant 0.000000e+00 : f32
    %13 = vector.broadcast %cst_2 : f32 to vector<1x128xf32>
    %14 = arith.subf %13, %4 : vector<1x128xf32>
    %cst_3 = arith.constant 0.000000e+00 : f32
    %15 = vector.broadcast %cst_3 : f32 to vector<1x128xf32>
    %16 = arith.subf %15, %3 : vector<1x128xf32>
    %cst_4 = arith.constant 0.000000e+00 : f32
    %17 = vector.broadcast %cst_4 : f32 to vector<1x128xf32>
    %18 = arith.subf %17, %2 : vector<1x128xf32>
    %cst_5 = arith.constant 0.000000e+00 : f32
    %19 = vector.broadcast %cst_5 : f32 to vector<1x128xf32>
    %20 = arith.maximumf %4, %19 : vector<1x128xf32>
    %21 = arith.mulf %20, %20 : vector<1x128xf32>
    %22 = arith.mulf %21, %12 : vector<1x128xf32>
    %23 = vector.broadcast %22 : vector<1x128xf32> to vector<3x128xf32>
    %24 = arith.mulf %1, %23 : vector<3x128xf32>
    %c0_6 = arith.constant 0 : index
    %c0_7 = arith.constant 0 : index
    %25 = vector.load %arg10[%c0_6, %c0_7] : memref<24x128xf32, #tpu.memory_space<vmem>>, vector<3x128xf32>
    tpu.vector_store %arg10[%c0_6, %c0_7], %24 {strides = array<i32>} : memref<24x128xf32, #tpu.memory_space<vmem>>, vector<3x128xf32>,
    %c18 = arith.constant 18 : index
    %c0_8 = arith.constant 0 : index
    %26 = vector.load %arg10[%c18, %c0_8] : memref<24x128xf32, #tpu.memory_space<vmem>>, vector<1x128xf32>
    tpu.vector_store %arg10[%c18, %c0_8], %22 {strides = array<i32>} : memref<24x128xf32, #tpu.memory_space<vmem>>, vector<1x128xf32>,
    %cst_9 = arith.constant 0.000000e+00 : f32
    %27 = vector.broadcast %cst_9 : f32 to vector<1x128xf32>
    %28 = arith.maximumf %14, %27 : vector<1x128xf32>
    %29 = arith.mulf %28, %28 : vector<1x128xf32>
    %30 = arith.mulf %29, %12 : vector<1x128xf32>
    %31 = vector.broadcast %30 : vector<1x128xf32> to vector<3x128xf32>
    %32 = arith.mulf %1, %31 : vector<3x128xf32>
    %c3 = arith.constant 3 : index
    %c0_10 = arith.constant 0 : index
    %33 = vector.load %arg10[%c3, %c0_10] : memref<24x128xf32, #tpu.memory_space<vmem>>, vector<3x128xf32>
    tpu.vector_store %arg10[%c3, %c0_10], %32 {strides = array<i32>} : memref<24x128xf32, #tpu.memory_space<vmem>>, vector<3x128xf32>,
    %c19 = arith.constant 19 : index
    %c0_11 = arith.constant 0 : index
    %34 = vector.load %arg10[%c19, %c0_11] : memref<24x128xf32, #tpu.memory_space<vmem>>, vector<1x128xf32>
    tpu.vector_store %arg10[%c19, %c0_11], %30 {strides = array<i32>} : memref<24x128xf32, #tpu.memory_space<vmem>>, vector<1x128xf32>,
    %cst_12 = arith.constant 0.000000e+00 : f32
    %35 = vector.broadcast %cst_12 : f32 to vector<1x128xf32>
    %36 = arith.maximumf %3, %35 : vector<1x128xf32>
    %37 = arith.mulf %36, %36 : vector<1x128xf32>
    %38 = arith.mulf %37, %12 : vector<1x128xf32>
    %39 = vector.broadcast %38 : vector<1x128xf32> to vector<3x128xf32>
    %40 = arith.mulf %1, %39 : vector<3x128xf32>
    %c6 = arith.constant 6 : index
    %c0_13 = arith.constant 0 : index
    %41 = vector.load %arg10[%c6, %c0_13] : memref<24x128xf32, #tpu.memory_space<vmem>>, vector<3x128xf32>
    tpu.vector_store %arg10[%c6, %c0_13], %40 {strides = array<i32>} : memref<24x128xf32, #tpu.memory_space<vmem>>, vector<3x128xf32>,
    %c20 = arith.constant 20 : index
    %c0_14 = arith.constant 0 : index
    %42 = vector.load %arg10[%c20, %c0_14] : memref<24x128xf32, #tpu.memory_space<vmem>>, vector<1x128xf32>
    tpu.vector_store %arg10[%c20, %c0_14], %38 {strides = array<i32>} : memref<24x128xf32, #tpu.memory_space<vmem>>, vector<1x128xf32>,
    %cst_15 = arith.constant 0.000000e+00 : f32
    %43 = vector.broadcast %cst_15 : f32 to vector<1x128xf32>
    %44 = arith.maximumf %16, %43 : vector<1x128xf32>
    %45 = arith.mulf %44, %44 : vector<1x128xf32>
    %46 = arith.mulf %45, %12 : vector<1x128xf32>
    %47 = vector.broadcast %46 : vector<1x128xf32> to vector<3x128xf32>
    %48 = arith.mulf %1, %47 : vector<3x128xf32>
    %c9 = arith.constant 9 : index
    %c0_16 = arith.constant 0 : index
    %49 = vector.load %arg10[%c9, %c0_16] : memref<24x128xf32, #tpu.memory_space<vmem>>, vector<3x128xf32>
    tpu.vector_store %arg10[%c9, %c0_16], %48 {strides = array<i32>} : memref<24x128xf32, #tpu.memory_space<vmem>>, vector<3x128xf32>,
    %c21 = arith.constant 21 : index
    %c0_17 = arith.constant 0 : index
    %50 = vector.load %arg10[%c21, %c0_17] : memref<24x128xf32, #tpu.memory_space<vmem>>, vector<1x128xf32>
    tpu.vector_store %arg10[%c21, %c0_17], %46 {strides = array<i32>} : memref<24x128xf32, #tpu.memory_space<vmem>>, vector<1x128xf32>,
    %cst_18 = arith.constant 0.000000e+00 : f32
    %51 = vector.broadcast %cst_18 : f32 to vector<1x128xf32>
    %52 = arith.maximumf %2, %51 : vector<1x128xf32>
    %53 = arith.mulf %52, %52 : vector<1x128xf32>
    %54 = arith.mulf %53, %12 : vector<1x128xf32>
    %55 = vector.broadcast %54 : vector<1x128xf32> to vector<3x128xf32>
    %56 = arith.mulf %1, %55 : vector<3x128xf32>
    %c12 = arith.constant 12 : index
    %c0_19 = arith.constant 0 : index
    %57 = vector.load %arg10[%c12, %c0_19] : memref<24x128xf32, #tpu.memory_space<vmem>>, vector<3x128xf32>
    tpu.vector_store %arg10[%c12, %c0_19], %56 {strides = array<i32>} : memref<24x128xf32, #tpu.memory_space<vmem>>, vector<3x128xf32>,
    %c22 = arith.constant 22 : index
    %c0_20 = arith.constant 0 : index
    %58 = vector.load %arg10[%c22, %c0_20] : memref<24x128xf32, #tpu.memory_space<vmem>>, vector<1x128xf32>
    tpu.vector_store %arg10[%c22, %c0_20], %54 {strides = array<i32>} : memref<24x128xf32, #tpu.memory_space<vmem>>, vector<1x128xf32>,
    %cst_21 = arith.constant 0.000000e+00 : f32
    %59 = vector.broadcast %cst_21 : f32 to vector<1x128xf32>
    %60 = arith.maximumf %18, %59 : vector<1x128xf32>
    %61 = arith.mulf %60, %60 : vector<1x128xf32>
    %62 = arith.mulf %61, %12 : vector<1x128xf32>
    %63 = vector.broadcast %62 : vector<1x128xf32> to vector<3x128xf32>
    %64 = arith.mulf %1, %63 : vector<3x128xf32>
    %c15 = arith.constant 15 : index
    %c0_22 = arith.constant 0 : index
    %65 = vector.load %arg10[%c15, %c0_22] : memref<24x128xf32, #tpu.memory_space<vmem>>, vector<3x128xf32>
    tpu.vector_store %arg10[%c15, %c0_22], %64 {strides = array<i32>} : memref<24x128xf32, #tpu.memory_space<vmem>>, vector<3x128xf32>,
    %c23 = arith.constant 23 : index
    %c0_23 = arith.constant 0 : index
    %66 = vector.load %arg10[%c23, %c0_23] : memref<24x128xf32, #tpu.memory_space<vmem>>, vector<1x128xf32>
    tpu.vector_store %arg10[%c23, %c0_23], %62 {strides = array<i32>} : memref<24x128xf32, #tpu.memory_space<vmem>>, vector<1x128xf32>,
    %c0_24 = arith.constant 0 : index
    %c0_25 = arith.constant 0 : index
    %c0_26 = arith.constant 0 : index
    %67 = vector.load %arg3[%c0_24, %c0_25, %c0_26] : memref<1x64x24xf32, #tpu.memory_space<vmem>>, vector<1x64x24xf32>
    %68 = vector.shape_cast %67 : vector<1x64x24xf32> to vector<64x24xf32>
    %c0_27 = arith.constant 0 : index
    %c0_28 = arith.constant 0 : index
    %69 = vector.load %arg10[%c0_27, %c0_28] : memref<24x128xf32, #tpu.memory_space<vmem>>, vector<24x128xf32>
    %cst_29 = arith.constant dense<0.000000e+00> : vector<64x128xf32>
    %70 = tpu.matmul %68, %69, %cst_29 {dimension_numbers = #tpu.dot_dimension_numbers<[1], [0], [0], [1], [0, 0, 1, 1], [], []>} : vector<64x24xf32>, vector<24x128xf32>, vector<64x128xf32> -> vector<64x128xf32>
    %71 = tpu.iota {dimensions = array<i32: 1>} : vector<64x128xi32>
    %c0_i32 = arith.constant 0 : i32
    %72 = vector.broadcast %c0_i32 : i32 to vector<64x128xi32>
    %73 = arith.cmpi eq, %71, %72 : vector<64x128xi32>
    %c0_i32_30 = arith.constant 0 : i32
    %74 = arith.cmpi eq, %arg1, %c0_i32_30 : i32
    %75 = vector.broadcast %74 : i1 to vector<64x128xi1>
    %76 = arith.andi %73, %75 : vector<64x128xi1>
    %c0_31 = arith.constant 0 : index
    %c0_32 = arith.constant 0 : index
    %c0_33 = arith.constant 0 : index
    %77 = vector.load %arg4[%c0_31, %c0_32, %c0_33] : memref<1x64x1xf32, #tpu.memory_space<vmem>>, vector<1x64x1xf32>
    %78 = vector.shape_cast %77 : vector<1x64x1xf32> to vector<64x1xf32>
    %79 = vector.shape_cast %78 : vector<64x1xf32> to vector<64x1xf32>
    %80 = vector.broadcast %79 : vector<64x1xf32> to vector<64x128xf32>
    %81 = arith.select %76, %80, %70 : vector<64x128xi1>, vector<64x128xf32>
    %c0_34 = arith.constant 0 : index
    %c0_35 = arith.constant 0 : index
    %82 = vector.load %arg5[%c0_34, %c0_35] : memref<64x1xf32, #tpu.memory_space<vmem>>, vector<64x1xf32>
    %83 = vector.broadcast %82 : vector<64x1xf32> to vector<64x128xf32>
    %84 = arith.mulf %81, %83 : vector<64x128xf32>
    %c0_36 = arith.constant 0 : index
    %c0_37 = arith.constant 0 : index
    %85 = vector.load %arg6[%c0_36, %c0_37] : memref<64x1xf32, #tpu.memory_space<vmem>>, vector<64x1xf32>
    %86 = vector.broadcast %85 : vector<64x1xf32> to vector<64x128xf32>
    %87 = arith.addf %84, %86 : vector<64x128xf32>
    %cst_38 = arith.constant 0.000000e+00 : f32
    %88 = vector.broadcast %cst_38 : f32 to vector<64x128xf32>
    %89 = arith.maximumf %87, %88 : vector<64x128xf32>
    %c0_39 = arith.constant 0 : index
    %c0_40 = arith.constant 0 : index
    %90 = vector.load %arg7[%c0_39, %c0_40] : memref<3x64xf32, #tpu.memory_space<vmem>>, vector<3x64xf32>
    %cst_41 = arith.constant dense<0.000000e+00> : vector<3x128xf32>
    %91 = tpu.matmul %90, %89, %cst_41 {dimension_numbers = #tpu.dot_dimension_numbers<[1], [0], [0], [1], [0, 0, 1, 1], [], []>} : vector<3x64xf32>, vector<64x128xf32>, vector<3x128xf32> -> vector<3x128xf32>
    %c0_42 = arith.constant 0 : index
    %c0_43 = arith.constant 0 : index
    %92 = vector.load %arg8[%c0_42, %c0_43] : memref<3x1xf32, #tpu.memory_space<vmem>>, vector<3x1xf32>
    %93 = vector.broadcast %92 : vector<3x1xf32> to vector<3x128xf32>
    %94 = arith.addf %91, %93 : vector<3x128xf32>
    %95 = arith.negf %94 : vector<3x128xf32>
    %96 = math.exp %95 : vector<3x128xf32>
    %cst_44 = arith.constant 1.000000e+00 : f32
    %97 = vector.broadcast %cst_44 : f32 to vector<3x128xf32>
    %98 = arith.addf %97, %96 : vector<3x128xf32>
    %99 = arith.divf %97, %98 : vector<3x128xf32>
    %100 = vector.shape_cast %99 : vector<3x128xf32> to vector<1x3x128xf32>
    %c0_45 = arith.constant 0 : index
    %c0_46 = arith.constant 0 : index
    %c0_47 = arith.constant 0 : index
    %101 = vector.load %arg9[%c0_45, %c0_46, %c0_47] : memref<1x3x128xf32, #tpu.memory_space<vmem>>, vector<1x3x128xf32>
    tpu.vector_store %arg9[%c0_45, %c0_46, %c0_47], %100 {strides = array<i32>} : memref<1x3x128xf32, #tpu.memory_space<vmem>>, vector<1x3x128xf32>,
    return
  }
  func.func @transform_0(%arg0: i32, %arg1: i32) -> (i32, i32, i32) {
    %c0_i32 = arith.constant 0 : i32
    %c0_i32_0 = arith.constant 0 : i32
    return %arg0, %c0_i32, %arg1 : i32, i32, i32
  }
  func.func @transform_1(%arg0: i32, %arg1: i32) -> (i32, i32, i32) {
    %c0_i32 = arith.constant 0 : i32
    %c0_i32_0 = arith.constant 0 : i32
    %c0_i32_1 = arith.constant 0 : i32
    return %arg0, %c0_i32, %c0_i32_0 : i32, i32, i32
  }
  func.func @transform_2(%arg0: i32, %arg1: i32) -> (i32, i32, i32) {
    %c0_i32 = arith.constant 0 : i32
    %c0_i32_0 = arith.constant 0 : i32
    %c0_i32_1 = arith.constant 0 : i32
    return %arg0, %c0_i32, %c0_i32_0 : i32, i32, i32
  }
  func.func @transform_3(%arg0: i32, %arg1: i32) -> (i32, i32) {
    %c0_i32 = arith.constant 0 : i32
    %c0_i32_0 = arith.constant 0 : i32
    %c0_i32_1 = arith.constant 0 : i32
    return %c0_i32, %c0_i32_0 : i32, i32
  }
  func.func @transform_4(%arg0: i32, %arg1: i32) -> (i32, i32) {
    %c0_i32 = arith.constant 0 : i32
    %c0_i32_0 = arith.constant 0 : i32
    %c0_i32_1 = arith.constant 0 : i32
    return %c0_i32, %c0_i32_0 : i32, i32
  }
  func.func @transform_5(%arg0: i32, %arg1: i32) -> (i32, i32) {
    %c0_i32 = arith.constant 0 : i32
    %c0_i32_0 = arith.constant 0 : i32
    %c0_i32_1 = arith.constant 0 : i32
    return %c0_i32, %c0_i32_0 : i32, i32
  }
  func.func @transform_6(%arg0: i32, %arg1: i32) -> (i32, i32) {
    %c0_i32 = arith.constant 0 : i32
    %c0_i32_0 = arith.constant 0 : i32
    %c0_i32_1 = arith.constant 0 : i32
    return %c0_i32, %c0_i32_0 : i32, i32
  }
  func.func @transform_7(%arg0: i32, %arg1: i32) -> (i32, i32, i32) {
    %c0_i32 = arith.constant 0 : i32
    %c0_i32_0 = arith.constant 0 : i32
    return %arg0, %c0_i32, %arg1 : i32, i32, i32
  }
}

</mosaic_0001>

<llo_original>
// kernel: pointnet_forward.4
$region0: #{pointnet_forward.4}
  #allocation0 [shape = 'u32[]', space=smem, size = 0x4, offset = 0x4, fixed_abs, tag = 'smem constant byte address 0x4 - core index']
  #allocation1 [shape = 'u32[144,128]{1,0:T(1,128)}', space=vmem, size = 0x12000, scoped, tag = 'internal scratch']
  %s0 = inlined_call_operand.vmem [shape: f32[2,6,384], index: 0, kind: input, shape index: {}]
  %s1 = inlined_call_operand.vmem [shape: f32[3,2,36], index: 1, kind: output, shape index: {0}]
  %s2 = inlined_call_operand.vmem [shape: f32[3,2,1], index: 2, kind: output, shape index: {1}]
  %3 = xla_tuple %s1, %s2
  %s4 = sld [smem:[#allocation0]]
  $region83: #{pointnet_forward.4} parent=0
    _
  %s6 = ssub.s32 1, %s4
  %s7 = scalar_select 0, %s6, %s4
  $region1: #{pointnet_forward.4} parent=0
    #allocation2 [shape = 'u8[16384]{0}', space=vmem, size = 0x4000, scoped, tag = 'input window, operand 0']
    loop: start=0, step=1, limit=5
    $region2: #{pointnet_forward.4} parent=1 // loop_pre_header
      _
    $region3: #{pointnet_forward.4} parent=1 // loop_header
      %s9 = sphi 0, %s13
      %p10 = scmp.ge.s32.totalorder %s9, 5
      %s19 = sphi 0, %s21
      %s22 = sphi 0, %s19
      %s23 = sphi 0, %s22
      %s39 = sphi 0, %s23
      %s45 = sphi 0, %s47
      %s48 = sphi 0, %s45
      %s49 = sphi 0, %s48
      %s65 = sphi 0, %s49
      %s71 = sphi 0, %s73
      %s74 = sphi 0, %s71
      %s75 = sphi 0, %s74
      %s91 = sphi 0, %s75
    $region4: #{pointnet_forward.4} parent=1 // loop_header_branch
      %12 = sbr.rel (%p10) target = $region8
    $region5: #{pointnet_forward.4} parent=1 // loop_body
      %s14 = ssub.s32 %s9, 1
      %s15 = ssub.s32 %s9, 2
      %s16 = sadd.s32 %s9, 1
      %s17 = ssub.s32 %s9, %s16
      %p18 = scmp.eq.s32.totalorder %s17, 0
      %s20 = sadd.s32 %s19, 1
      %s21 = scalar_select %p18, %s19, %s20
      %p24 = pneg %p18
      %p25 = scmp.eq.s32.totalorder %s9, 2
      %p26 = por %p24, %p25
      %p27 = scmp.ne.s32.totalorder %s19, %s22
      %p28 = scmp.eq.s32.totalorder %s9, 0
      %p29 = por %p27, %p28
      %p30 = scmp.ne.s32.totalorder %s19, %s22
      %p31 = scmp.eq.s32.totalorder %s14, 2
      %p32 = por %p30, %p31
      %p33 = scmp.ne.s32.totalorder %s22, %s23
      %p34 = scmp.eq.s32.totalorder %s14, 0
      %p35 = por %p33, %p34
      %p36 = scmp.ne.s32.totalorder %s22, %s23
      %p37 = scmp.eq.s32.totalorder %s15, 2
      %p38 = por %p36, %p37
      %p40 = scmp.ne.s32.totalorder %s23, %s39
      %p41 = scmp.eq.s32.totalorder %s15, 0
      %p42 = por %p40, %p41
      %s43 = ssub.s32 %s9, %s16
      %p44 = scmp.eq.s32.totalorder %s43, 0
      %s46 = sadd.s32 %s45, 1
      %s47 = scalar_select %p44, %s45, %s46
      %p50 = pneg %p44
      %p51 = scmp.eq.s32.totalorder %s9, 2
      %p52 = por %p50, %p51
      %p53 = scmp.ne.s32.totalorder %s45, %s48
      %p54 = scmp.eq.s32.totalorder %s9, 0
      %p55 = por %p53, %p54
      %p56 = scmp.ne.s32.totalorder %s45, %s48
      %p57 = scmp.eq.s32.totalorder %s14, 2
      %p58 = por %p56, %p57
      %p59 = scmp.ne.s32.totalorder %s48, %s49
      %p60 = scmp.eq.s32.totalorder %s14, 0
      %p61 = por %p59, %p60
      %p62 = scmp.ne.s32.totalorder %s48, %s49
      %p63 = scmp.eq.s32.totalorder %s15, 2
      %p64 = por %p62, %p63
      %p66 = scmp.ne.s32.totalorder %s49, %s65
      %p67 = scmp.eq.s32.totalorder %s15, 0
      %p68 = por %p66, %p67
      %s69 = ssub.s32 %s9, %s16
      %p70 = scmp.eq.s32.totalorder %s69, 0
      %s72 = sadd.s32 %s71, 1
      %s73 = scalar_select %p70, %s71, %s72
      %p76 = pneg %p70
      %p77 = scmp.eq.s32.totalorder %s9, 2
      %p78 = por %p76, %p77
      %p79 = scmp.ne.s32.totalorder %s71, %s74
      %p80 = scmp.eq.s32.totalorder %s9, 0
      %p81 = por %p79, %p80
      %p82 = scmp.ne.s32.totalorder %s71, %s74
      %p83 = scmp.eq.s32.totalorder %s14, 2
      %p84 = por %p82, %p83
      %p85 = scmp.ne.s32.totalorder %s74, %s75
      %p86 = scmp.eq.s32.totalorder %s14, 0
      %p87 = por %p85, %p86
      %p88 = scmp.ne.s32.totalorder %s74, %s75
      %p89 = scmp.eq.s32.totalorder %s15, 2
      %p90 = por %p88, %p89
      %p92 = scmp.ne.s32.totalorder %s75, %s91
      %p93 = scmp.eq.s32.totalorder %s15, 0
      %p94 = por %p92, %p93
      %p95 = scmp.le.s32.totalorder 1, %s9
      %p96 = scmp.lt.s32.totalorder %s9, 4
      %p97 = pnand %p95, %p96
      %p98 = pneg %p97
      // Predicated region
      $region9: #{pointnet_forward.4} parent=5 // pred_check
        _
      $region10: #{pointnet_forward.4} parent=5 // pred_check_branch
        %100 = sbr.rel (%p97) target = $region12
      $region11: #{pointnet_forward.4} parent=5 // pred_region
        %s101 = ssub.s32 %s9, 1
      $region12: #{pointnet_forward.4} parent=5 // pred_fallthru
        _
      %p102 = scmp.lt.s32.totalorder %s9, 3
      // Predicated region
      $region13: #{pointnet_forward.4} parent=5 // pred_check
        %p103 = pneg %p102
      $region14: #{pointnet_forward.4} parent=5 // pred_check_branch
        %105 = sbr.rel (%p103) target = $region16
      $region15: #{pointnet_forward.4} parent=5 // pred_region
        // Predicated region
        $region17: #{pointnet_forward.4} parent=15 // pred_check
          %p106 = pneg %p29
        $region18: #{pointnet_forward.4} parent=15 // pred_check_branch
          %108 = sbr.rel (%p106) target = $region20
        $region19: #{pointnet_forward.4} parent=15 // pred_region
          %s109 = sand.u32 %s19, 1
          %s110 = sand.u32 %s19, 1
          %s111 = smul.addr %s110, 16
          %s112 = scalar_lea.vmem [#allocation2], %s111
          %s113 = smul.addr %s9, 8
          %s114 = scalar_lea.vmem %s0, %s113
          // Predicated region
          $region21: #{pointnet_forward.4} parent=19 // pred_check
            _
          $region22: #{pointnet_forward.4} parent=19 // pred_check_branch
            %116 = sbr.rel (0) target = $region24
          $region23: #{pointnet_forward.4} parent=19 // pred_region
            // Predicated region
            $region25: #{pointnet_forward.4} parent=23 // pred_check
              _
            $region26: #{pointnet_forward.4} parent=23 // pred_check_branch
              %118 = sbr.rel (0) target = $region28
            $region27: #{pointnet_forward.4} parent=23 // pred_region
              // Predicated region
              $region40: #{pointnet_forward.4} parent=27 // pred_check
                _
              $region41: #{pointnet_forward.4} parent=27 // pred_check_branch
                %136 = sbr.rel (0) target = $region43
              $region42: #{pointnet_forward.4} parent=27 // pred_region
                loop: start=0, step=1, limit=1
                $region44: #{pointnet_forward.4} parent=42 // loop_pre_header
                  _
                $region45: #{pointnet_forward.4} parent=42 // loop_header
                  %s138 = sphi 0, %s142
                  %p139 = scmp.ge.s32.totalorder %s138, 1
                  %s143 = sphi %s114, %s114
                  %s144 = sphi %s112, %s112
                $region46: #{pointnet_forward.4} parent=42 // loop_header_branch
                  %141 = sbr.rel (%p139) target = $region50
                $region47: #{pointnet_forward.4} parent=42 // loop_body
                  %v145 = vld [vmem:[%s143] sm:$0xff]
                  %146 = vst [vmem:[%s144] sm:$0xff] %v145
                  %v147 = vld [vmem:[%s143 + $0x18] sm:$0xff]
                  %148 = vst [vmem:[%s144 + $0x8] sm:$0xff] %v147
                $region48: #{pointnet_forward.4} parent=42 // loop_footer
                  %s142 = sadd.s32 1, %s138
                $region49: #{pointnet_forward.4} parent=42 // loop_footer_branch
                  %137 = sbr.rel target = $region45
                $region50: #{pointnet_forward.4} parent=42 // loop_exit
                  _
              $region43: #{pointnet_forward.4} parent=27 // pred_fallthru
                _
              // Predicated region
              $region51: #{pointnet_forward.4} parent=27 // pred_check
                _
              $region52: #{pointnet_forward.4} parent=27 // pred_check_branch
                %150 = sbr.rel target = $region54
              $region53: #{pointnet_forward.4} parent=27 // pred_region
                _
              $region54: #{pointnet_forward.4} parent=27 // pred_fallthru
                _
            $region28: #{pointnet_forward.4} parent=23 // pred_fallthru
              _
            // Predicated region
            $region29: #{pointnet_forward.4} parent=23 // pred_check
              _
            $region30: #{pointnet_forward.4} parent=23 // pred_check_branch
              %120 = sbr.rel target = $region32
            $region31: #{pointnet_forward.4} parent=23 // pred_region
              %s122 = ssub.s32 256, 1
              loop: start=0, step=1, limit=1
              $region33: #{pointnet_forward.4} parent=31 // loop_pre_header
                _
              $region34: #{pointnet_forward.4} parent=31 // loop_header
                %s124 = sphi 0, %s128
                %p125 = scmp.ge.s32.totalorder %s124, 1
                %s129 = sphi %s114, %s114
                %s130 = sphi %s112, %s112
              $region35: #{pointnet_forward.4} parent=31 // loop_header_branch
                %127 = sbr.rel (%p125) target = $region39
              $region36: #{pointnet_forward.4} parent=31 // loop_body
                %v131 = vld [vmem:[%s129] sm:%s122]
                %132 = vst [vmem:[%s130] sm:%s122] %v131
                %v133 = vld [vmem:[%s129 + $0x18] sm:%s122]
                %134 = vst [vmem:[%s130 + $0x8] sm:%s122] %v133
              $region37: #{pointnet_forward.4} parent=31 // loop_footer
                %s128 = sadd.s32 1, %s124
              $region38: #{pointnet_forward.4} parent=31 // loop_footer_branch
                %123 = sbr.rel target = $region34
              $region39: #{pointnet_forward.4} parent=31 // loop_exit
                _
            $region32: #{pointnet_forward.4} parent=23 // pred_fallthru
              _
          $region24: #{pointnet_forward.4} parent=19 // pred_fallthru
            _
          %151 = vnop
        $region20: #{pointnet_forward.4} parent=15 // pred_fallthru
          _
      $region16: #{pointnet_forward.4} parent=5 // pred_fallthru
        _
      %p152 = scmp.le.s32.totalorder 1, %s9
      %p153 = scmp.lt.s32.totalorder %s9, 4
      %p154 = pnand %p152, %p153
      %p155 = pneg %p154
      // Predicated region
      $region55: #{pointnet_forward.4} parent=5 // pred_check
        _
      $region56: #{pointnet_forward.4} parent=5 // pred_check_branch
        %157 = sbr.rel (%p154) target = $region58
      $region57: #{pointnet_forward.4} parent=5 // pred_region
        %s158 = ssub.s32 %s9, 1
        %s159 = sand.u32 %s22, 1
        %s160 = sand.u32 %s22, 1
        %s161 = smul.addr %s160, 16
        %s162 = scalar_lea.vmem [#allocation2], %s161
        // Predicated region
        $region59: #{pointnet_forward.4} parent=57 // pred_check
          %p163 = pneg %p35
        $region60: #{pointnet_forward.4} parent=57 // pred_check_branch
          %165 = sbr.rel (%p163) target = $region62
        $region61: #{pointnet_forward.4} parent=57 // pred_region
          _
        $region62: #{pointnet_forward.4} parent=57 // pred_fallthru
          _
        %s166 = sand.u32 %s22, 1
        %s167 = sand.u32 %s22, 1
        %s168 = smul.addr %s167, 16
        %s169 = scalar_lea.vmem [#allocation2], %s168
        %p170 = pneg %p35
        %p171 = pneg %p32
        %p172 = pneg %p61
        %p173 = pneg %p58
        %p174 = scmp.lt.s32.totalorder %s14, 2
        %s175 = scalar_select %p174, %s14, 2
        %s176 = smul.addr %s175, 2
        %s177 = scalar_lea.vmem %s1, %s176
        %p178 = pneg %p87
        %p179 = pneg %p84
        %p180 = scmp.lt.s32.totalorder %s14, 2
        %s181 = scalar_select %p180, %s14, 2
        %s182 = smul.addr %s181, 2
        %s183 = scalar_lea.vmem %s2, %s182
        %p184 = scmp.lt.s32.totalorder %s14, 2
        %s185 = scalar_select %p184, %s14, 2
        %s186 = smul.addr %s185, 2
        %s187 = scalar_lea.vmem %s1, %s186
        %p188 = scmp.lt.s32.totalorder %s14, 2
        %s189 = scalar_select %p188, %s14, 2
        %s190 = smul.addr %s189, 2
        %s191 = scalar_lea.vmem %s2, %s190
        %v192 = vld [vmem:[%s162] sm:$0x3f]
        %v193 = vld [vmem:[%s162 + $0x8] sm:$0x3f]
        %v194 = vmul.f32 %v192, %v192
        %v195 = vmul.f32 %v193, %v193
        %v198 = vrot.slane %v194, 1
        %v199 = vrot.slane %v195, 1
        %v202 = vadd.f32 %v194, %v198
        %v203 = vadd.f32 %v195, %v199
        %v204 = vrot.slane %v194, 2
        %v205 = vrot.slane %v195, 2
        %v208 = vadd.f32 %v202, %v204
        %v209 = vadd.f32 %v203, %v205
        %v210 = vadd.f32 %v208, 1e-16
        %v211 = vadd.f32 %v209, 1e-16
        %v212 = vrcp.pop %v210
        %v213 = vrcp.pop %v211
        %v214 = vsub.f32 %v208, 4.0
        %v215 = vsub.f32 %v209, 4.0
        %v216 = vmul.f32 %v214, 0.083333336
        %v217 = vmul.f32 %v215, 0.083333336
        %v218 = vsub.f32 1.0, %v216
        %v219 = vsub.f32 1.0, %v217
        %vm220 = vcmp.gt.f32.partialorder %v208, 0.0
        %vm221 = vcmp.gt.f32.partialorder %v209, 0.0
        %v222 = vmax.f32 %v218, 0.0
        %v223 = vmax.f32 %v219, 0.0
        %v224 = vsel %vm220, %v222, 0.0
        %v225 = vsel %vm221, %v223, 0.0
        %v226 = vsub.f32 0.0, %v192
        %v227 = vsub.f32 0.0, %v193
        %v228 = vmax.f32 %v192, 0.0
        %v229 = vmax.f32 %v193, 0.0
        %v230 = vmul.f32 %v228, %v228
        %v231 = vmul.f32 %v229, %v229
        %v234 = vrot.slane %v212, 6
        %v235 = vrot.slane %v213, 6
        %v238 = vmul.f32 %v230, %v234
        %v239 = vmul.f32 %v231, %v235
        %v242 = vrot.slane %v224, 6
        %v243 = vrot.slane %v225, 6
        %v246 = vmul.f32 %v238, %v242
        %v247 = vmul.f32 %v239, %v243
        %v248 = vlaneseq
        %v249 = vshrl.u32 %v248, 7
        %v250 = vsub.s32 2, %v249
        %v251 = vrot.slane %v246, %v250
        %v252 = vlaneseq
        %v253 = vshrl.u32 %v252, 7
        %v254 = vsub.s32 2, %v253
        %v255 = vrot.slane %v247, %v254
        %v256 = vmul.f32 %v192, %v251
        %v257 = vmul.f32 %v193, %v255
        %vm258 = vcmask 1045504
        %v259 = vsel %vm258, %v256, 0.0
        %260 = vadd.xlane.f32.xlu0 %v259
        %v261 = vpop.xlane.xlu0 %260
        %v262 = vsel %vm258, %v257, 0.0
        %263 = vadd.xlane.f32.xlu0 %v262
        %v264 = vpop.xlane.xlu0 %263
        %v265 = vmax.f32 %v226, 0.0
        %v266 = vmax.f32 %v227, 0.0
        %v267 = vmul.f32 %v265, %v265
        %v268 = vmul.f32 %v266, %v266
        %v269 = vmul.f32 %v267, %v234
        %v270 = vmul.f32 %v268, %v235
        %v271 = vmul.f32 %v269, %v242
        %v272 = vmul.f32 %v270, %v243
        %v273 = vlaneseq
        %v274 = vshrl.u32 %v273, 7
        %v275 = vsub.s32 2, %v274
        %v276 = vrot.slane %v271, %v275
        %v277 = vlaneseq
        %v278 = vshrl.u32 %v277, 7
        %v279 = vsub.s32 2, %v278
        %v280 = vrot.slane %v272, %v279
        %v281 = vmul.f32 %v192, %v276
        %v282 = vmul.f32 %v193, %v280
        %v283 = vsel %vm258, %v281, 0.0
        %284 = vadd.xlane.f32.xlu0 %v283
        %v285 = vpop.xlane.xlu0 %284
        %v286 = vsel %vm258, %v282, 0.0
        %287 = vadd.xlane.f32.xlu0 %v286
        %v288 = vpop.xlane.xlu0 %287
        %v289 = vrot.slane %v212, 7
        %v290 = vrot.slane %v213, 7
        %v293 = vmul.f32 %v230, %v289
        %v294 = vmul.f32 %v231, %v290
        %v295 = vrot.slane %v224, 7
        %v296 = vrot.slane %v225, 7
        %v299 = vmul.f32 %v293, %v295
        %v300 = vmul.f32 %v294, %v296
        %v301 = vlaneseq
        %v302 = vshrl.u32 %v301, 7
        %v303 = vsub.s32 1, %v302
        %v304 = vrot.slane %v299, %v303
        %v305 = vlaneseq
        %v306 = vshrl.u32 %v305, 7
        %v307 = vsub.s32 1, %v306
        %v308 = vrot.slane %v300, %v307
        %v309 = vmul.f32 %v192, %v304
        %v310 = vmul.f32 %v193, %v308
        %v311 = vsel %vm258, %v309, 0.0
        %312 = vadd.xlane.f32.xlu0 %v311
        %v313 = vpop.xlane.xlu0 %312
        %v314 = vsel %vm258, %v310, 0.0
        %315 = vadd.xlane.f32.xlu0 %v314
        %v316 = vpop.xlane.xlu0 %315
        %v317 = vmul.f32 %v267, %v289
        %v318 = vmul.f32 %v268, %v290
        %v319 = vmul.f32 %v317, %v295
        %v320 = vmul.f32 %v318, %v296
        %v321 = vlaneseq
        %v322 = vshrl.u32 %v321, 7
        %v323 = vsub.s32 1, %v322
        %v324 = vrot.slane %v319, %v323
        %v325 = vlaneseq
        %v326 = vshrl.u32 %v325, 7
        %v327 = vsub.s32 1, %v326
        %v328 = vrot.slane %v320, %v327
        %v329 = vmul.f32 %v192, %v324
        %v330 = vmul.f32 %v193, %v328
        %v331 = vsel %vm258, %v329, 0.0
        %332 = vadd.xlane.f32.xlu0 %v331
        %v333 = vpop.xlane.xlu0 %332
        %v334 = vsel %vm258, %v330, 0.0
        %335 = vadd.xlane.f32.xlu0 %v334
        %v336 = vpop.xlane.xlu0 %335
        %v337 = vmul.f32 %v230, %v212
        %v338 = vmul.f32 %v231, %v213
        %v339 = vmul.f32 %v337, %v224
        %v340 = vmul.f32 %v338, %v225
        %v341 = vlaneseq
        %v342 = vshrl.u32 %v341, 7
        %v343 = vsub.s32 0, %v342
        %v344 = vrot.slane %v339, %v343
        %v345 = vlaneseq
        %v346 = vshrl.u32 %v345, 7
        %v347 = vsub.s32 0, %v346
        %v348 = vrot.slane %v340, %v347
        %v349 = vmul.f32 %v192, %v344
        %v350 = vmul.f32 %v193, %v348
        %v351 = vsel %vm258, %v349, 0.0
        %352 = vadd.xlane.f32.xlu0 %v351
        %v353 = vpop.xlane.xlu0 %352
        %v354 = vsel %vm258, %v350, 0.0
        %355 = vadd.xlane.f32.xlu0 %v354
        %v356 = vpop.xlane.xlu0 %355
        %v357 = vmul.f32 %v267, %v212
        %v358 = vmul.f32 %v268, %v213
        %v359 = vmul.f32 %v357, %v224
        %v360 = vmul.f32 %v358, %v225
        %v361 = vlaneseq
        %v362 = vshrl.u32 %v361, 7
        %v363 = vsub.s32 0, %v362
        %v364 = vrot.slane %v359, %v363
        %v365 = vlaneseq
        %v366 = vshrl.u32 %v365, 7
        %v367 = vsub.s32 0, %v366
        %v368 = vrot.slane %v360, %v367
        %v369 = vmul.f32 %v192, %v364
        %v370 = vmul.f32 %v193, %v368
        %v371 = vsel %vm258, %v369, 0.0
        %372 = vadd.xlane.f32.xlu0 %v371
        %v373 = vpop.xlane.xlu0 %372
        %v374 = vsel %vm258, %v370, 0.0
        %375 = vadd.xlane.f32.xlu0 %v374
        %v376 = vpop.xlane.xlu0 %375
        %v379 = vlaneseq
        %v380 = vand.u32 %v379, 127
        %v381 = vlaneseq
        %v382 = vshrl.u32 %v381, 7
        %v383 = vsub.s32 %v380, %v382
        %v384 = vrot.slane %v261, %v383
        %v385 = vlaneseq
        %v386 = vshrl.u32 %v385, 7
        %v387 = vsub.s32 %v380, %v386
        %v388 = vrot.slane %v264, %v387
        %vm389 = vcmask 1041409
        %v390 = vsel %vm389, %v388, %v384
        %v394 = vadd.s32 %v380, 4294967290
        %v395 = vlaneseq
        %v396 = vshrl.u32 %v395, 7
        %v397 = vsub.s32 %v394, %v396
        %v398 = vrot.slane %v285, %v397
        %v399 = vlaneseq
        %v400 = vshrl.u32 %v399, 7
        %v401 = vsub.s32 %v394, %v400
        %v402 = vrot.slane %v288, %v401
        %v403 = vsel %vm389, %v402, %v398
        %v407 = vadd.s32 %v380, 4294967284
        %v408 = vlaneseq
        %v409 = vshrl.u32 %v408, 7
        %v410 = vsub.s32 %v407, %v409
        %v411 = vrot.slane %v313, %v410
        %v412 = vlaneseq
        %v413 = vshrl.u32 %v412, 7
        %v414 = vsub.s32 %v407, %v413
        %v415 = vrot.slane %v316, %v414
        %v416 = vsel %vm389, %v415, %v411
        %v420 = vadd.s32 %v380, 4294967278
        %v421 = vlaneseq
        %v422 = vshrl.u32 %v421, 7
        %v423 = vsub.s32 %v420, %v422
        %v424 = vrot.slane %v333, %v423
        %v425 = vlaneseq
        %v426 = vshrl.u32 %v425, 7
        %v427 = vsub.s32 %v420, %v426
        %v428 = vrot.slane %v336, %v427
        %v429 = vsel %vm389, %v428, %v424
        %v433 = vadd.s32 %v380, 4294967272
        %v434 = vlaneseq
        %v435 = vshrl.u32 %v434, 7
        %v436 = vsub.s32 %v433, %v435
        %v437 = vrot.slane %v353, %v436
        %v438 = vlaneseq
        %v439 = vshrl.u32 %v438, 7
        %v440 = vsub.s32 %v433, %v439
        %v441 = vrot.slane %v356, %v440
        %v442 = vsel %vm389, %v441, %v437
        %v446 = vadd.s32 %v380, 4294967266
        %v447 = vlaneseq
        %v448 = vshrl.u32 %v447, 7
        %v449 = vsub.s32 %v446, %v448
        %v450 = vrot.slane %v373, %v449
        %v451 = vlaneseq
        %v452 = vshrl.u32 %v451, 7
        %v453 = vsub.s32 %v446, %v452
        %v454 = vrot.slane %v376, %v453
        %v455 = vsel %vm389, %v454, %v450
        %vm457 = vcmask 48128
        %v458 = vsel %vm457, %v390, %v403
        %vm459 = vcmask 97280
        %v460 = vsel %vm459, %v458, %v416
        %vm461 = vcmask 146432
        %v462 = vsel %vm461, %v460, %v429
        %vm463 = vcmask 195584
        %v464 = vsel %vm463, %v462, %v442
        %vm465 = vcmask 244736
        %v466 = vsel %vm465, %v464, %v455
        %vm467 = vcmask 287744
        %468 = vst.msk [vmem:[%s187] sm:$0x3] %vm467, %v466
        %vm469 = vcmask 1040384
        %v470 = vsel %vm469, %v224, 0.0
        %471 = vadd.xlane.f32.xlu0 %v470
        %v472 = vpop.xlane.xlu0 %471
        %v473 = vsel %vm469, %v225, 0.0
        %474 = vadd.xlane.f32.xlu0 %v473
        %v475 = vpop.xlane.xlu0 %474
        %v478 = vrot.slane %v475, 7
        %v479 = vsel %vm389, %v478, %v472
        %vm481 = vcmask 1024
        %482 = vst.msk [vmem:[%s191] sm:$0x3] %vm481, %v479
        %p483 = scmp.lt.s32.totalorder %s14, 2
        %s484 = scalar_select %p483, %s14, 2
        %s485 = smul.addr %s484, 2
        %s486 = scalar_lea.vmem %s1, %s485
        %p487 = scmp.lt.s32.totalorder %s14, 2
        %s488 = scalar_select %p487, %s14, 2
        %s489 = smul.addr %s488, 2
        %s490 = scalar_lea.vmem %s2, %s489
        // Predicated region
        $region63: #{pointnet_forward.4} parent=57 // pred_check
          %p491 = pneg %p58
        $region64: #{pointnet_forward.4} parent=57 // pred_check_branch
          %493 = sbr.rel (%p491) target = $region66
        $region65: #{pointnet_forward.4} parent=57 // pred_region
          _
        $region66: #{pointnet_forward.4} parent=57 // pred_fallthru
          _
        // Predicated region
        $region67: #{pointnet_forward.4} parent=57 // pred_check
          %p494 = pneg %p84
        $region68: #{pointnet_forward.4} parent=57 // pred_check_branch
          %496 = sbr.rel (%p494) target = $region70
        $region69: #{pointnet_forward.4} parent=57 // pred_region
          _
        $region70: #{pointnet_forward.4} parent=57 // pred_fallthru
          _
      $region58: #{pointnet_forward.4} parent=5 // pred_fallthru
        _
      %p497 = scmp.le.s32.totalorder 2, %s9
      // Predicated region
      $region71: #{pointnet_forward.4} parent=5 // pred_check
        %p498 = pneg %p497
      $region72: #{pointnet_forward.4} parent=5 // pred_check_branch
        %500 = sbr.rel (%p498) target = $region74
      $region73: #{pointnet_forward.4} parent=5 // pred_region
        %s501 = ssub.s32 %s9, 2
        // Predicated region
        $region75: #{pointnet_forward.4} parent=73 // pred_check
          %p502 = pneg %p64
        $region76: #{pointnet_forward.4} parent=73 // pred_check_branch
          %504 = sbr.rel (%p502) target = $region78
        $region77: #{pointnet_forward.4} parent=73 // pred_region
          %p505 = scmp.lt.s32.totalorder %s15, 2
          %s506 = scalar_select %p505, %s15, 2
          %s507 = smul.addr %s506, 2
          %s508 = scalar_lea.vmem %s1, %s507
        $region78: #{pointnet_forward.4} parent=73 // pred_fallthru
          _
        // Predicated region
        $region79: #{pointnet_forward.4} parent=73 // pred_check
          %p509 = pneg %p90
        $region80: #{pointnet_forward.4} parent=73 // pred_check_branch
          %511 = sbr.rel (%p509) target = $region82
        $region81: #{pointnet_forward.4} parent=73 // pred_region
          %p512 = scmp.lt.s32.totalorder %s15, 2
          %s513 = scalar_select %p512, %s15, 2
          %s514 = smul.addr %s513, 2
          %s515 = scalar_lea.vmem %s2, %s514
        $region82: #{pointnet_forward.4} parent=73 // pred_fallthru
          _
      $region74: #{pointnet_forward.4} parent=5 // pred_fallthru
        _
    $region6: #{pointnet_forward.4} parent=1 // loop_footer
      %s13 = sadd.s32 1, %s9
    $region7: #{pointnet_forward.4} parent=1 // loop_footer_branch
      %8 = sbr.rel target = $region3
    $region8: #{pointnet_forward.4} parent=1 // loop_exit
      _

// kernel: pointnet_forward.6
$region0: #{pointnet_forward.6}
  #allocation0 [shape = 'u32[]', space=smem, size = 0x4, offset = 0x4, fixed_abs, tag = 'smem constant byte address 0x4 - core index']
  #allocation1 [shape = 'u32[144,128]{1,0:T(1,128)}', space=vmem, size = 0x12000, scoped, tag = 'internal scratch']
  #allocation2 [shape = 'f32[24,128]{1,0:T(8,128)}', space=vmem, size = 0x3000, scoped, tag = 'scratch operand']
  %s0 = inlined_call_operand.vmem [shape: f32[2,3,384], index: 0, kind: input, shape index: {}]
  %s1 = inlined_call_operand.vmem [shape: f32[2,64,24], index: 1, kind: input, shape index: {}]
  %s2 = inlined_call_operand.vmem [shape: f32[2,64,1], index: 2, kind: input, shape index: {}]
  %s3 = inlined_call_operand.vmem [shape: f32[6,64,2], index: 3, kind: output, shape index: {}]
  %s4 = sld [smem:[#allocation0]]
  $region45: #{pointnet_forward.6} parent=0
    _
  %s6 = ssub.s32 1, %s4
  %s7 = scalar_select 0, %s6, %s4
  loop: start=0, step=1, limit=8
  $region2: #{pointnet_forward.6} parent=0 // loop_pre_header
    _
  $region3: #{pointnet_forward.6} parent=0 // loop_header
    %s9 = sphi 0, %s13
    %p10 = scmp.ge.s32.totalorder %s9, 8
    %s16 = sphi 0, %s28
    %s17 = sphi 0, %s24
    %s18 = sphi 0, %s16
    %s19 = sphi 0, %s17
    %s20 = sphi 0, %s18
    %s21 = sphi 0, %s19
    %s33 = sphi 0, %s35
    %s36 = sphi 0, %s33
    %s37 = sphi 0, %s36
    %s53 = sphi 0, %s37
    %s59 = sphi 0, %s61
    %s62 = sphi 0, %s59
    %s63 = sphi 0, %s62
    %s79 = sphi 0, %s63
    %s85 = sphi 0, %s87
    %s88 = sphi 0, %s85
    %s89 = sphi 0, %s88
    %s105 = sphi 0, %s89
    %s115 = sphi 0, %s117
    %s118 = sphi 0, %s115
    %s119 = sphi 0, %s118
    %s135 = sphi 0, %s119
  $region4: #{pointnet_forward.6} parent=0 // loop_header_branch
    %12 = sbr.rel (%p10) target = $region8
  $region5: #{pointnet_forward.6} parent=0 // loop_body
    %s14 = ssub.s32 %s9, 1
    %s15 = ssub.s32 %s9, 2
    %s22 = sadd.s32 1, %s17
    %p23 = scmp.ge.s32.totalorder %s22, 3
    %s24 = scalar_select %p23, 0, %s22
    %s25 = sadd.s32 1, %s16
    %s26 = scalar_select %p23, %s25, %s16
    %p27 = scmp.ge.s32.totalorder %s26, 2
    %s28 = scalar_select %p27, 0, %s26
    %s29 = ssub.s32 %s16, %s28
    %s30 = ssub.s32 %s17, %s24
    %s31 = sor.u32 %s29, %s30
    %p32 = scmp.eq.s32.totalorder %s31, 0
    %s34 = sadd.s32 %s33, 1
    %s35 = scalar_select %p32, %s33, %s34
    %p38 = pneg %p32
    %p39 = scmp.eq.s32.totalorder %s9, 5
    %p40 = por %p38, %p39
    %p41 = scmp.ne.s32.totalorder %s33, %s36
    %p42 = scmp.eq.s32.totalorder %s9, 0
    %p43 = por %p41, %p42
    %p44 = scmp.ne.s32.totalorder %s33, %s36
    %p45 = scmp.eq.s32.totalorder %s14, 5
    %p46 = por %p44, %p45
    %p47 = scmp.ne.s32.totalorder %s36, %s37
    %p48 = scmp.eq.s32.totalorder %s14, 0
    %p49 = por %p47, %p48
    %p50 = scmp.ne.s32.totalorder %s36, %s37
    %p51 = scmp.eq.s32.totalorder %s15, 5
    %p52 = por %p50, %p51
    %p54 = scmp.ne.s32.totalorder %s37, %s53
    %p55 = scmp.eq.s32.totalorder %s15, 0
    %p56 = por %p54, %p55
    %s57 = ssub.s32 %s16, %s28
    %p58 = scmp.eq.s32.totalorder %s57, 0
    %s60 = sadd.s32 %s59, 1
    %s61 = scalar_select %p58, %s59, %s60
    %p64 = pneg %p58
    %p65 = scmp.eq.s32.totalorder %s9, 5
    %p66 = por %p64, %p65
    %p67 = scmp.ne.s32.totalorder %s59, %s62
    %p68 = scmp.eq.s32.totalorder %s9, 0
    %p69 = por %p67, %p68
    %p70 = scmp.ne.s32.totalorder %s59, %s62
    %p71 = scmp.eq.s32.totalorder %s14, 5
    %p72 = por %p70, %p71
    %p73 = scmp.ne.s32.totalorder %s62, %s63
    %p74 = scmp.eq.s32.totalorder %s14, 0
    %p75 = por %p73, %p74
    %p76 = scmp.ne.s32.totalorder %s62, %s63
    %p77 = scmp.eq.s32.totalorder %s15, 5
    %p78 = por %p76, %p77
    %p80 = scmp.ne.s32.totalorder %s63, %s79
    %p81 = scmp.eq.s32.totalorder %s15, 0
    %p82 = por %p80, %p81
    %s83 = ssub.s32 %s16, %s28
    %p84 = scmp.eq.s32.totalorder %s83, 0
    %s86 = sadd.s32 %s85, 1
    %s87 = scalar_select %p84, %s85, %s86
    %p90 = pneg %p84
    %p91 = scmp.eq.s32.totalorder %s9, 5
    %p92 = por %p90, %p91
    %p93 = scmp.ne.s32.totalorder %s85, %s88
    %p94 = scmp.eq.s32.totalorder %s9, 0
    %p95 = por %p93, %p94
    %p96 = scmp.ne.s32.totalorder %s85, %s88
    %p97 = scmp.eq.s32.totalorder %s14, 5
    %p98 = por %p96, %p97
    %p99 = scmp.ne.s32.totalorder %s88, %s89
    %p100 = scmp.eq.s32.totalorder %s14, 0
    %p101 = por %p99, %p100
    %p102 = scmp.ne.s32.totalorder %s88, %s89
    %p103 = scmp.eq.s32.totalorder %s15, 5
    %p104 = por %p102, %p103
    %p106 = scmp.ne.s32.totalorder %s89, %s105
    %p107 = scmp.eq.s32.totalorder %s15, 0
    %p108 = por %p106, %p107
    %s109 = smul.u32 %s16, 3
    %s110 = sadd.s32 %s109, %s17
    %s111 = smul.u32 %s28, 3
    %s112 = sadd.s32 %s111, %s24
    %s113 = ssub.s32 %s110, %s112
    %p114 = scmp.eq.s32.totalorder %s113, 0
    %s116 = sadd.s32 %s115, 1
    %s117 = scalar_select %p114, %s115, %s116
    %p120 = pneg %p114
    %p121 = scmp.eq.s32.totalorder %s9, 5
    %p122 = por %p120, %p121
    %p123 = scmp.ne.s32.totalorder %s115, %s118
    %p124 = scmp.eq.s32.totalorder %s9, 0
    %p125 = por %p123, %p124
    %p126 = scmp.ne.s32.totalorder %s115, %s118
    %p127 = scmp.eq.s32.totalorder %s14, 5
    %p128 = por %p126, %p127
    %p129 = scmp.ne.s32.totalorder %s118, %s119
    %p130 = scmp.eq.s32.totalorder %s14, 0
    %p131 = por %p129, %p130
    %p132 = scmp.ne.s32.totalorder %s118, %s119
    %p133 = scmp.eq.s32.totalorder %s15, 5
    %p134 = por %p132, %p133
    %p136 = scmp.ne.s32.totalorder %s119, %s135
    %p137 = scmp.eq.s32.totalorder %s15, 0
    %p138 = por %p136, %p137
    %p139 = scmp.le.s32.totalorder 1, %s9
    %p140 = scmp.lt.s32.totalorder %s9, 7
    %p141 = pnand %p139, %p140
    %p142 = pneg %p141
    // Predicated region
    $region9: #{pointnet_forward.6} parent=5 // pred_check
      _
    $region10: #{pointnet_forward.6} parent=5 // pred_check_branch
      %144 = sbr.rel (%p141) target = $region12
    $region11: #{pointnet_forward.6} parent=5 // pred_region
      %s145 = ssub.s32 %s9, 1
    $region12: #{pointnet_forward.6} parent=5 // pred_fallthru
      _
    %p146 = scmp.lt.s32.totalorder %s9, 6
    // Predicated region
    $region13: #{pointnet_forward.6} parent=5 // pred_check
      %p147 = pneg %p146
    $region14: #{pointnet_forward.6} parent=5 // pred_check_branch
      %149 = sbr.rel (%p147) target = $region16
    $region15: #{pointnet_forward.6} parent=5 // pred_region
      // Predicated region
      $region17: #{pointnet_forward.6} parent=15 // pred_check
        %p150 = pneg %p43
      $region18: #{pointnet_forward.6} parent=15 // pred_check_branch
        %152 = sbr.rel (%p150) target = $region20
      $region19: #{pointnet_forward.6} parent=15 // pred_region
        %p153 = scmp.lt.s32.totalorder %s16, 1
        %s154 = scalar_select %p153, %s16, 1
        %p155 = scmp.lt.s32.totalorder %s17, 2
        %s156 = scalar_select %p155, %s17, 2
        %s157 = smul.addr %s154, 3
        %s158 = sadd.s32 %s156, %s157
        %s159 = smul.addr %s158, 4
        %s160 = scalar_lea.vmem %s0, %s159
      $region20: #{pointnet_forward.6} parent=15 // pred_fallthru
        _
      // Predicated region
      $region21: #{pointnet_forward.6} parent=15 // pred_check
        %p161 = pneg %p69
      $region22: #{pointnet_forward.6} parent=15 // pred_check_branch
        %163 = sbr.rel (%p161) target = $region24
      $region23: #{pointnet_forward.6} parent=15 // pred_region
        %p164 = scmp.lt.s32.totalorder %s16, 1
        %s165 = scalar_select %p164, %s16, 1
        %s166 = smul.addr %s165, 8
        %s167 = smul.addr %s166, 8
        %s168 = scalar_lea.vmem %s1, %s167
      $region24: #{pointnet_forward.6} parent=15 // pred_fallthru
        _
      // Predicated region
      $region25: #{pointnet_forward.6} parent=15 // pred_check
        %p169 = pneg %p95
      $region26: #{pointnet_forward.6} parent=15 // pred_check_branch
        %171 = sbr.rel (%p169) target = $region28
      $region27: #{pointnet_forward.6} parent=15 // pred_region
        %p172 = scmp.lt.s32.totalorder %s16, 1
        %s173 = scalar_select %p172, %s16, 1
        %s174 = smul.addr %s173, 8
        %s175 = smul.addr %s174, 8
        %s176 = scalar_lea.vmem %s2, %s175
      $region28: #{pointnet_forward.6} parent=15 // pred_fallthru
        _
    $region16: #{pointnet_forward.6} parent=5 // pred_fallthru
      _
    %p177 = scmp.le.s32.totalorder 1, %s9
    %p178 = scmp.lt.s32.totalorder %s9, 7
    %p179 = pnand %p177, %p178
    %p180 = pneg %p179
    // Predicated region
    $region29: #{pointnet_forward.6} parent=5 // pred_check
      _
    $region30: #{pointnet_forward.6} parent=5 // pred_check_branch
      %182 = sbr.rel (%p179) target = $region32
    $region31: #{pointnet_forward.6} parent=5 // pred_region
      %s183 = ssub.s32 %s9, 1
      %p184 = scmp.lt.s32.totalorder %s18, 1
      %s185 = scalar_select %p184, %s18, 1
      %p186 = scmp.lt.s32.totalorder %s19, 2
      %s187 = scalar_select %p186, %s19, 2
      %s188 = smul.addr %s185, 3
      %s189 = sadd.s32 %s187, %s188
      %s190 = smul.addr %s189, 4
      %s191 = scalar_lea.vmem %s0, %s190
      %p192 = pneg %p49
      %p193 = pneg %p46
      %p194 = scmp.lt.s32.totalorder %s18, 1
      %s195 = scalar_select %p194, %s18, 1
      %s196 = smul.addr %s195, 8
      %s197 = smul.addr %s196, 8
      %s198 = scalar_lea.vmem %s1, %s197
      %p199 = pneg %p75
      %p200 = pneg %p72
      %p201 = scmp.lt.s32.totalorder %s18, 1
      %s202 = scalar_select %p201, %s18, 1
      %s203 = smul.addr %s202, 8
      %s204 = smul.addr %s203, 8
      %s205 = scalar_lea.vmem %s2, %s204
      %p206 = pneg %p101
      %p207 = pneg %p98
      %p208 = pneg %p131
      %p209 = pneg %p128
      %s210 = smul.u32 %s18, 3
      %s211 = sadd.s32 %s210, %s19
      %p212 = scmp.lt.s32.totalorder %s211, 5
      %s213 = scalar_select %p212, %s211, 5
      %s214 = smul.addr %s213, 8
      %s215 = smul.addr %s214, 8
      %s216 = scalar_lea.vmem %s3, %s215
      %p217 = scmp.lt.s32.totalorder %s18, 1
      %s218 = scalar_select %p217, %s18, 1
      %p219 = scmp.lt.s32.totalorder %s19, 2
      %s220 = scalar_select %p219, %s19, 2
      %s221 = smul.addr %s218, 3
      %s222 = sadd.s32 %s220, %s221
      %s223 = smul.addr %s222, 4
      %s224 = scalar_lea.vmem %s0, %s223
      %p225 = scmp.lt.s32.totalorder %s18, 1
      %s226 = scalar_select %p225, %s18, 1
      %s227 = smul.addr %s226, 8
      %s228 = smul.addr %s227, 8
      %s229 = scalar_lea.vmem %s1, %s228
      %p230 = scmp.lt.s32.totalorder %s18, 1
      %s231 = scalar_select %p230, %s18, 1
      %s232 = smul.addr %s231, 8
      %s233 = smul.addr %s232, 8
      %s234 = scalar_lea.vmem %s2, %s233
      %s235 = smul.u32 %s18, 3
      %s236 = sadd.s32 %s235, %s19
      %p237 = scmp.lt.s32.totalorder %s236, 5
      %s238 = scalar_select %p237, %s236, 5
      %s239 = smul.addr %s238, 8
      %s240 = smul.addr %s239, 8
      %s241 = scalar_lea.vmem %s3, %s240
      %s242 = smul.u32 %s18, 3
      %s243 = sadd.s32 %s242, %s19
      %v244 = vld [vmem:[%s224] sm:$0x7]
      %v245 = vmul.f32 %v244, %v244
      %v247 = vrot.slane %v245, 1
      %v249 = vadd.f32 %v245, %v247
      %v250 = vrot.slane %v245, 2
      %v252 = vadd.f32 %v249, %v250
      %v253 = vadd.f32 %v252, 1e-16
      %v254 = vrcp.pop %v253
      %v255 = vsub.f32 0.0, %v244
      %v256 = vmax.f32 %v244, 0.0
      %v257 = vmul.f32 %v256, %v256
      %v259 = vrot.slane %v254, 6
      %v261 = vmul.f32 %v257, %v259
      %v262 = vlaneseq
      %v263 = vshrl.u32 %v262, 7
      %v264 = vsub.s32 2, %v263
      %v265 = vrot.slane %v261, %v264
      %v266 = vmul.f32 %v244, %v265
      %267 = vst [vmem:[#allocation2] sm:$0x7] %v266
      %268 = vst [vmem:[#allocation2 + $0x10] sm:$0x4] %v261
      %v269 = vmax.f32 %v255, 0.0
      %v270 = vmul.f32 %v269, %v269
      %v271 = vmul.f32 %v270, %v259
      %v272 = vlaneseq
      %v273 = vshrl.u32 %v272, 7
      %v274 = vsub.s32 2, %v273
      %v275 = vrot.slane %v271, %v274
      %v276 = vmul.f32 %v244, %v275
      %277 = vst [vmem:[#allocation2 + $0x3] sm:$0x7] %v276
      %278 = vst [vmem:[#allocation2 + $0x11] sm:$0x4] %v271
      %v279 = vrot.slane %v254, 7
      %v281 = vmul.f32 %v257, %v279
      %v282 = vlaneseq
      %v283 = vshrl.u32 %v282, 7
      %v284 = vsub.s32 1, %v283
      %v285 = vrot.slane %v281, %v284
      %v286 = vmul.f32 %v244, %v285
      %287 = vst [vmem:[#allocation2 + $0x6] sm:$0x7] %v286
      %288 = vst [vmem:[#allocation2 + $0x13] sm:$0x2] %v281
      %v289 = vmul.f32 %v270, %v279
      %v290 = vlaneseq
      %v291 = vshrl.u32 %v290, 7
      %v292 = vsub.s32 1, %v291
      %v293 = vrot.slane %v289, %v292
      %v294 = vmul.f32 %v244, %v293
      %295 = vst [vmem:[#allocation2 + $0x9] sm:$0x7] %v294
      %296 = vst [vmem:[#allocation2 + $0x14] sm:$0x2] %v289
      %v297 = vmul.f32 %v257, %v254
      %v298 = vlaneseq
      %v299 = vshrl.u32 %v298, 7
      %v300 = vsub.s32 0, %v299
      %v301 = vrot.slane %v297, %v300
      %v302 = vmul.f32 %v244, %v301
      %303 = vst [vmem:[#allocation2 + $0xc] sm:$0x7] %v302
      %304 = vst [vmem:[#allocation2 + $0x16] sm:$0x1] %v297
      %v305 = vmul.f32 %v270, %v254
      %v306 = vlaneseq
      %v307 = vshrl.u32 %v306, 7
      %v308 = vsub.s32 0, %v307
      %v309 = vrot.slane %v305, %v308
      %v310 = vmul.f32 %v244, %v309
      %311 = vst [vmem:[#allocation2 + $0xf] sm:$0x7] %v310
      %312 = vst [vmem:[#allocation2 + $0x17] sm:$0x1] %v305
      %v313 = vld [vmem:[%s229] sm:$0xff]
      %v314 = vld [vmem:[%s229 + $0x8] sm:$0xff]
      %v315 = vld [vmem:[%s229 + $0x10] sm:$0xff]
      %v316 = vld [vmem:[%s229 + $0x18] sm:$0xff]
      %v317 = vld [vmem:[%s229 + $0x20] sm:$0xff]
      %v318 = vld [vmem:[%s229 + $0x28] sm:$0xff]
      %v319 = vld [vmem:[%s229 + $0x30] sm:$0xff]
      %v320 = vld [vmem:[%s229 + $0x38] sm:$0xff]
      %v321 = vld [vmem:[#allocation2] sm:$0xff]
      %v322 = vld [vmem:[#allocation2 + $0x8] sm:$0xff]
      %v323 = vld [vmem:[#allocation2 + $0x10] sm:$0xff]
      %vm324 = vcmask 195584
      %v326 = vsel %vm324, %v313, 0
      %v329 = vsel %vm324, %v314, 0
      %v332 = vsel %vm324, %v315, 0
      %v335 = vsel %vm324, %v316, 0
      %v338 = vsel %vm324, %v317, 0
      %v341 = vsel %vm324, %v318, 0
      %v344 = vsel %vm324, %v319, 0
      %v347 = vsel %vm324, %v320, 0
      %349 = vmatprep.subr.mxu0 0.0
      %350 = vmatpush1.msra.mxu0 0.0
      %351 = vmatprep.subr.mxu0 0.0
      %352 = vmatpush1.msra.mxu0 0.0
      %353 = vmatprep.subr.mxu0 0.0
      %354 = vmatpush1.msra.mxu0 0.0
      %355 = vmatprep.subr.mxu0 0.0
      %356 = vmatpush1.msra.mxu0 0.0
      %357 = vmatprep.subr.mxu0 0.0
      %358 = vmatpush1.msra.mxu0 0.0
      %359 = vmatprep.subr.mxu0 0.0
      %360 = vmatpush1.msra.mxu0 0.0
      %361 = vmatprep.subr.mxu0 0.0
      %362 = vmatpush1.msra.mxu0 0.0
      %363 = vmatprep.subr.mxu0 0.0
      %364 = vmatpush1.msra.mxu0 0.0
      %365 = vmatprep.subr.mxu0 0.0
      %366 = vmatpush1.msra.mxu0 0.0
      %367 = vmatprep.subr.mxu0 0.0
      %368 = vmatpush1.msra.mxu0 0.0
      %369 = vmatprep.subr.mxu0 0.0
      %370 = vmatpush1.msra.mxu0 0.0
      %371 = vmatprep.subr.mxu0 0.0
      %372 = vmatpush1.msra.mxu0 0.0
      %373 = vmatprep.subr.mxu0 0.0
      %374 = vmatpush1.msra.mxu0 0.0
      %375 = vmatprep.subr.mxu0 0.0
      %376 = vmatpush1.msra.mxu0 %v323
      %377 = vmatprep.subr.mxu0 0.0
      %378 = vmatpush1.msra.mxu0 %v322
      %379 = vmatprep.subr.mxu0 0.0
      %380 = vmatpush1.msra.mxu0 %v321
      %381 = vmatprep.subr.mxu0 0.0
      %382 = vmatpush2.msra.mxu0 0.0
      %383 = vmatprep.subr.mxu0 0.0
      %384 = vmatpush2.msra.mxu0 0.0
      %385 = vmatprep.subr.mxu0 0.0
      %386 = vmatpush2.msra.mxu0 0.0
      %387 = vmatprep.subr.mxu0 0.0
      %388 = vmatpush2.msra.mxu0 0.0
      %389 = vmatprep.subr.mxu0 0.0
      %390 = vmatpush2.msra.mxu0 0.0
      %391 = vmatprep.subr.mxu0 0.0
      %392 = vmatpush2.msra.mxu0 0.0
      %393 = vmatprep.subr.mxu0 0.0
      %394 = vmatpush2.msra.mxu0 0.0
      %395 = vmatprep.subr.mxu0 0.0
      %396 = vmatpush2.msra.mxu0 0.0
      %397 = vmatprep.subr.mxu0 0.0
      %398 = vmatpush2.msra.mxu0 0.0
      %399 = vmatprep.subr.mxu0 0.0
      %400 = vmatpush2.msra.mxu0 0.0
      %401 = vmatprep.subr.mxu0 0.0
      %402 = vmatpush2.msra.mxu0 0.0
      %403 = vmatprep.subr.mxu0 0.0
      %404 = vmatpush2.msra.mxu0 0.0
      %405 = vmatprep.subr.mxu0 0.0
      %406 = vmatpush2.msra.mxu0 0.0
      %407 = vmatprep.subr.mxu0 0.0
      %408 = vmatpush2.msra.mxu0 0.0
      %409 = vmatprep.subr.mxu0 0.0
      %410 = vmatpush2.msra.mxu0 0.0
      %411 = vmatprep.subr.mxu0 0.0
      %412 = vmatpush2.msra.mxu0 0.0
      %413 = vmatprep.mubr.f32.mxu0 0.0
      %414 = vmatmul.mubr.f32.gmra.mxu0 %v326
      %v415 = vpop.f32.mrf.mxu0
      %v416 = vadd.f32 0.0, %v415
      %v417 = vpop.f32.mrf.mxu0
      %418 = vmatprep.mubr.f32.mxu0 0.0
      %419 = vmatmul.mubr.f32.gmra.mxu0 %v329
      %v420 = vpop.f32.mrf.mxu0
      %v421 = vadd.f32 0.0, %v420
      %v422 = vpop.f32.mrf.mxu0
      %423 = vmatprep.mubr.f32.mxu0 0.0
      %424 = vmatmul.mubr.f32.gmra.mxu0 %v332
      %v425 = vpop.f32.mrf.mxu0
      %v426 = vadd.f32 0.0, %v425
      %v427 = vpop.f32.mrf.mxu0
      %428 = vmatprep.mubr.f32.mxu0 0.0
      %429 = vmatmul.mubr.f32.gmra.mxu0 %v335
      %v430 = vpop.f32.mrf.mxu0
      %v431 = vadd.f32 0.0, %v430
      %v432 = vpop.f32.mrf.mxu0
      %433 = vmatprep.mubr.f32.mxu0 0.0
      %434 = vmatmul.mubr.f32.gmra.mxu0 %v338
      %v435 = vpop.f32.mrf.mxu0
      %v436 = vadd.f32 0.0, %v435
      %v437 = vpop.f32.mrf.mxu0
      %438 = vmatprep.mubr.f32.mxu0 0.0
      %439 = vmatmul.mubr.f32.gmra.mxu0 %v341
      %v440 = vpop.f32.mrf.mxu0
      %v441 = vadd.f32 0.0, %v440
      %v442 = vpop.f32.mrf.mxu0
      %443 = vmatprep.mubr.f32.mxu0 0.0
      %444 = vmatmul.mubr.f32.gmra.mxu0 %v344
      %v445 = vpop.f32.mrf.mxu0
      %v446 = vadd.f32 0.0, %v445
      %v447 = vpop.f32.mrf.mxu0
      %448 = vmatprep.mubr.f32.mxu0 0.0
      %449 = vmatmul.mubr.f32.gmra.mxu0 %v347
      %v450 = vpop.f32.mrf.mxu0
      %v451 = vadd.f32 0.0, %v450
      %v452 = vpop.f32.mrf.mxu0
      %453 = vdwg.mxu0
      %v454 = vlaneseq
      %v455 = vand.u32 %v454, 127
      %vm456 = vcmp.eq.s32.totalorder %v455, 0
      %p457 = scmp.eq.s32.totalorder %s19, 0
      %s458 = scalar_select %p457, 1, 0
      %v459 = vstv %s458
      %vm460 = vcmp.eq.s32.totalorder %v459, 1
      %vm461 = vmand %vm456, %vm460
      %v462 = vld [vmem:[%s234] sm:$0xff]
      %v463 = vld [vmem:[%s234 + $0x8] sm:$0xff]
      %v464 = vld [vmem:[%s234 + $0x10] sm:$0xff]
      %v465 = vld [vmem:[%s234 + $0x18] sm:$0xff]
      %v466 = vld [vmem:[%s234 + $0x20] sm:$0xff]
      %v467 = vld [vmem:[%s234 + $0x28] sm:$0xff]
      %v468 = vld [vmem:[%s234 + $0x30] sm:$0xff]
      %v469 = vld [vmem:[%s234 + $0x38] sm:$0xff]
      %471 = vset.pattern.permute.xlu0 0
      %472 = vperm.xlu0 %471, %v462
      %v473 = vpop.permute.xlu0 %472
      %476 = vset.pattern.permute.xlu0 0
      %477 = vperm.xlu0 %476, %v463
      %v478 = vpop.permute.xlu0 %477
      %481 = vset.pattern.permute.xlu0 0
      %482 = vperm.xlu0 %481, %v464
      %v483 = vpop.permute.xlu0 %482
      %486 = vset.pattern.permute.xlu0 0
      %487 = vperm.xlu0 %486, %v465
      %v488 = vpop.permute.xlu0 %487
      %491 = vset.pattern.permute.xlu0 0
      %492 = vperm.xlu0 %491, %v466
      %v493 = vpop.permute.xlu0 %492
      %496 = vset.pattern.permute.xlu0 0
      %497 = vperm.xlu0 %496, %v467
      %v498 = vpop.permute.xlu0 %497
      %501 = vset.pattern.permute.xlu0 0
      %502 = vperm.xlu0 %501, %v468
      %v503 = vpop.permute.xlu0 %502
      %506 = vset.pattern.permute.xlu0 0
      %507 = vperm.xlu0 %506, %v469
      %v508 = vpop.permute.xlu0 %507
      %v510 = vsel %vm461, %v473, %v416
      %v511 = vsel %vm461, %v478, %v421
      %v512 = vsel %vm461, %v483, %v426
      %v513 = vsel %vm461, %v488, %v431
      %v514 = vsel %vm461, %v493, %v436
      %v515 = vsel %vm461, %v498, %v441
      %v516 = vsel %vm461, %v503, %v446
      %v517 = vsel %vm461, %v508, %v451
      %518 = vadd.xlane.f32.xlu0 %v510
      %v519 = vpop.xlane.xlu0 %518
      %520 = vadd.xlane.f32.xlu0 %v511
      %v521 = vpop.xlane.xlu0 %520
      %522 = vadd.xlane.f32.xlu0 %v512
      %v523 = vpop.xlane.xlu0 %522
      %524 = vadd.xlane.f32.xlu0 %v513
      %v525 = vpop.xlane.xlu0 %524
      %526 = vadd.xlane.f32.xlu0 %v514
      %v527 = vpop.xlane.xlu0 %526
      %528 = vadd.xlane.f32.xlu0 %v515
      %v529 = vpop.xlane.xlu0 %528
      %530 = vadd.xlane.f32.xlu0 %v516
      %v531 = vpop.xlane.xlu0 %530
      %532 = vadd.xlane.f32.xlu0 %v517
      %v533 = vpop.xlane.xlu0 %532
      %v534 = vmul.f32 %v510, %v510
      %v535 = vmul.f32 %v511, %v511
      %v536 = vmul.f32 %v512, %v512
      %v537 = vmul.f32 %v513, %v513
      %v538 = vmul.f32 %v514, %v514
      %v539 = vmul.f32 %v515, %v515
      %v540 = vmul.f32 %v516, %v516
      %v541 = vmul.f32 %v517, %v517
      %542 = vadd.xlane.f32.xlu0 %v534
      %v543 = vpop.xlane.xlu0 %542
      %544 = vadd.xlane.f32.xlu0 %v535
      %v545 = vpop.xlane.xlu0 %544
      %546 = vadd.xlane.f32.xlu0 %v536
      %v547 = vpop.xlane.xlu0 %546
      %548 = vadd.xlane.f32.xlu0 %v537
      %v549 = vpop.xlane.xlu0 %548
      %550 = vadd.xlane.f32.xlu0 %v538
      %v551 = vpop.xlane.xlu0 %550
      %552 = vadd.xlane.f32.xlu0 %v539
      %v553 = vpop.xlane.xlu0 %552
      %554 = vadd.xlane.f32.xlu0 %v540
      %v555 = vpop.xlane.xlu0 %554
      %556 = vadd.xlane.f32.xlu0 %v541
      %v557 = vpop.xlane.xlu0 %556
      %vm558 = vcmask 7168
      %v559 = vsel %vm558, %v519, %v543
      %v560 = vsel %vm558, %v521, %v545
      %v561 = vsel %vm558, %v523, %v547
      %v562 = vsel %vm558, %v525, %v549
      %v563 = vsel %vm558, %v527, %v551
      %v564 = vsel %vm558, %v529, %v553
      %v565 = vsel %vm558, %v531, %v555
      %v566 = vsel %vm558, %v533, %v557
      %vm567 = vcmask 15360
      %568 = vst.msk [vmem:[%s241] sm:$0xff] %vm567, %v559
      %569 = vst.msk [vmem:[%s241 + $0x8] sm:$0xff] %vm567, %v560
      %570 = vst.msk [vmem:[%s241 + $0x10] sm:$0xff] %vm567, %v561
      %571 = vst.msk [vmem:[%s241 + $0x18] sm:$0xff] %vm567, %v562
      %572 = vst.msk [vmem:[%s241 + $0x20] sm:$0xff] %vm567, %v563
      %573 = vst.msk [vmem:[%s241 + $0x28] sm:$0xff] %vm567, %v564
      %574 = vst.msk [vmem:[%s241 + $0x30] sm:$0xff] %vm567, %v565
      %575 = vst.msk [vmem:[%s241 + $0x38] sm:$0xff] %vm567, %v566
      %s576 = smul.u32 %s18, 3
      %s577 = sadd.s32 %s576, %s19
      %p578 = scmp.lt.s32.totalorder %s577, 5
      %s579 = scalar_select %p578, %s577, 5
      %s580 = smul.addr %s579, 8
      %s581 = smul.addr %s580, 8
      %s582 = scalar_lea.vmem %s3, %s581
      // Predicated region
      $region33: #{pointnet_forward.6} parent=31 // pred_check
        %p583 = pneg %p128
      $region34: #{pointnet_forward.6} parent=31 // pred_check_branch
        %585 = sbr.rel (%p583) target = $region36
      $region35: #{pointnet_forward.6} parent=31 // pred_region
        %s586 = smul.u32 %s18, 3
        %s587 = sadd.s32 %s586, %s19
      $region36: #{pointnet_forward.6} parent=31 // pred_fallthru
        _
    $region32: #{pointnet_forward.6} parent=5 // pred_fallthru
      _
    %p588 = scmp.le.s32.totalorder 2, %s9
    // Predicated region
    $region37: #{pointnet_forward.6} parent=5 // pred_check
      %p589 = pneg %p588
    $region38: #{pointnet_forward.6} parent=5 // pred_check_branch
      %591 = sbr.rel (%p589) target = $region40
    $region39: #{pointnet_forward.6} parent=5 // pred_region
      %s592 = ssub.s32 %s9, 2
      // Predicated region
      $region41: #{pointnet_forward.6} parent=39 // pred_check
        %p593 = pneg %p134
      $region42: #{pointnet_forward.6} parent=39 // pred_check_branch
        %595 = sbr.rel (%p593) target = $region44
      $region43: #{pointnet_forward.6} parent=39 // pred_region
        %s596 = smul.u32 %s20, 3
        %s597 = sadd.s32 %s596, %s21
        %p598 = scmp.lt.s32.totalorder %s597, 5
        %s599 = scalar_select %p598, %s597, 5
        %s600 = smul.addr %s599, 8
        %s601 = smul.addr %s600, 8
        %s602 = scalar_lea.vmem %s3, %s601
      $region44: #{pointnet_forward.6} parent=39 // pred_fallthru
        _
    $region40: #{pointnet_forward.6} parent=5 // pred_fallthru
      _
  $region6: #{pointnet_forward.6} parent=0 // loop_footer
    %s13 = sadd.s32 1, %s9
  $region7: #{pointnet_forward.6} parent=0 // loop_footer_branch
    %8 = sbr.rel target = $region3
  $region8: #{pointnet_forward.6} parent=0 // loop_exit
    _

// kernel: pointnet_forward.5
$region0: #{pointnet_forward.5}
  #allocation0 [shape = 'u32[]', space=smem, size = 0x4, offset = 0x4, fixed_abs, tag = 'smem constant byte address 0x4 - core index']
  #allocation1 [shape = 'u32[144,128]{1,0:T(1,128)}', space=vmem, size = 0x12000, scoped, tag = 'internal scratch']
  %s0 = inlined_call_operand.vmem [shape: f32[3,2,36], index: 0, kind: input, shape index: {}]
  %s1 = inlined_call_operand.vmem [shape: f32[3,2,1], index: 1, kind: input, shape index: {}]
  %s2 = inlined_call_operand.vmem [shape: f32[2,3], index: 2, kind: input, shape index: {}]
  %s3 = inlined_call_operand.vmem [shape: f32[36,64], index: 3, kind: input, shape index: {}]
  %s4 = inlined_call_operand.vmem [shape: f32[1,64], index: 4, kind: input, shape index: {}]
  %s5 = inlined_call_operand.vmem [shape: f32[1,64], index: 5, kind: input, shape index: {}]
  %s6 = inlined_call_operand.vmem [shape: f32[64,256], index: 6, kind: input, shape index: {}]
  %s7 = inlined_call_operand.vmem [shape: f32[1,256], index: 7, kind: input, shape index: {}]
  %s8 = inlined_call_operand.vmem [shape: f32[1,256], index: 8, kind: input, shape index: {}]
  %s9 = inlined_call_operand.vmem [shape: f32[256,8], index: 9, kind: input, shape index: {}]
  %s10 = inlined_call_operand.vmem [shape: f32[1,8], index: 10, kind: input, shape index: {}]
  %s11 = inlined_call_operand.vmem [shape: f32[8,64], index: 11, kind: input, shape index: {}]
  %s12 = inlined_call_operand.vmem [shape: f32[3,64], index: 12, kind: input, shape index: {}]
  %s13 = inlined_call_operand.vmem [shape: f32[1,64], index: 13, kind: input, shape index: {}]
  %s14 = inlined_call_operand.vmem [shape: f32[2,8], index: 14, kind: output, shape index: {0}]
  %s15 = inlined_call_operand.vmem [shape: f32[2,64], index: 15, kind: output, shape index: {1}]
  %16 = xla_tuple %s14, %s15
  %s17 = sld [smem:[#allocation0]]
  $region74: #{pointnet_forward.5} parent=0
    _
  %s19 = ssub.s32 1, %s17
  %s20 = scalar_select 0, %s19, %s17
  // Predicated region
  $region2: #{pointnet_forward.5} parent=0 // pred_check
    _
  $region3: #{pointnet_forward.5} parent=0 // pred_check_branch
    %22 = sbr.rel (0) target = $region5
  $region4: #{pointnet_forward.5} parent=0 // pred_region
    _
  $region5: #{pointnet_forward.5} parent=0 // pred_fallthru
    _
  // Predicated region
  $region6: #{pointnet_forward.5} parent=0 // pred_check
    _
  $region7: #{pointnet_forward.5} parent=0 // pred_check_branch
    %24 = sbr.rel (0) target = $region9
  $region8: #{pointnet_forward.5} parent=0 // pred_region
    _
  $region9: #{pointnet_forward.5} parent=0 // pred_fallthru
    _
  // Predicated region
  $region10: #{pointnet_forward.5} parent=0 // pred_check
    _
  $region11: #{pointnet_forward.5} parent=0 // pred_check_branch
    %26 = sbr.rel (0) target = $region13
  $region12: #{pointnet_forward.5} parent=0 // pred_region
    _
  $region13: #{pointnet_forward.5} parent=0 // pred_fallthru
    _
  // Predicated region
  $region14: #{pointnet_forward.5} parent=0 // pred_check
    _
  $region15: #{pointnet_forward.5} parent=0 // pred_check_branch
    %28 = sbr.rel (0) target = $region17
  $region16: #{pointnet_forward.5} parent=0 // pred_region
    _
  $region17: #{pointnet_forward.5} parent=0 // pred_fallthru
    _
  // Predicated region
  $region18: #{pointnet_forward.5} parent=0 // pred_check
    _
  $region19: #{pointnet_forward.5} parent=0 // pred_check_branch
    %30 = sbr.rel (0) target = $region21
  $region20: #{pointnet_forward.5} parent=0 // pred_region
    _
  $region21: #{pointnet_forward.5} parent=0 // pred_fallthru
    _
  // Predicated region
  $region22: #{pointnet_forward.5} parent=0 // pred_check
    _
  $region23: #{pointnet_forward.5} parent=0 // pred_check_branch
    %32 = sbr.rel (0) target = $region25
  $region24: #{pointnet_forward.5} parent=0 // pred_region
    _
  $region25: #{pointnet_forward.5} parent=0 // pred_fallthru
    _
  // Predicated region
  $region26: #{pointnet_forward.5} parent=0 // pred_check
    _
  $region27: #{pointnet_forward.5} parent=0 // pred_check_branch
    %34 = sbr.rel (0) target = $region29
  $region28: #{pointnet_forward.5} parent=0 // pred_region
    _
  $region29: #{pointnet_forward.5} parent=0 // pred_fallthru
    _
  // Predicated region
  $region30: #{pointnet_forward.5} parent=0 // pred_check
    _
  $region31: #{pointnet_forward.5} parent=0 // pred_check_branch
    %36 = sbr.rel (0) target = $region33
  $region32: #{pointnet_forward.5} parent=0 // pred_region
    _
  $region33: #{pointnet_forward.5} parent=0 // pred_fallthru
    _
  // Predicated region
  $region34: #{pointnet_forward.5} parent=0 // pred_check
    _
  $region35: #{pointnet_forward.5} parent=0 // pred_check_branch
    %38 = sbr.rel (0) target = $region37
  $region36: #{pointnet_forward.5} parent=0 // pred_region
    _
  $region37: #{pointnet_forward.5} parent=0 // pred_fallthru
    _
  // Predicated region
  $region38: #{pointnet_forward.5} parent=0 // pred_check
    _
  $region39: #{pointnet_forward.5} parent=0 // pred_check_branch
    %40 = sbr.rel (0) target = $region41
  $region40: #{pointnet_forward.5} parent=0 // pred_region
    _
  $region41: #{pointnet_forward.5} parent=0 // pred_fallthru
    _
  // Predicated region
  $region42: #{pointnet_forward.5} parent=0 // pred_check
    _
  $region43: #{pointnet_forward.5} parent=0 // pred_check_branch
    %42 = sbr.rel (0) target = $region45
  $region44: #{pointnet_forward.5} parent=0 // pred_region
    _
  $region45: #{pointnet_forward.5} parent=0 // pred_fallthru
    _
  // Predicated region
  $region46: #{pointnet_forward.5} parent=0 // pred_check
    _
  $region47: #{pointnet_forward.5} parent=0 // pred_check_branch
    %44 = sbr.rel (0) target = $region49
  $region48: #{pointnet_forward.5} parent=0 // pred_region
    _
  $region49: #{pointnet_forward.5} parent=0 // pred_fallthru
    _
  // Predicated region
  $region50: #{pointnet_forward.5} parent=0 // pred_check
    _
  $region51: #{pointnet_forward.5} parent=0 // pred_check_branch
    %46 = sbr.rel (0) target = $region53
  $region52: #{pointnet_forward.5} parent=0 // pred_region
    _
  $region53: #{pointnet_forward.5} parent=0 // pred_fallthru
    _
  // Predicated region
  $region54: #{pointnet_forward.5} parent=0 // pred_check
    _
  $region55: #{pointnet_forward.5} parent=0 // pred_check_branch
    %48 = sbr.rel (0) target = $region57
  $region56: #{pointnet_forward.5} parent=0 // pred_region
    _
  $region57: #{pointnet_forward.5} parent=0 // pred_fallthru
    _
  %v49 = vld [vmem:[%s0] sm:$0x3]
  %v50 = vld [vmem:[%s0 + $0x2] sm:$0x3]
  %v51 = vld [vmem:[%s0 + $0x4] sm:$0x3]
  %vm52 = vcmask 287744
  %v53 = vsel %vm52, %v49, 0.0
  %v54 = vsel %vm52, %v50, 0.0
  %v55 = vadd.f32 %v53, %v54
  %v56 = vsel %vm52, %v51, 0.0
  %v57 = vadd.f32 %v55, %v56
  %v58 = vld [vmem:[%s1] sm:$0x3]
  %v59 = vld [vmem:[%s1 + $0x2] sm:$0x3]
  %v60 = vld [vmem:[%s1 + $0x4] sm:$0x3]
  %vm61 = vcmask 1024
  %v62 = vsel %vm61, %v58, 0.0
  %v63 = vsel %vm61, %v59, 0.0
  %v64 = vadd.f32 %v62, %v63
  %v65 = vsel %vm61, %v60, 0.0
  %v66 = vadd.f32 %v64, %v65
  %v67 = vld [vmem:[%s3] sm:$0xff]
  %v68 = vld [vmem:[%s3 + $0x8] sm:$0xff]
  %v69 = vld [vmem:[%s3 + $0x10] sm:$0xff]
  %v70 = vld [vmem:[%s3 + $0x18] sm:$0xff]
  %v71 = vld [vmem:[%s3 + $0x20] sm:$0xf]
  %vm72 = vcmask 293888
  %v74 = vsel %vm72, %v57, 0
  %vm76 = vcmask 1043456
  %v78 = vsel %vm76, %v71, 0
  %80 = vmatprep.subr.mxu0 0.0
  %81 = vmatpush1.msra.mxu0 0.0
  %82 = vmatprep.subr.mxu0 0.0
  %83 = vmatpush1.msra.mxu0 0.0
  %84 = vmatprep.subr.mxu0 0.0
  %85 = vmatpush1.msra.mxu0 0.0
  %86 = vmatprep.subr.mxu0 0.0
  %87 = vmatpush1.msra.mxu0 0.0
  %88 = vmatprep.subr.mxu0 0.0
  %89 = vmatpush1.msra.mxu0 0.0
  %90 = vmatprep.subr.mxu0 0.0
  %91 = vmatpush1.msra.mxu0 0.0
  %92 = vmatprep.subr.mxu0 0.0
  %93 = vmatpush1.msra.mxu0 0.0
  %94 = vmatprep.subr.mxu0 0.0
  %95 = vmatpush1.msra.mxu0 0.0
  %96 = vmatprep.subr.mxu0 0.0
  %97 = vmatpush1.msra.mxu0 0.0
  %98 = vmatprep.subr.mxu0 0.0
  %99 = vmatpush1.msra.mxu0 0.0
  %100 = vmatprep.subr.mxu0 0.0
  %101 = vmatpush1.msra.mxu0 0.0
  %102 = vmatprep.subr.mxu0 0.0
  %103 = vmatpush1.msra.mxu0 %v78
  %104 = vmatprep.subr.mxu0 0.0
  %105 = vmatpush1.msra.mxu0 %v70
  %106 = vmatprep.subr.mxu0 0.0
  %107 = vmatpush1.msra.mxu0 %v69
  %108 = vmatprep.subr.mxu0 0.0
  %109 = vmatpush1.msra.mxu0 %v68
  %110 = vmatprep.subr.mxu0 0.0
  %111 = vmatpush1.msra.mxu0 %v67
  %112 = vmatprep.subr.mxu0 0.0
  %113 = vmatpush2.msra.mxu0 0.0
  %114 = vmatprep.subr.mxu0 0.0
  %115 = vmatpush2.msra.mxu0 0.0
  %116 = vmatprep.subr.mxu0 0.0
  %117 = vmatpush2.msra.mxu0 0.0
  %118 = vmatprep.subr.mxu0 0.0
  %119 = vmatpush2.msra.mxu0 0.0
  %120 = vmatprep.subr.mxu0 0.0
  %121 = vmatpush2.msra.mxu0 0.0
  %122 = vmatprep.subr.mxu0 0.0
  %123 = vmatpush2.msra.mxu0 0.0
  %124 = vmatprep.subr.mxu0 0.0
  %125 = vmatpush2.msra.mxu0 0.0
  %126 = vmatprep.subr.mxu0 0.0
  %127 = vmatpush2.msra.mxu0 0.0
  %128 = vmatprep.subr.mxu0 0.0
  %129 = vmatpush2.msra.mxu0 0.0
  %130 = vmatprep.subr.mxu0 0.0
  %131 = vmatpush2.msra.mxu0 0.0
  %132 = vmatprep.subr.mxu0 0.0
  %133 = vmatpush2.msra.mxu0 0.0
  %134 = vmatprep.subr.mxu0 0.0
  %135 = vmatpush2.msra.mxu0 0.0
  %136 = vmatprep.subr.mxu0 0.0
  %137 = vmatpush2.msra.mxu0 0.0
  %138 = vmatprep.subr.mxu0 0.0
  %139 = vmatpush2.msra.mxu0 0.0
  %140 = vmatprep.subr.mxu0 0.0
  %141 = vmatpush2.msra.mxu0 0.0
  %142 = vmatprep.subr.mxu0 0.0
  %143 = vmatpush2.msra.mxu0 0.0
  %144 = vmatprep.mubr.f32.mxu0 0.0
  %145 = vmatmul.mubr.f32.gmra.mxu0 %v74
  %v146 = vpop.f32.mrf.mxu0
  %v147 = vadd.f32 0.0, %v146
  %v148 = vpop.f32.mrf.mxu0
  %149 = vdwg.mxu0
  %v150 = vmax.f32 %v66, 1e-12
  %152 = vset.pattern.permute.xlu0 0
  %153 = vperm.xlu0 %152, %v150
  %v154 = vpop.permute.xlu0 %153
  %v156 = vrcp.pop %v154
  %v157 = vmul.f32 %v147, %v156
  %vm158 = vcmask 517120
  %v159 = vsel %vm158, %v157, 0.0
  %v160 = vrot.slane %v159, 4
  %v161 = vadd.f32 %v159, %v160
  %v162 = vrot.slane %v161, 2
  %v163 = vadd.f32 %v161, %v162
  %v164 = vrot.slane %v163, 1
  %v165 = vadd.f32 %v163, %v164
  %v166 = vrcp.pop 2.0
  %v167 = vmul.f32 %v165, %v166
  %v168 = vsub.f32 %v157, %v167
  %v169 = vmul.f32 %v168, %v168
  %v170 = vsel %vm158, %v169, 0.0
  %v171 = vrot.slane %v170, 4
  %v172 = vadd.f32 %v170, %v171
  %v173 = vrot.slane %v172, 2
  %v174 = vadd.f32 %v172, %v173
  %v175 = vrot.slane %v174, 1
  %v176 = vadd.f32 %v174, %v175
  %v177 = vmul.f32 %v176, %v166
  %v178 = vadd.f32 %v177, 1e-05
  %v179 = vrsqrt.pop %v178
  %v180 = vmul.f32 %v168, %v179
  %v181 = vld [vmem:[%s4] sm:$0x1]
  %v183 = vlaneseq
  %v184 = vshrl.u32 %v183, 7
  %v185 = vsub.s32 0, %v184
  %v186 = vrot.slane %v181, %v185
  %v188 = vmul.f32 %v180, %v186
  %v189 = vld [vmem:[%s5] sm:$0x1]
  %v191 = vlaneseq
  %v192 = vshrl.u32 %v191, 7
  %v193 = vsub.s32 0, %v192
  %v194 = vrot.slane %v189, %v193
  %v196 = vadd.f32 %v188, %v194
  %v197 = vmax.f32 %v196, 0.0
  %v198 = vld [vmem:[%s6] sm:$0xff]
  %v199 = vld [vmem:[%s6 + $0x8] sm:$0xff]
  %v200 = vld [vmem:[%s6 + $0x10] sm:$0xff]
  %v201 = vld [vmem:[%s6 + $0x18] sm:$0xff]
  %v202 = vld [vmem:[%s6 + $0x20] sm:$0xff]
  %v203 = vld [vmem:[%s6 + $0x28] sm:$0xff]
  %v204 = vld [vmem:[%s6 + $0x30] sm:$0xff]
  %v205 = vld [vmem:[%s6 + $0x38] sm:$0xff]
  %v206 = vld [vmem:[%s6 + $0x40] sm:$0xff]
  %v207 = vld [vmem:[%s6 + $0x48] sm:$0xff]
  %v208 = vld [vmem:[%s6 + $0x50] sm:$0xff]
  %v209 = vld [vmem:[%s6 + $0x58] sm:$0xff]
  %v210 = vld [vmem:[%s6 + $0x60] sm:$0xff]
  %v211 = vld [vmem:[%s6 + $0x68] sm:$0xff]
  %v212 = vld [vmem:[%s6 + $0x70] sm:$0xff]
  %v213 = vld [vmem:[%s6 + $0x78] sm:$0xff]
  %vm214 = vcmask 523264
  %v216 = vsel %vm214, %v197, 0
  %218 = vmatprep.subr.mxu0 0.0
  %219 = vmatpush1.msra.mxu0 0.0
  %220 = vmatprep.subr.mxu0 0.0
  %221 = vmatpush1.msra.mxu0 0.0
  %222 = vmatprep.subr.mxu0 0.0
  %223 = vmatpush1.msra.mxu0 0.0
  %224 = vmatprep.subr.mxu0 0.0
  %225 = vmatpush1.msra.mxu0 0.0
  %226 = vmatprep.subr.mxu0 0.0
  %227 = vmatpush1.msra.mxu0 0.0
  %228 = vmatprep.subr.mxu0 0.0
  %229 = vmatpush1.msra.mxu0 0.0
  %230 = vmatprep.subr.mxu0 0.0
  %231 = vmatpush1.msra.mxu0 0.0
  %232 = vmatprep.subr.mxu0 0.0
  %233 = vmatpush1.msra.mxu0 0.0
  %234 = vmatprep.subr.mxu0 %v213
  %235 = vmatpush1.msra.mxu0 %v212
  %236 = vmatprep.subr.mxu0 %v211
  %237 = vmatpush1.msra.mxu0 %v210
  %238 = vmatprep.subr.mxu0 %v209
  %239 = vmatpush1.msra.mxu0 %v208
  %240 = vmatprep.subr.mxu0 %v207
  %241 = vmatpush1.msra.mxu0 %v206
  %242 = vmatprep.subr.mxu0 %v205
  %243 = vmatpush1.msra.mxu0 %v204
  %244 = vmatprep.subr.mxu0 %v203
  %245 = vmatpush1.msra.mxu0 %v202
  %246 = vmatprep.subr.mxu0 %v201
  %247 = vmatpush1.msra.mxu0 %v200
  %248 = vmatprep.subr.mxu0 %v199
  %249 = vmatpush1.msra.mxu0 %v198
  %250 = vmatprep.subr.mxu0 0.0
  %251 = vmatpush2.msra.mxu0 0.0
  %252 = vmatprep.subr.mxu0 0.0
  %253 = vmatpush2.msra.mxu0 0.0
  %254 = vmatprep.subr.mxu0 0.0
  %255 = vmatpush2.msra.mxu0 0.0
  %256 = vmatprep.subr.mxu0 0.0
  %257 = vmatpush2.msra.mxu0 0.0
  %258 = vmatprep.subr.mxu0 0.0
  %259 = vmatpush2.msra.mxu0 0.0
  %260 = vmatprep.subr.mxu0 0.0
  %261 = vmatpush2.msra.mxu0 0.0
  %262 = vmatprep.subr.mxu0 0.0
  %263 = vmatpush2.msra.mxu0 0.0
  %264 = vmatprep.subr.mxu0 0.0
  %265 = vmatpush2.msra.mxu0 0.0
  %266 = vmatprep.subr.mxu0 0.0
  %267 = vmatpush2.msra.mxu0 0.0
  %268 = vmatprep.subr.mxu0 0.0
  %269 = vmatpush2.msra.mxu0 0.0
  %270 = vmatprep.subr.mxu0 0.0
  %271 = vmatpush2.msra.mxu0 0.0
  %272 = vmatprep.subr.mxu0 0.0
  %273 = vmatpush2.msra.mxu0 0.0
  %274 = vmatprep.subr.mxu0 0.0
  %275 = vmatpush2.msra.mxu0 0.0
  %276 = vmatprep.subr.mxu0 0.0
  %277 = vmatpush2.msra.mxu0 0.0
  %278 = vmatprep.subr.mxu0 0.0
  %279 = vmatpush2.msra.mxu0 0.0
  %280 = vmatprep.subr.mxu0 0.0
  %281 = vmatpush2.msra.mxu0 0.0
  %282 = vmatprep.mubr.f32.mxu0 0.0
  %283 = vmatmul.mubr.f32.gmra.mxu0 %v216
  %v284 = vpop.f32.mrf.mxu0
  %v285 = vadd.f32 0.0, %v284
  %v286 = vpop.f32.mrf.mxu0
  %v287 = vadd.f32 0.0, %v286
  %288 = vdwg.mxu0
  %vm289 = vcmask 1041408
  %v290 = vsel %vm289, %v285, 0.0
  %v291 = vrot.slane %v290, 4
  %v292 = vadd.f32 %v290, %v291
  %v293 = vrot.slane %v292, 2
  %v294 = vadd.f32 %v292, %v293
  %v295 = vrot.slane %v294, 1
  %v296 = vadd.f32 %v294, %v295
  %v297 = vsel %vm289, %v287, 0.0
  %v298 = vrot.slane %v297, 4
  %v299 = vadd.f32 %v297, %v298
  %v300 = vrot.slane %v299, 2
  %v301 = vadd.f32 %v299, %v300
  %v302 = vrot.slane %v301, 1
  %v303 = vadd.f32 %v301, %v302
  %v304 = vmul.f32 %v296, %v166
  %v305 = vmul.f32 %v303, %v166
  %v306 = vsub.f32 %v285, %v304
  %v307 = vsub.f32 %v287, %v305
  %v308 = vmul.f32 %v306, %v306
  %v309 = vmul.f32 %v307, %v307
  %v310 = vsel %vm289, %v308, 0.0
  %v311 = vrot.slane %v310, 4
  %v312 = vadd.f32 %v310, %v311
  %v313 = vrot.slane %v312, 2
  %v314 = vadd.f32 %v312, %v313
  %v315 = vrot.slane %v314, 1
  %v316 = vadd.f32 %v314, %v315
  %v317 = vsel %vm289, %v309, 0.0
  %v318 = vrot.slane %v317, 4
  %v319 = vadd.f32 %v317, %v318
  %v320 = vrot.slane %v319, 2
  %v321 = vadd.f32 %v319, %v320
  %v322 = vrot.slane %v321, 1
  %v323 = vadd.f32 %v321, %v322
  %v324 = vmul.f32 %v316, %v166
  %v325 = vmul.f32 %v323, %v166
  %v326 = vadd.f32 %v324, 1e-05
  %v327 = vadd.f32 %v325, 1e-05
  %v328 = vrsqrt.pop %v326
  %v329 = vrsqrt.pop %v327
  %v330 = vmul.f32 %v306, %v328
  %v331 = vmul.f32 %v307, %v329
  %v332 = vld [vmem:[%s7] sm:$0x3]
  %v334 = vlaneseq
  %v335 = vshrl.u32 %v334, 7
  %v336 = vsub.s32 0, %v335
  %v337 = vrot.slane %v332, %v336
  %v338 = vlaneseq
  %v339 = vshrl.u32 %v338, 7
  %v340 = vsub.s32 1, %v339
  %v341 = vrot.slane %v332, %v340
  %v344 = vmul.f32 %v330, %v337
  %v345 = vmul.f32 %v331, %v341
  %v346 = vld [vmem:[%s8] sm:$0x3]
  %v348 = vlaneseq
  %v349 = vshrl.u32 %v348, 7
  %v350 = vsub.s32 0, %v349
  %v351 = vrot.slane %v346, %v350
  %v352 = vlaneseq
  %v353 = vshrl.u32 %v352, 7
  %v354 = vsub.s32 1, %v353
  %v355 = vrot.slane %v346, %v354
  %v358 = vadd.f32 %v344, %v351
  %v359 = vadd.f32 %v345, %v355
  %v360 = vmax.f32 %v358, 0.0
  %v361 = vmax.f32 %v359, 0.0
  %v362 = vld [vmem:[%s9] sm:$0xff]
  %v363 = vld [vmem:[%s9 + $0x8] sm:$0xff]
  %v364 = vld [vmem:[%s9 + $0x10] sm:$0xff]
  %v365 = vld [vmem:[%s9 + $0x18] sm:$0xff]
  %v366 = vld [vmem:[%s9 + $0x20] sm:$0xff]
  %v367 = vld [vmem:[%s9 + $0x28] sm:$0xff]
  %v368 = vld [vmem:[%s9 + $0x30] sm:$0xff]
  %v369 = vld [vmem:[%s9 + $0x38] sm:$0xff]
  %v370 = vld [vmem:[%s9 + $0x40] sm:$0xff]
  %v371 = vld [vmem:[%s9 + $0x48] sm:$0xff]
  %v372 = vld [vmem:[%s9 + $0x50] sm:$0xff]
  %v373 = vld [vmem:[%s9 + $0x58] sm:$0xff]
  %v374 = vld [vmem:[%s9 + $0x60] sm:$0xff]
  %v375 = vld [vmem:[%s9 + $0x68] sm:$0xff]
  %v376 = vld [vmem:[%s9 + $0x70] sm:$0xff]
  %v377 = vld [vmem:[%s9 + $0x78] sm:$0xff]
  %v378 = vld [vmem:[%s9 + $0x80] sm:$0xff]
  %v379 = vld [vmem:[%s9 + $0x88] sm:$0xff]
  %v380 = vld [vmem:[%s9 + $0x90] sm:$0xff]
  %v381 = vld [vmem:[%s9 + $0x98] sm:$0xff]
  %v382 = vld [vmem:[%s9 + $0xa0] sm:$0xff]
  %v383 = vld [vmem:[%s9 + $0xa8] sm:$0xff]
  %v384 = vld [vmem:[%s9 + $0xb0] sm:$0xff]
  %v385 = vld [vmem:[%s9 + $0xb8] sm:$0xff]
  %v386 = vld [vmem:[%s9 + $0xc0] sm:$0xff]
  %v387 = vld [vmem:[%s9 + $0xc8] sm:$0xff]
  %v388 = vld [vmem:[%s9 + $0xd0] sm:$0xff]
  %v389 = vld [vmem:[%s9 + $0xd8] sm:$0xff]
  %v390 = vld [vmem:[%s9 + $0xe0] sm:$0xff]
  %v391 = vld [vmem:[%s9 + $0xe8] sm:$0xff]
  %v392 = vld [vmem:[%s9 + $0xf0] sm:$0xff]
  %v393 = vld [vmem:[%s9 + $0xf8] sm:$0xff]
  %v394 = vld [vmem:[%s10] sm:$0x1]
  %v396 = vlaneseq
  %v397 = vshrl.u32 %v396, 7
  %v398 = vsub.s32 0, %v397
  %v399 = vrot.slane %v394, %v398
  %401 = vmatprep.subr.mxu0 0.0
  %402 = vmatpush1.msra.mxu0 %v377
  %403 = vmatprep.subr.mxu0 0.0
  %404 = vmatpush1.msra.mxu0 %v376
  %405 = vmatprep.subr.mxu0 0.0
  %406 = vmatpush1.msra.mxu0 %v375
  %407 = vmatprep.subr.mxu0 0.0
  %408 = vmatpush1.msra.mxu0 %v374
  %409 = vmatprep.subr.mxu0 0.0
  %410 = vmatpush1.msra.mxu0 %v373
  %411 = vmatprep.subr.mxu0 0.0
  %412 = vmatpush1.msra.mxu0 %v372
  %413 = vmatprep.subr.mxu0 0.0
  %414 = vmatpush1.msra.mxu0 %v371
  %415 = vmatprep.subr.mxu0 0.0
  %416 = vmatpush1.msra.mxu0 %v370
  %417 = vmatprep.subr.mxu0 0.0
  %418 = vmatpush1.msra.mxu0 %v369
  %419 = vmatprep.subr.mxu0 0.0
  %420 = vmatpush1.msra.mxu0 %v368
  %421 = vmatprep.subr.mxu0 0.0
  %422 = vmatpush1.msra.mxu0 %v367
  %423 = vmatprep.subr.mxu0 0.0
  %424 = vmatpush1.msra.mxu0 %v366
  %425 = vmatprep.subr.mxu0 0.0
  %426 = vmatpush1.msra.mxu0 %v365
  %427 = vmatprep.subr.mxu0 0.0
  %428 = vmatpush1.msra.mxu0 %v364
  %429 = vmatprep.subr.mxu0 0.0
  %430 = vmatpush1.msra.mxu0 %v363
  %431 = vmatprep.subr.mxu0 0.0
  %432 = vmatpush1.msra.mxu0 %v362
  %433 = vmatprep.subr.mxu0 0.0
  %434 = vmatpush2.msra.mxu0 %v393
  %435 = vmatprep.subr.mxu0 0.0
  %436 = vmatpush2.msra.mxu0 %v392
  %437 = vmatprep.subr.mxu0 0.0
  %438 = vmatpush2.msra.mxu0 %v391
  %439 = vmatprep.subr.mxu0 0.0
  %440 = vmatpush2.msra.mxu0 %v390
  %441 = vmatprep.subr.mxu0 0.0
  %442 = vmatpush2.msra.mxu0 %v389
  %443 = vmatprep.subr.mxu0 0.0
  %444 = vmatpush2.msra.mxu0 %v388
  %445 = vmatprep.subr.mxu0 0.0
  %446 = vmatpush2.msra.mxu0 %v387
  %447 = vmatprep.subr.mxu0 0.0
  %448 = vmatpush2.msra.mxu0 %v386
  %449 = vmatprep.subr.mxu0 0.0
  %450 = vmatpush2.msra.mxu0 %v385
  %451 = vmatprep.subr.mxu0 0.0
  %452 = vmatpush2.msra.mxu0 %v384
  %453 = vmatprep.subr.mxu0 0.0
  %454 = vmatpush2.msra.mxu0 %v383
  %455 = vmatprep.subr.mxu0 0.0
  %456 = vmatpush2.msra.mxu0 %v382
  %457 = vmatprep.subr.mxu0 0.0
  %458 = vmatpush2.msra.mxu0 %v381
  %459 = vmatprep.subr.mxu0 0.0
  %460 = vmatpush2.msra.mxu0 %v380
  %461 = vmatprep.subr.mxu0 0.0
  %462 = vmatpush2.msra.mxu0 %v379
  %463 = vmatprep.subr.mxu0 0.0
  %464 = vmatpush2.msra.mxu0 %v378
  %465 = vmatprep.mubr.f32.mxu0 %v361
  %466 = vmatmul.mubr.f32.gmra.mxu0 %v360
  %v467 = vpop.f32.mrf.mxu0
  %v468 = vadd.f32 %v399, %v467
  %v469 = vpop.f32.mrf.mxu0
  %470 = vdwg.mxu0
  %vm471 = vcmask 58368
  %472 = vst.msk [vmem:[%s14] sm:$0x3] %vm471, %v468
  %v473 = vld [vmem:[%s11] sm:$0xff]
  %v474 = vld [vmem:[%s2] sm:$0x3]
  %v475 = vld [vmem:[%s12] sm:$0x7]
  %vm476 = vcmask 23552
  %v478 = vsel %vm476, %v474, 0
  %vm480 = vcmask 1042432
  %v482 = vsel %vm480, %v475, 0
  %484 = vmatprep.subr.mxu0 0.0
  %485 = vmatpush1.msra.mxu0 0.0
  %486 = vmatprep.subr.mxu0 0.0
  %487 = vmatpush1.msra.mxu0 0.0
  %488 = vmatprep.subr.mxu0 0.0
  %489 = vmatpush1.msra.mxu0 0.0
  %490 = vmatprep.subr.mxu0 0.0
  %491 = vmatpush1.msra.mxu0 0.0
  %492 = vmatprep.subr.mxu0 0.0
  %493 = vmatpush1.msra.mxu0 0.0
  %494 = vmatprep.subr.mxu0 0.0
  %495 = vmatpush1.msra.mxu0 0.0
  %496 = vmatprep.subr.mxu0 0.0
  %497 = vmatpush1.msra.mxu0 0.0
  %498 = vmatprep.subr.mxu0 0.0
  %499 = vmatpush1.msra.mxu0 0.0
  %500 = vmatprep.subr.mxu0 0.0
  %501 = vmatpush1.msra.mxu0 0.0
  %502 = vmatprep.subr.mxu0 0.0
  %503 = vmatpush1.msra.mxu0 0.0
  %504 = vmatprep.subr.mxu0 0.0
  %505 = vmatpush1.msra.mxu0 0.0
  %506 = vmatprep.subr.mxu0 0.0
  %507 = vmatpush1.msra.mxu0 0.0
  %508 = vmatprep.subr.mxu0 0.0
  %509 = vmatpush1.msra.mxu0 0.0
  %510 = vmatprep.subr.mxu0 0.0
  %511 = vmatpush1.msra.mxu0 0.0
  %512 = vmatprep.subr.mxu0 0.0
  %513 = vmatpush1.msra.mxu0 0.0
  %514 = vmatprep.subr.mxu0 0.0
  %515 = vmatpush1.msra.mxu0 %v482
  %516 = vmatprep.subr.mxu0 0.0
  %517 = vmatpush2.msra.mxu0 0.0
  %518 = vmatprep.subr.mxu0 0.0
  %519 = vmatpush2.msra.mxu0 0.0
  %520 = vmatprep.subr.mxu0 0.0
  %521 = vmatpush2.msra.mxu0 0.0
  %522 = vmatprep.subr.mxu0 0.0
  %523 = vmatpush2.msra.mxu0 0.0
  %524 = vmatprep.subr.mxu0 0.0
  %525 = vmatpush2.msra.mxu0 0.0
  %526 = vmatprep.subr.mxu0 0.0
  %527 = vmatpush2.msra.mxu0 0.0
  %528 = vmatprep.subr.mxu0 0.0
  %529 = vmatpush2.msra.mxu0 0.0
  %530 = vmatprep.subr.mxu0 0.0
  %531 = vmatpush2.msra.mxu0 0.0
  %532 = vmatprep.subr.mxu0 0.0
  %533 = vmatpush2.msra.mxu0 0.0
  %534 = vmatprep.subr.mxu0 0.0
  %535 = vmatpush2.msra.mxu0 0.0
  %536 = vmatprep.subr.mxu0 0.0
  %537 = vmatpush2.msra.mxu0 0.0
  %538 = vmatprep.subr.mxu0 0.0
  %539 = vmatpush2.msra.mxu0 0.0
  %540 = vmatprep.subr.mxu0 0.0
  %541 = vmatpush2.msra.mxu0 0.0
  %542 = vmatprep.subr.mxu0 0.0
  %543 = vmatpush2.msra.mxu0 0.0
  %544 = vmatprep.subr.mxu0 0.0
  %545 = vmatpush2.msra.mxu0 0.0
  %546 = vmatprep.subr.mxu0 0.0
  %547 = vmatpush2.msra.mxu0 0.0
  %548 = vmatprep.mubr.f32.mxu0 0.0
  %549 = vmatmul.mubr.f32.gmra.mxu0 %v478
  %v550 = vpop.f32.mrf.mxu0
  %v551 = vadd.f32 0.0, %v550
  %v552 = vpop.f32.mrf.mxu0
  %553 = vdwg.mxu0
  %vm554 = vcmask 64512
  %v556 = vsel %vm554, %v468, 0
  %558 = vmatprep.subr.mxu0 0.0
  %559 = vmatpush1.msra.mxu0 0.0
  %560 = vmatprep.subr.mxu0 0.0
  %561 = vmatpush1.msra.mxu0 0.0
  %562 = vmatprep.subr.mxu0 0.0
  %563 = vmatpush1.msra.mxu0 0.0
  %564 = vmatprep.subr.mxu0 0.0
  %565 = vmatpush1.msra.mxu0 0.0
  %566 = vmatprep.subr.mxu0 0.0
  %567 = vmatpush1.msra.mxu0 0.0
  %568 = vmatprep.subr.mxu0 0.0
  %569 = vmatpush1.msra.mxu0 0.0
  %570 = vmatprep.subr.mxu0 0.0
  %571 = vmatpush1.msra.mxu0 0.0
  %572 = vmatprep.subr.mxu0 0.0
  %573 = vmatpush1.msra.mxu0 0.0
  %574 = vmatprep.subr.mxu0 0.0
  %575 = vmatpush1.msra.mxu0 0.0
  %576 = vmatprep.subr.mxu0 0.0
  %577 = vmatpush1.msra.mxu0 0.0
  %578 = vmatprep.subr.mxu0 0.0
  %579 = vmatpush1.msra.mxu0 0.0
  %580 = vmatprep.subr.mxu0 0.0
  %581 = vmatpush1.msra.mxu0 0.0
  %582 = vmatprep.subr.mxu0 0.0
  %583 = vmatpush1.msra.mxu0 0.0
  %584 = vmatprep.subr.mxu0 0.0
  %585 = vmatpush1.msra.mxu0 0.0
  %586 = vmatprep.subr.mxu0 0.0
  %587 = vmatpush1.msra.mxu0 0.0
  %588 = vmatprep.subr.mxu0 0.0
  %589 = vmatpush1.msra.mxu0 %v473
  %590 = vmatprep.subr.mxu0 0.0
  %591 = vmatpush2.msra.mxu0 0.0
  %592 = vmatprep.subr.mxu0 0.0
  %593 = vmatpush2.msra.mxu0 0.0
  %594 = vmatprep.subr.mxu0 0.0
  %595 = vmatpush2.msra.mxu0 0.0
  %596 = vmatprep.subr.mxu0 0.0
  %597 = vmatpush2.msra.mxu0 0.0
  %598 = vmatprep.subr.mxu0 0.0
  %599 = vmatpush2.msra.mxu0 0.0
  %600 = vmatprep.subr.mxu0 0.0
  %601 = vmatpush2.msra.mxu0 0.0
  %602 = vmatprep.subr.mxu0 0.0
  %603 = vmatpush2.msra.mxu0 0.0
  %604 = vmatprep.subr.mxu0 0.0
  %605 = vmatpush2.msra.mxu0 0.0
  %606 = vmatprep.subr.mxu0 0.0
  %607 = vmatpush2.msra.mxu0 0.0
  %608 = vmatprep.subr.mxu0 0.0
  %609 = vmatpush2.msra.mxu0 0.0
  %610 = vmatprep.subr.mxu0 0.0
  %611 = vmatpush2.msra.mxu0 0.0
  %612 = vmatprep.subr.mxu0 0.0
  %613 = vmatpush2.msra.mxu0 0.0
  %614 = vmatprep.subr.mxu0 0.0
  %615 = vmatpush2.msra.mxu0 0.0
  %616 = vmatprep.subr.mxu0 0.0
  %617 = vmatpush2.msra.mxu0 0.0
  %618 = vmatprep.subr.mxu0 0.0
  %619 = vmatpush2.msra.mxu0 0.0
  %620 = vmatprep.subr.mxu0 0.0
  %621 = vmatpush2.msra.mxu0 0.0
  %622 = vmatprep.mubr.f32.mxu0 0.0
  %623 = vmatmul.mubr.f32.gmra.mxu0 %v556
  %v624 = vpop.f32.mrf.mxu0
  %v625 = vadd.f32 %v551, %v624
  %v626 = vpop.f32.mrf.mxu0
  %627 = vdwg.mxu0
  %v628 = vld [vmem:[%s13] sm:$0x1]
  %v630 = vlaneseq
  %v631 = vshrl.u32 %v630, 7
  %v632 = vsub.s32 0, %v631
  %v633 = vrot.slane %v628, %v632
  %v635 = vadd.f32 %v625, %v633
  %636 = vst.msk [vmem:[%s15] sm:$0x3] %vm158, %v635
  // Predicated region
  $region58: #{pointnet_forward.5} parent=0 // pred_check
    _
  $region59: #{pointnet_forward.5} parent=0 // pred_check_branch
    %638 = sbr.rel (0) target = $region61
  $region60: #{pointnet_forward.5} parent=0 // pred_region
    _
  $region61: #{pointnet_forward.5} parent=0 // pred_fallthru
    _
  // Predicated region
  $region62: #{pointnet_forward.5} parent=0 // pred_check
    _
  $region63: #{pointnet_forward.5} parent=0 // pred_check_branch
    %640 = sbr.rel (0) target = $region65
  $region64: #{pointnet_forward.5} parent=0 // pred_region
    _
  $region65: #{pointnet_forward.5} parent=0 // pred_fallthru
    _
  // Predicated region
  $region66: #{pointnet_forward.5} parent=0 // pred_check
    _
  $region67: #{pointnet_forward.5} parent=0 // pred_check_branch
    %642 = sbr.rel (0) target = $region69
  $region68: #{pointnet_forward.5} parent=0 // pred_region
    _
  $region69: #{pointnet_forward.5} parent=0 // pred_fallthru
    _
  // Predicated region
  $region70: #{pointnet_forward.5} parent=0 // pred_check
    _
  $region71: #{pointnet_forward.5} parent=0 // pred_check_branch
    %644 = sbr.rel (0) target = $region73
  $region72: #{pointnet_forward.5} parent=0 // pred_region
    _
  $region73: #{pointnet_forward.5} parent=0 // pred_fallthru
    _

// kernel: pointnet_forward.7
$region0: #{pointnet_forward.7}
  #allocation0 [shape = 'u32[]', space=smem, size = 0x4, offset = 0x4, fixed_abs, tag = 'smem constant byte address 0x4 - core index']
  #allocation1 [shape = 'u32[144,128]{1,0:T(1,128)}', space=vmem, size = 0x12000, scoped, tag = 'internal scratch']
  #allocation2 [shape = 'f32[24,128]{1,0:T(8,128)}', space=vmem, size = 0x3000, scoped, tag = 'scratch operand']
  %s0 = inlined_call_operand.vmem [shape: f32[2,3,384], index: 0, kind: input, shape index: {}]
  %s1 = inlined_call_operand.vmem [shape: f32[2,64,24], index: 1, kind: input, shape index: {}]
  %s2 = inlined_call_operand.vmem [shape: f32[2,64,1], index: 2, kind: input, shape index: {}]
  %s3 = inlined_call_operand.vmem [shape: f32[64,1], index: 3, kind: input, shape index: {}]
  %s4 = inlined_call_operand.vmem [shape: f32[64,1], index: 4, kind: input, shape index: {}]
  %s5 = inlined_call_operand.vmem [shape: f32[3,64], index: 5, kind: input, shape index: {}]
  %s6 = inlined_call_operand.vmem [shape: f32[3,1], index: 6, kind: input, shape index: {}]
  %s7 = inlined_call_operand.vmem [shape: f32[2,3,384], index: 7, kind: output, shape index: {}]
  %s8 = sld [smem:[#allocation0]]
  $region61: #{pointnet_forward.7} parent=0
    _
  %s10 = ssub.s32 1, %s8
  %s11 = scalar_select 0, %s10, %s8
  loop: start=0, step=1, limit=8
  $region2: #{pointnet_forward.7} parent=0 // loop_pre_header
    _
  $region3: #{pointnet_forward.7} parent=0 // loop_header
    %s13 = sphi 0, %s17
    %p14 = scmp.ge.s32.totalorder %s13, 8
    %s20 = sphi 0, %s32
    %s21 = sphi 0, %s28
    %s22 = sphi 0, %s20
    %s23 = sphi 0, %s21
    %s24 = sphi 0, %s22
    %s25 = sphi 0, %s23
    %s37 = sphi 0, %s39
    %s40 = sphi 0, %s37
    %s41 = sphi 0, %s40
    %s57 = sphi 0, %s41
    %s63 = sphi 0, %s65
    %s66 = sphi 0, %s63
    %s67 = sphi 0, %s66
    %s83 = sphi 0, %s67
    %s89 = sphi 0, %s91
    %s92 = sphi 0, %s89
    %s93 = sphi 0, %s92
    %s109 = sphi 0, %s93
    %s113 = sphi 0, %s113
    %s115 = sphi 0, %s113
    %s116 = sphi 0, %s115
    %s130 = sphi 0, %s116
    %s134 = sphi 0, %s134
    %s136 = sphi 0, %s134
    %s137 = sphi 0, %s136
    %s151 = sphi 0, %s137
    %s155 = sphi 0, %s155
    %s157 = sphi 0, %s155
    %s158 = sphi 0, %s157
    %s172 = sphi 0, %s158
    %s176 = sphi 0, %s176
    %s178 = sphi 0, %s176
    %s179 = sphi 0, %s178
    %s193 = sphi 0, %s179
    %s201 = sphi 0, %s203
    %s204 = sphi 0, %s201
    %s205 = sphi 0, %s204
    %s221 = sphi 0, %s205
  $region4: #{pointnet_forward.7} parent=0 // loop_header_branch
    %16 = sbr.rel (%p14) target = $region8
  $region5: #{pointnet_forward.7} parent=0 // loop_body
    %s18 = ssub.s32 %s13, 1
    %s19 = ssub.s32 %s13, 2
    %s26 = sadd.s32 1, %s21
    %p27 = scmp.ge.s32.totalorder %s26, 3
    %s28 = scalar_select %p27, 0, %s26
    %s29 = sadd.s32 1, %s20
    %s30 = scalar_select %p27, %s29, %s20
    %p31 = scmp.ge.s32.totalorder %s30, 2
    %s32 = scalar_select %p31, 0, %s30
    %s33 = ssub.s32 %s20, %s32
    %s34 = ssub.s32 %s21, %s28
    %s35 = sor.u32 %s33, %s34
    %p36 = scmp.eq.s32.totalorder %s35, 0
    %s38 = sadd.s32 %s37, 1
    %s39 = scalar_select %p36, %s37, %s38
    %p42 = pneg %p36
    %p43 = scmp.eq.s32.totalorder %s13, 5
    %p44 = por %p42, %p43
    %p45 = scmp.ne.s32.totalorder %s37, %s40
    %p46 = scmp.eq.s32.totalorder %s13, 0
    %p47 = por %p45, %p46
    %p48 = scmp.ne.s32.totalorder %s37, %s40
    %p49 = scmp.eq.s32.totalorder %s18, 5
    %p50 = por %p48, %p49
    %p51 = scmp.ne.s32.totalorder %s40, %s41
    %p52 = scmp.eq.s32.totalorder %s18, 0
    %p53 = por %p51, %p52
    %p54 = scmp.ne.s32.totalorder %s40, %s41
    %p55 = scmp.eq.s32.totalorder %s19, 5
    %p56 = por %p54, %p55
    %p58 = scmp.ne.s32.totalorder %s41, %s57
    %p59 = scmp.eq.s32.totalorder %s19, 0
    %p60 = por %p58, %p59
    %s61 = ssub.s32 %s20, %s32
    %p62 = scmp.eq.s32.totalorder %s61, 0
    %s64 = sadd.s32 %s63, 1
    %s65 = scalar_select %p62, %s63, %s64
    %p68 = pneg %p62
    %p69 = scmp.eq.s32.totalorder %s13, 5
    %p70 = por %p68, %p69
    %p71 = scmp.ne.s32.totalorder %s63, %s66
    %p72 = scmp.eq.s32.totalorder %s13, 0
    %p73 = por %p71, %p72
    %p74 = scmp.ne.s32.totalorder %s63, %s66
    %p75 = scmp.eq.s32.totalorder %s18, 5
    %p76 = por %p74, %p75
    %p77 = scmp.ne.s32.totalorder %s66, %s67
    %p78 = scmp.eq.s32.totalorder %s18, 0
    %p79 = por %p77, %p78
    %p80 = scmp.ne.s32.totalorder %s66, %s67
    %p81 = scmp.eq.s32.totalorder %s19, 5
    %p82 = por %p80, %p81
    %p84 = scmp.ne.s32.totalorder %s67, %s83
    %p85 = scmp.eq.s32.totalorder %s19, 0
    %p86 = por %p84, %p85
    %s87 = ssub.s32 %s20, %s32
    %p88 = scmp.eq.s32.totalorder %s87, 0
    %s90 = sadd.s32 %s89, 1
    %s91 = scalar_select %p88, %s89, %s90
    %p94 = pneg %p88
    %p95 = scmp.eq.s32.totalorder %s13, 5
    %p96 = por %p94, %p95
    %p97 = scmp.ne.s32.totalorder %s89, %s92
    %p98 = scmp.eq.s32.totalorder %s13, 0
    %p99 = por %p97, %p98
    %p100 = scmp.ne.s32.totalorder %s89, %s92
    %p101 = scmp.eq.s32.totalorder %s18, 5
    %p102 = por %p100, %p101
    %p103 = scmp.ne.s32.totalorder %s92, %s93
    %p104 = scmp.eq.s32.totalorder %s18, 0
    %p105 = por %p103, %p104
    %p106 = scmp.ne.s32.totalorder %s92, %s93
    %p107 = scmp.eq.s32.totalorder %s19, 5
    %p108 = por %p106, %p107
    %p110 = scmp.ne.s32.totalorder %s93, %s109
    %p111 = scmp.eq.s32.totalorder %s19, 0
    %p112 = por %p110, %p111
    %s114 = sadd.s32 %s113, 1
    %p117 = scmp.eq.s32.totalorder %s13, 5
    %p118 = scmp.ne.s32.totalorder %s113, %s115
    %p119 = scmp.eq.s32.totalorder %s13, 0
    %p120 = por %p118, %p119
    %p121 = scmp.ne.s32.totalorder %s113, %s115
    %p122 = scmp.eq.s32.totalorder %s18, 5
    %p123 = por %p121, %p122
    %p124 = scmp.ne.s32.totalorder %s115, %s116
    %p125 = scmp.eq.s32.totalorder %s18, 0
    %p126 = por %p124, %p125
    %p127 = scmp.ne.s32.totalorder %s115, %s116
    %p128 = scmp.eq.s32.totalorder %s19, 5
    %p129 = por %p127, %p128
    %p131 = scmp.ne.s32.totalorder %s116, %s130
    %p132 = scmp.eq.s32.totalorder %s19, 0
    %p133 = por %p131, %p132
    %s135 = sadd.s32 %s134, 1
    %p138 = scmp.eq.s32.totalorder %s13, 5
    %p139 = scmp.ne.s32.totalorder %s134, %s136
    %p140 = scmp.eq.s32.totalorder %s13, 0
    %p141 = por %p139, %p140
    %p142 = scmp.ne.s32.totalorder %s134, %s136
    %p143 = scmp.eq.s32.totalorder %s18, 5
    %p144 = por %p142, %p143
    %p145 = scmp.ne.s32.totalorder %s136, %s137
    %p146 = scmp.eq.s32.totalorder %s18, 0
    %p147 = por %p145, %p146
    %p148 = scmp.ne.s32.totalorder %s136, %s137
    %p149 = scmp.eq.s32.totalorder %s19, 5
    %p150 = por %p148, %p149
    %p152 = scmp.ne.s32.totalorder %s137, %s151
    %p153 = scmp.eq.s32.totalorder %s19, 0
    %p154 = por %p152, %p153
    %s156 = sadd.s32 %s155, 1
    %p159 = scmp.eq.s32.totalorder %s13, 5
    %p160 = scmp.ne.s32.totalorder %s155, %s157
    %p161 = scmp.eq.s32.totalorder %s13, 0
    %p162 = por %p160, %p161
    %p163 = scmp.ne.s32.totalorder %s155, %s157
    %p164 = scmp.eq.s32.totalorder %s18, 5
    %p165 = por %p163, %p164
    %p166 = scmp.ne.s32.totalorder %s157, %s158
    %p167 = scmp.eq.s32.totalorder %s18, 0
    %p168 = por %p166, %p167
    %p169 = scmp.ne.s32.totalorder %s157, %s158
    %p170 = scmp.eq.s32.totalorder %s19, 5
    %p171 = por %p169, %p170
    %p173 = scmp.ne.s32.totalorder %s158, %s172
    %p174 = scmp.eq.s32.totalorder %s19, 0
    %p175 = por %p173, %p174
    %s177 = sadd.s32 %s176, 1
    %p180 = scmp.eq.s32.totalorder %s13, 5
    %p181 = scmp.ne.s32.totalorder %s176, %s178
    %p182 = scmp.eq.s32.totalorder %s13, 0
    %p183 = por %p181, %p182
    %p184 = scmp.ne.s32.totalorder %s176, %s178
    %p185 = scmp.eq.s32.totalorder %s18, 5
    %p186 = por %p184, %p185
    %p187 = scmp.ne.s32.totalorder %s178, %s179
    %p188 = scmp.eq.s32.totalorder %s18, 0
    %p189 = por %p187, %p188
    %p190 = scmp.ne.s32.totalorder %s178, %s179
    %p191 = scmp.eq.s32.totalorder %s19, 5
    %p192 = por %p190, %p191
    %p194 = scmp.ne.s32.totalorder %s179, %s193
    %p195 = scmp.eq.s32.totalorder %s19, 0
    %p196 = por %p194, %p195
    %s197 = ssub.s32 %s20, %s32
    %s198 = ssub.s32 %s21, %s28
    %s199 = sor.u32 %s197, %s198
    %p200 = scmp.eq.s32.totalorder %s199, 0
    %s202 = sadd.s32 %s201, 1
    %s203 = scalar_select %p200, %s201, %s202
    %p206 = pneg %p200
    %p207 = scmp.eq.s32.totalorder %s13, 5
    %p208 = por %p206, %p207
    %p209 = scmp.ne.s32.totalorder %s201, %s204
    %p210 = scmp.eq.s32.totalorder %s13, 0
    %p211 = por %p209, %p210
    %p212 = scmp.ne.s32.totalorder %s201, %s204
    %p213 = scmp.eq.s32.totalorder %s18, 5
    %p214 = por %p212, %p213
    %p215 = scmp.ne.s32.totalorder %s204, %s205
    %p216 = scmp.eq.s32.totalorder %s18, 0
    %p217 = por %p215, %p216
    %p218 = scmp.ne.s32.totalorder %s204, %s205
    %p219 = scmp.eq.s32.totalorder %s19, 5
    %p220 = por %p218, %p219
    %p222 = scmp.ne.s32.totalorder %s205, %s221
    %p223 = scmp.eq.s32.totalorder %s19, 0
    %p224 = por %p222, %p223
    %p225 = scmp.le.s32.totalorder 1, %s13
    %p226 = scmp.lt.s32.totalorder %s13, 7
    %p227 = pnand %p225, %p226
    %p228 = pneg %p227
    // Predicated region
    $region9: #{pointnet_forward.7} parent=5 // pred_check
      _
    $region10: #{pointnet_forward.7} parent=5 // pred_check_branch
      %230 = sbr.rel (%p227) target = $region12
    $region11: #{pointnet_forward.7} parent=5 // pred_region
      %s231 = ssub.s32 %s13, 1
      // Predicated region
      $region13: #{pointnet_forward.7} parent=11 // pred_check
        %p232 = pneg %p126
      $region14: #{pointnet_forward.7} parent=11 // pred_check_branch
        %234 = sbr.rel (%p232) target = $region16
      $region15: #{pointnet_forward.7} parent=11 // pred_region
        _
      $region16: #{pointnet_forward.7} parent=11 // pred_fallthru
        _
      // Predicated region
      $region17: #{pointnet_forward.7} parent=11 // pred_check
        %p235 = pneg %p147
      $region18: #{pointnet_forward.7} parent=11 // pred_check_branch
        %237 = sbr.rel (%p235) target = $region20
      $region19: #{pointnet_forward.7} parent=11 // pred_region
        _
      $region20: #{pointnet_forward.7} parent=11 // pred_fallthru
        _
      // Predicated region
      $region21: #{pointnet_forward.7} parent=11 // pred_check
        %p238 = pneg %p168
      $region22: #{pointnet_forward.7} parent=11 // pred_check_branch
        %240 = sbr.rel (%p238) target = $region24
      $region23: #{pointnet_forward.7} parent=11 // pred_region
        _
      $region24: #{pointnet_forward.7} parent=11 // pred_fallthru
        _
      // Predicated region
      $region25: #{pointnet_forward.7} parent=11 // pred_check
        %p241 = pneg %p189
      $region26: #{pointnet_forward.7} parent=11 // pred_check_branch
        %243 = sbr.rel (%p241) target = $region28
      $region27: #{pointnet_forward.7} parent=11 // pred_region
        _
      $region28: #{pointnet_forward.7} parent=11 // pred_fallthru
        _
    $region12: #{pointnet_forward.7} parent=5 // pred_fallthru
      _
    %p244 = scmp.lt.s32.totalorder %s13, 6
    // Predicated region
    $region29: #{pointnet_forward.7} parent=5 // pred_check
      %p245 = pneg %p244
    $region30: #{pointnet_forward.7} parent=5 // pred_check_branch
      %247 = sbr.rel (%p245) target = $region32
    $region31: #{pointnet_forward.7} parent=5 // pred_region
      // Predicated region
      $region33: #{pointnet_forward.7} parent=31 // pred_check
        %p248 = pneg %p47
      $region34: #{pointnet_forward.7} parent=31 // pred_check_branch
        %250 = sbr.rel (%p248) target = $region36
      $region35: #{pointnet_forward.7} parent=31 // pred_region
        %p251 = scmp.lt.s32.totalorder %s20, 1
        %s252 = scalar_select %p251, %s20, 1
        %p253 = scmp.lt.s32.totalorder %s21, 2
        %s254 = scalar_select %p253, %s21, 2
        %s255 = smul.addr %s252, 3
        %s256 = sadd.s32 %s254, %s255
        %s257 = smul.addr %s256, 4
        %s258 = scalar_lea.vmem %s0, %s257
      $region36: #{pointnet_forward.7} parent=31 // pred_fallthru
        _
      // Predicated region
      $region37: #{pointnet_forward.7} parent=31 // pred_check
        %p259 = pneg %p73
      $region38: #{pointnet_forward.7} parent=31 // pred_check_branch
        %261 = sbr.rel (%p259) target = $region40
      $region39: #{pointnet_forward.7} parent=31 // pred_region
        %p262 = scmp.lt.s32.totalorder %s20, 1
        %s263 = scalar_select %p262, %s20, 1
        %s264 = smul.addr %s263, 8
        %s265 = smul.addr %s264, 8
        %s266 = scalar_lea.vmem %s1, %s265
      $region40: #{pointnet_forward.7} parent=31 // pred_fallthru
        _
      // Predicated region
      $region41: #{pointnet_forward.7} parent=31 // pred_check
        %p267 = pneg %p99
      $region42: #{pointnet_forward.7} parent=31 // pred_check_branch
        %269 = sbr.rel (%p267) target = $region44
      $region43: #{pointnet_forward.7} parent=31 // pred_region
        %p270 = scmp.lt.s32.totalorder %s20, 1
        %s271 = scalar_select %p270, %s20, 1
        %s272 = smul.addr %s271, 8
        %s273 = smul.addr %s272, 8
        %s274 = scalar_lea.vmem %s2, %s273
      $region44: #{pointnet_forward.7} parent=31 // pred_fallthru
        _
    $region32: #{pointnet_forward.7} parent=5 // pred_fallthru
      _
    %p275 = scmp.le.s32.totalorder 1, %s13
    %p276 = scmp.lt.s32.totalorder %s13, 7
    %p277 = pnand %p275, %p276
    %p278 = pneg %p277
    // Predicated region
    $region45: #{pointnet_forward.7} parent=5 // pred_check
      _
    $region46: #{pointnet_forward.7} parent=5 // pred_check_branch
      %280 = sbr.rel (%p277) target = $region48
    $region47: #{pointnet_forward.7} parent=5 // pred_region
      %s281 = ssub.s32 %s13, 1
      %p282 = scmp.lt.s32.totalorder %s22, 1
      %s283 = scalar_select %p282, %s22, 1
      %p284 = scmp.lt.s32.totalorder %s23, 2
      %s285 = scalar_select %p284, %s23, 2
      %s286 = smul.addr %s283, 3
      %s287 = sadd.s32 %s285, %s286
      %s288 = smul.addr %s287, 4
      %s289 = scalar_lea.vmem %s0, %s288
      %p290 = pneg %p53
      %p291 = pneg %p50
      %p292 = scmp.lt.s32.totalorder %s22, 1
      %s293 = scalar_select %p292, %s22, 1
      %s294 = smul.addr %s293, 8
      %s295 = smul.addr %s294, 8
      %s296 = scalar_lea.vmem %s1, %s295
      %p297 = pneg %p79
      %p298 = pneg %p76
      %p299 = scmp.lt.s32.totalorder %s22, 1
      %s300 = scalar_select %p299, %s22, 1
      %s301 = smul.addr %s300, 8
      %s302 = smul.addr %s301, 8
      %s303 = scalar_lea.vmem %s2, %s302
      %p304 = pneg %p105
      %p305 = pneg %p102
      %p306 = pneg %p126
      %p307 = pneg %p123
      %p308 = pneg %p147
      %p309 = pneg %p144
      %p310 = pneg %p168
      %p311 = pneg %p165
      %p312 = pneg %p189
      %p313 = pneg %p186
      %p314 = pneg %p217
      %p315 = pneg %p214
      %p316 = scmp.lt.s32.totalorder %s22, 1
      %s317 = scalar_select %p316, %s22, 1
      %p318 = scmp.lt.s32.totalorder %s23, 2
      %s319 = scalar_select %p318, %s23, 2
      %s320 = smul.addr %s317, 3
      %s321 = sadd.s32 %s319, %s320
      %s322 = smul.addr %s321, 4
      %s323 = scalar_lea.vmem %s7, %s322
      %p324 = scmp.lt.s32.totalorder %s22, 1
      %s325 = scalar_select %p324, %s22, 1
      %p326 = scmp.lt.s32.totalorder %s23, 2
      %s327 = scalar_select %p326, %s23, 2
      %s328 = smul.addr %s325, 3
      %s329 = sadd.s32 %s327, %s328
      %s330 = smul.addr %s329, 4
      %s331 = scalar_lea.vmem %s0, %s330
      %p332 = scmp.lt.s32.totalorder %s22, 1
      %s333 = scalar_select %p332, %s22, 1
      %s334 = smul.addr %s333, 8
      %s335 = smul.addr %s334, 8
      %s336 = scalar_lea.vmem %s1, %s335
      %p337 = scmp.lt.s32.totalorder %s22, 1
      %s338 = scalar_select %p337, %s22, 1
      %s339 = smul.addr %s338, 8
      %s340 = smul.addr %s339, 8
      %s341 = scalar_lea.vmem %s2, %s340
      %p342 = scmp.lt.s32.totalorder %s22, 1
      %s343 = scalar_select %p342, %s22, 1
      %p344 = scmp.lt.s32.totalorder %s23, 2
      %s345 = scalar_select %p344, %s23, 2
      %s346 = smul.addr %s343, 3
      %s347 = sadd.s32 %s345, %s346
      %s348 = smul.addr %s347, 4
      %s349 = scalar_lea.vmem %s7, %s348
      %v350 = vld [vmem:[%s331] sm:$0x7]
      %v351 = vmul.f32 %v350, %v350
      %v353 = vrot.slane %v351, 1
      %v355 = vadd.f32 %v351, %v353
      %v356 = vrot.slane %v351, 2
      %v358 = vadd.f32 %v355, %v356
      %v359 = vadd.f32 %v358, 1e-16
      %v360 = vrcp.pop %v359
      %v361 = vsub.f32 0.0, %v350
      %v362 = vmax.f32 %v350, 0.0
      %v363 = vmul.f32 %v362, %v362
      %v365 = vrot.slane %v360, 6
      %v367 = vmul.f32 %v363, %v365
      %v368 = vlaneseq
      %v369 = vshrl.u32 %v368, 7
      %v370 = vsub.s32 2, %v369
      %v371 = vrot.slane %v367, %v370
      %v372 = vmul.f32 %v350, %v371
      %373 = vst [vmem:[#allocation2] sm:$0x7] %v372
      %374 = vst [vmem:[#allocation2 + $0x10] sm:$0x4] %v367
      %v375 = vmax.f32 %v361, 0.0
      %v376 = vmul.f32 %v375, %v375
      %v377 = vmul.f32 %v376, %v365
      %v378 = vlaneseq
      %v379 = vshrl.u32 %v378, 7
      %v380 = vsub.s32 2, %v379
      %v381 = vrot.slane %v377, %v380
      %v382 = vmul.f32 %v350, %v381
      %383 = vst [vmem:[#allocation2 + $0x3] sm:$0x7] %v382
      %384 = vst [vmem:[#allocation2 + $0x11] sm:$0x4] %v377
      %v385 = vrot.slane %v360, 7
      %v387 = vmul.f32 %v363, %v385
      %v388 = vlaneseq
      %v389 = vshrl.u32 %v388, 7
      %v390 = vsub.s32 1, %v389
      %v391 = vrot.slane %v387, %v390
      %v392 = vmul.f32 %v350, %v391
      %393 = vst [vmem:[#allocation2 + $0x6] sm:$0x7] %v392
      %394 = vst [vmem:[#allocation2 + $0x13] sm:$0x2] %v387
      %v395 = vmul.f32 %v376, %v385
      %v396 = vlaneseq
      %v397 = vshrl.u32 %v396, 7
      %v398 = vsub.s32 1, %v397
      %v399 = vrot.slane %v395, %v398
      %v400 = vmul.f32 %v350, %v399
      %401 = vst [vmem:[#allocation2 + $0x9] sm:$0x7] %v400
      %402 = vst [vmem:[#allocation2 + $0x14] sm:$0x2] %v395
      %v403 = vmul.f32 %v363, %v360
      %v404 = vlaneseq
      %v405 = vshrl.u32 %v404, 7
      %v406 = vsub.s32 0, %v405
      %v407 = vrot.slane %v403, %v406
      %v408 = vmul.f32 %v350, %v407
      %409 = vst [vmem:[#allocation2 + $0xc] sm:$0x7] %v408
      %410 = vst [vmem:[#allocation2 + $0x16] sm:$0x1] %v403
      %v411 = vmul.f32 %v376, %v360
      %v412 = vlaneseq
      %v413 = vshrl.u32 %v412, 7
      %v414 = vsub.s32 0, %v413
      %v415 = vrot.slane %v411, %v414
      %v416 = vmul.f32 %v350, %v415
      %417 = vst [vmem:[#allocation2 + $0xf] sm:$0x7] %v416
      %418 = vst [vmem:[#allocation2 + $0x17] sm:$0x1] %v411
      %v419 = vld [vmem:[%s336] sm:$0xff]
      %v420 = vld [vmem:[%s336 + $0x8] sm:$0xff]
      %v421 = vld [vmem:[%s336 + $0x10] sm:$0xff]
      %v422 = vld [vmem:[%s336 + $0x18] sm:$0xff]
      %v423 = vld [vmem:[%s336 + $0x20] sm:$0xff]
      %v424 = vld [vmem:[%s336 + $0x28] sm:$0xff]
      %v425 = vld [vmem:[%s336 + $0x30] sm:$0xff]
      %v426 = vld [vmem:[%s336 + $0x38] sm:$0xff]
      %v427 = vld [vmem:[#allocation2] sm:$0xff]
      %v428 = vld [vmem:[#allocation2 + $0x8] sm:$0xff]
      %v429 = vld [vmem:[#allocation2 + $0x10] sm:$0xff]
      %vm430 = vcmask 195584
      %v432 = vsel %vm430, %v419, 0
      %v435 = vsel %vm430, %v420, 0
      %v438 = vsel %vm430, %v421, 0
      %v441 = vsel %vm430, %v422, 0
      %v444 = vsel %vm430, %v423, 0
      %v447 = vsel %vm430, %v424, 0
      %v450 = vsel %vm430, %v425, 0
      %v453 = vsel %vm430, %v426, 0
      %455 = vmatprep.subr.mxu0 0.0
      %456 = vmatpush1.msra.mxu0 0.0
      %457 = vmatprep.subr.mxu0 0.0
      %458 = vmatpush1.msra.mxu0 0.0
      %459 = vmatprep.subr.mxu0 0.0
      %460 = vmatpush1.msra.mxu0 0.0
      %461 = vmatprep.subr.mxu0 0.0
      %462 = vmatpush1.msra.mxu0 0.0
      %463 = vmatprep.subr.mxu0 0.0
      %464 = vmatpush1.msra.mxu0 0.0
      %465 = vmatprep.subr.mxu0 0.0
      %466 = vmatpush1.msra.mxu0 0.0
      %467 = vmatprep.subr.mxu0 0.0
      %468 = vmatpush1.msra.mxu0 0.0
      %469 = vmatprep.subr.mxu0 0.0
      %470 = vmatpush1.msra.mxu0 0.0
      %471 = vmatprep.subr.mxu0 0.0
      %472 = vmatpush1.msra.mxu0 0.0
      %473 = vmatprep.subr.mxu0 0.0
      %474 = vmatpush1.msra.mxu0 0.0
      %475 = vmatprep.subr.mxu0 0.0
      %476 = vmatpush1.msra.mxu0 0.0
      %477 = vmatprep.subr.mxu0 0.0
      %478 = vmatpush1.msra.mxu0 0.0
      %479 = vmatprep.subr.mxu0 0.0
      %480 = vmatpush1.msra.mxu0 0.0
      %481 = vmatprep.subr.mxu0 0.0
      %482 = vmatpush1.msra.mxu0 %v429
      %483 = vmatprep.subr.mxu0 0.0
      %484 = vmatpush1.msra.mxu0 %v428
      %485 = vmatprep.subr.mxu0 0.0
      %486 = vmatpush1.msra.mxu0 %v427
      %487 = vmatprep.subr.mxu0 0.0
      %488 = vmatpush2.msra.mxu0 0.0
      %489 = vmatprep.subr.mxu0 0.0
      %490 = vmatpush2.msra.mxu0 0.0
      %491 = vmatprep.subr.mxu0 0.0
      %492 = vmatpush2.msra.mxu0 0.0
      %493 = vmatprep.subr.mxu0 0.0
      %494 = vmatpush2.msra.mxu0 0.0
      %495 = vmatprep.subr.mxu0 0.0
      %496 = vmatpush2.msra.mxu0 0.0
      %497 = vmatprep.subr.mxu0 0.0
      %498 = vmatpush2.msra.mxu0 0.0
      %499 = vmatprep.subr.mxu0 0.0
      %500 = vmatpush2.msra.mxu0 0.0
      %501 = vmatprep.subr.mxu0 0.0
      %502 = vmatpush2.msra.mxu0 0.0
      %503 = vmatprep.subr.mxu0 0.0
      %504 = vmatpush2.msra.mxu0 0.0
      %505 = vmatprep.subr.mxu0 0.0
      %506 = vmatpush2.msra.mxu0 0.0
      %507 = vmatprep.subr.mxu0 0.0
      %508 = vmatpush2.msra.mxu0 0.0
      %509 = vmatprep.subr.mxu0 0.0
      %510 = vmatpush2.msra.mxu0 0.0
      %511 = vmatprep.subr.mxu0 0.0
      %512 = vmatpush2.msra.mxu0 0.0
      %513 = vmatprep.subr.mxu0 0.0
      %514 = vmatpush2.msra.mxu0 0.0
      %515 = vmatprep.subr.mxu0 0.0
      %516 = vmatpush2.msra.mxu0 0.0
      %517 = vmatprep.subr.mxu0 0.0
      %518 = vmatpush2.msra.mxu0 0.0
      %519 = vmatprep.mubr.f32.mxu0 0.0
      %520 = vmatmul.mubr.f32.gmra.mxu0 %v432
      %v521 = vpop.f32.mrf.mxu0
      %v522 = vadd.f32 0.0, %v521
      %v523 = vpop.f32.mrf.mxu0
      %524 = vmatprep.mubr.f32.mxu0 0.0
      %525 = vmatmul.mubr.f32.gmra.mxu0 %v435
      %v526 = vpop.f32.mrf.mxu0
      %v527 = vadd.f32 0.0, %v526
      %v528 = vpop.f32.mrf.mxu0
      %529 = vmatprep.mubr.f32.mxu0 0.0
      %530 = vmatmul.mubr.f32.gmra.mxu0 %v438
      %v531 = vpop.f32.mrf.mxu0
      %v532 = vadd.f32 0.0, %v531
      %v533 = vpop.f32.mrf.mxu0
      %534 = vmatprep.mubr.f32.mxu0 0.0
      %535 = vmatmul.mubr.f32.gmra.mxu0 %v441
      %v536 = vpop.f32.mrf.mxu0
      %v537 = vadd.f32 0.0, %v536
      %v538 = vpop.f32.mrf.mxu0
      %539 = vmatprep.mubr.f32.mxu0 0.0
      %540 = vmatmul.mubr.f32.gmra.mxu0 %v444
      %v541 = vpop.f32.mrf.mxu0
      %v542 = vadd.f32 0.0, %v541
      %v543 = vpop.f32.mrf.mxu0
      %544 = vmatprep.mubr.f32.mxu0 0.0
      %545 = vmatmul.mubr.f32.gmra.mxu0 %v447
      %v546 = vpop.f32.mrf.mxu0
      %v547 = vadd.f32 0.0, %v546
      %v548 = vpop.f32.mrf.mxu0
      %549 = vmatprep.mubr.f32.mxu0 0.0
      %550 = vmatmul.mubr.f32.gmra.mxu0 %v450
      %v551 = vpop.f32.mrf.mxu0
      %v552 = vadd.f32 0.0, %v551
      %v553 = vpop.f32.mrf.mxu0
      %554 = vmatprep.mubr.f32.mxu0 0.0
      %555 = vmatmul.mubr.f32.gmra.mxu0 %v453
      %v556 = vpop.f32.mrf.mxu0
      %v557 = vadd.f32 0.0, %v556
      %v558 = vpop.f32.mrf.mxu0
      %559 = vdwg.mxu0
      %v560 = vlaneseq
      %v561 = vand.u32 %v560, 127
      %vm562 = vcmp.eq.s32.totalorder %v561, 0
      %p563 = scmp.eq.s32.totalorder %s23, 0
      %s564 = scalar_select %p563, 1, 0
      %v565 = vstv %s564
      %vm566 = vcmp.eq.s32.totalorder %v565, 1
      %vm567 = vmand %vm562, %vm566
      %v568 = vld [vmem:[%s341] sm:$0xff]
      %v569 = vld [vmem:[%s341 + $0x8] sm:$0xff]
      %v570 = vld [vmem:[%s341 + $0x10] sm:$0xff]
      %v571 = vld [vmem:[%s341 + $0x18] sm:$0xff]
      %v572 = vld [vmem:[%s341 + $0x20] sm:$0xff]
      %v573 = vld [vmem:[%s341 + $0x28] sm:$0xff]
      %v574 = vld [vmem:[%s341 + $0x30] sm:$0xff]
      %v575 = vld [vmem:[%s341 + $0x38] sm:$0xff]
      %577 = vset.pattern.permute.xlu0 0
      %578 = vperm.xlu0 %577, %v568
      %v579 = vpop.permute.xlu0 %578
      %582 = vset.pattern.permute.xlu0 0
      %583 = vperm.xlu0 %582, %v569
      %v584 = vpop.permute.xlu0 %583
      %587 = vset.pattern.permute.xlu0 0
      %588 = vperm.xlu0 %587, %v570
      %v589 = vpop.permute.xlu0 %588
      %592 = vset.pattern.permute.xlu0 0
      %593 = vperm.xlu0 %592, %v571
      %v594 = vpop.permute.xlu0 %593
      %597 = vset.pattern.permute.xlu0 0
      %598 = vperm.xlu0 %597, %v572
      %v599 = vpop.permute.xlu0 %598
      %602 = vset.pattern.permute.xlu0 0
      %603 = vperm.xlu0 %602, %v573
      %v604 = vpop.permute.xlu0 %603
      %607 = vset.pattern.permute.xlu0 0
      %608 = vperm.xlu0 %607, %v574
      %v609 = vpop.permute.xlu0 %608
      %612 = vset.pattern.permute.xlu0 0
      %613 = vperm.xlu0 %612, %v575
      %v614 = vpop.permute.xlu0 %613
      %v616 = vsel %vm567, %v579, %v522
      %v617 = vsel %vm567, %v584, %v527
      %v618 = vsel %vm567, %v589, %v532
      %v619 = vsel %vm567, %v594, %v537
      %v620 = vsel %vm567, %v599, %v542
      %v621 = vsel %vm567, %v604, %v547
      %v622 = vsel %vm567, %v609, %v552
      %v623 = vsel %vm567, %v614, %v557
      %v624 = vld [vmem:[%s3] sm:$0xff]
      %v625 = vld [vmem:[%s3 + $0x8] sm:$0xff]
      %v626 = vld [vmem:[%s3 + $0x10] sm:$0xff]
      %v627 = vld [vmem:[%s3 + $0x18] sm:$0xff]
      %v628 = vld [vmem:[%s3 + $0x20] sm:$0xff]
      %v629 = vld [vmem:[%s3 + $0x28] sm:$0xff]
      %v630 = vld [vmem:[%s3 + $0x30] sm:$0xff]
      %v631 = vld [vmem:[%s3 + $0x38] sm:$0xff]
      %633 = vset.pattern.permute.xlu0 0
      %634 = vperm.xlu0 %633, %v624
      %v635 = vpop.permute.xlu0 %634
      %638 = vset.pattern.permute.xlu0 0
      %639 = vperm.xlu0 %638, %v625
      %v640 = vpop.permute.xlu0 %639
      %643 = vset.pattern.permute.xlu0 0
      %644 = vperm.xlu0 %643, %v626
      %v645 = vpop.permute.xlu0 %644
      %648 = vset.pattern.permute.xlu0 0
      %649 = vperm.xlu0 %648, %v627
      %v650 = vpop.permute.xlu0 %649
      %653 = vset.pattern.permute.xlu0 0
      %654 = vperm.xlu0 %653, %v628
      %v655 = vpop.permute.xlu0 %654
      %658 = vset.pattern.permute.xlu0 0
      %659 = vperm.xlu0 %658, %v629
      %v660 = vpop.permute.xlu0 %659
      %663 = vset.pattern.permute.xlu0 0
      %664 = vperm.xlu0 %663, %v630
      %v665 = vpop.permute.xlu0 %664
      %668 = vset.pattern.permute.xlu0 0
      %669 = vperm.xlu0 %668, %v631
      %v670 = vpop.permute.xlu0 %669
      %v672 = vmul.f32 %v616, %v635
      %v673 = vmul.f32 %v617, %v640
      %v674 = vmul.f32 %v618, %v645
      %v675 = vmul.f32 %v619, %v650
      %v676 = vmul.f32 %v620, %v655
      %v677 = vmul.f32 %v621, %v660
      %v678 = vmul.f32 %v622, %v665
      %v679 = vmul.f32 %v623, %v670
      %v680 = vld [vmem:[%s4] sm:$0xff]
      %v681 = vld [vmem:[%s4 + $0x8] sm:$0xff]
      %v682 = vld [vmem:[%s4 + $0x10] sm:$0xff]
      %v683 = vld [vmem:[%s4 + $0x18] sm:$0xff]
      %v684 = vld [vmem:[%s4 + $0x20] sm:$0xff]
      %v685 = vld [vmem:[%s4 + $0x28] sm:$0xff]
      %v686 = vld [vmem:[%s4 + $0x30] sm:$0xff]
      %v687 = vld [vmem:[%s4 + $0x38] sm:$0xff]
      %689 = vset.pattern.permute.xlu0 0
      %690 = vperm.xlu0 %689, %v680
      %v691 = vpop.permute.xlu0 %690
      %694 = vset.pattern.permute.xlu0 0
      %695 = vperm.xlu0 %694, %v681
      %v696 = vpop.permute.xlu0 %695
      %699 = vset.pattern.permute.xlu0 0
      %700 = vperm.xlu0 %699, %v682
      %v701 = vpop.permute.xlu0 %700
      %704 = vset.pattern.permute.xlu0 0
      %705 = vperm.xlu0 %704, %v683
      %v706 = vpop.permute.xlu0 %705
      %709 = vset.pattern.permute.xlu0 0
      %710 = vperm.xlu0 %709, %v684
      %v711 = vpop.permute.xlu0 %710
      %714 = vset.pattern.permute.xlu0 0
      %715 = vperm.xlu0 %714, %v685
      %v716 = vpop.permute.xlu0 %715
      %719 = vset.pattern.permute.xlu0 0
      %720 = vperm.xlu0 %719, %v686
      %v721 = vpop.permute.xlu0 %720
      %724 = vset.pattern.permute.xlu0 0
      %725 = vperm.xlu0 %724, %v687
      %v726 = vpop.permute.xlu0 %725
      %v728 = vadd.f32 %v672, %v691
      %v729 = vadd.f32 %v673, %v696
      %v730 = vadd.f32 %v674, %v701
      %v731 = vadd.f32 %v675, %v706
      %v732 = vadd.f32 %v676, %v711
      %v733 = vadd.f32 %v677, %v716
      %v734 = vadd.f32 %v678, %v721
      %v735 = vadd.f32 %v679, %v726
      %v736 = vmax.f32 %v728, 0.0
      %v737 = vmax.f32 %v729, 0.0
      %v738 = vmax.f32 %v730, 0.0
      %v739 = vmax.f32 %v731, 0.0
      %v740 = vmax.f32 %v732, 0.0
      %v741 = vmax.f32 %v733, 0.0
      %v742 = vmax.f32 %v734, 0.0
      %v743 = vmax.f32 %v735, 0.0
      %v744 = vld [vmem:[%s5] sm:$0x7]
      %v745 = vld [vmem:[%s6] sm:$0x7]
      %747 = vset.pattern.permute.xlu0 0
      %748 = vperm.xlu0 %747, %v745
      %v749 = vpop.permute.xlu0 %748
      %vm751 = vcmask 523264
      %v753 = vsel %vm751, %v744, 0
      %755 = vmatprep.subr.mxu0 0.0
      %756 = vmatpush1.msra.mxu0 0.0
      %757 = vmatprep.subr.mxu0 0.0
      %758 = vmatpush1.msra.mxu0 0.0
      %759 = vmatprep.subr.mxu0 0.0
      %760 = vmatpush1.msra.mxu0 0.0
      %761 = vmatprep.subr.mxu0 0.0
      %762 = vmatpush1.msra.mxu0 0.0
      %763 = vmatprep.subr.mxu0 0.0
      %764 = vmatpush1.msra.mxu0 0.0
      %765 = vmatprep.subr.mxu0 0.0
      %766 = vmatpush1.msra.mxu0 0.0
      %767 = vmatprep.subr.mxu0 0.0
      %768 = vmatpush1.msra.mxu0 0.0
      %769 = vmatprep.subr.mxu0 0.0
      %770 = vmatpush1.msra.mxu0 0.0
      %771 = vmatprep.subr.mxu0 0.0
      %772 = vmatpush1.msra.mxu0 %v743
      %773 = vmatprep.subr.mxu0 0.0
      %774 = vmatpush1.msra.mxu0 %v742
      %775 = vmatprep.subr.mxu0 0.0
      %776 = vmatpush1.msra.mxu0 %v741
      %777 = vmatprep.subr.mxu0 0.0
      %778 = vmatpush1.msra.mxu0 %v740
      %779 = vmatprep.subr.mxu0 0.0
      %780 = vmatpush1.msra.mxu0 %v739
      %781 = vmatprep.subr.mxu0 0.0
      %782 = vmatpush1.msra.mxu0 %v738
      %783 = vmatprep.subr.mxu0 0.0
      %784 = vmatpush1.msra.mxu0 %v737
      %785 = vmatprep.subr.mxu0 0.0
      %786 = vmatpush1.msra.mxu0 %v736
      %787 = vmatprep.subr.mxu0 0.0
      %788 = vmatpush2.msra.mxu0 0.0
      %789 = vmatprep.subr.mxu0 0.0
      %790 = vmatpush2.msra.mxu0 0.0
      %791 = vmatprep.subr.mxu0 0.0
      %792 = vmatpush2.msra.mxu0 0.0
      %793 = vmatprep.subr.mxu0 0.0
      %794 = vmatpush2.msra.mxu0 0.0
      %795 = vmatprep.subr.mxu0 0.0
      %796 = vmatpush2.msra.mxu0 0.0
      %797 = vmatprep.subr.mxu0 0.0
      %798 = vmatpush2.msra.mxu0 0.0
      %799 = vmatprep.subr.mxu0 0.0
      %800 = vmatpush2.msra.mxu0 0.0
      %801 = vmatprep.subr.mxu0 0.0
      %802 = vmatpush2.msra.mxu0 0.0
      %803 = vmatprep.subr.mxu0 0.0
      %804 = vmatpush2.msra.mxu0 0.0
      %805 = vmatprep.subr.mxu0 0.0
      %806 = vmatpush2.msra.mxu0 0.0
      %807 = vmatprep.subr.mxu0 0.0
      %808 = vmatpush2.msra.mxu0 0.0
      %809 = vmatprep.subr.mxu0 0.0
      %810 = vmatpush2.msra.mxu0 0.0
      %811 = vmatprep.subr.mxu0 0.0
      %812 = vmatpush2.msra.mxu0 0.0
      %813 = vmatprep.subr.mxu0 0.0
      %814 = vmatpush2.msra.mxu0 0.0
      %815 = vmatprep.subr.mxu0 0.0
      %816 = vmatpush2.msra.mxu0 0.0
      %817 = vmatprep.subr.mxu0 0.0
      %818 = vmatpush2.msra.mxu0 0.0
      %819 = vmatprep.mubr.f32.mxu0 0.0
      %820 = vmatmul.mubr.f32.gmra.mxu0 %v753
      %v821 = vpop.f32.mrf.mxu0
      %v822 = vadd.f32 %v749, %v821
      %v823 = vpop.f32.mrf.mxu0
      %824 = vdwg.mxu0
      %v825 = vxor.u32 %v822, 2147483648
      %v826 = vmul.f32 %v825, 1.442695
      %v827 = vpow.pop %v826
      %v828 = vadd.f32 %v827, 1.0
      %v829 = vrcp.pop %v828
      %v830 = vmul.f32 1.0, %v829
      %831 = vst [vmem:[%s349] sm:$0x7] %v830
      %p832 = scmp.lt.s32.totalorder %s22, 1
      %s833 = scalar_select %p832, %s22, 1
      %p834 = scmp.lt.s32.totalorder %s23, 2
      %s835 = scalar_select %p834, %s23, 2
      %s836 = smul.addr %s833, 3
      %s837 = sadd.s32 %s835, %s836
      %s838 = smul.addr %s837, 4
      %s839 = scalar_lea.vmem %s7, %s838
      // Predicated region
      $region49: #{pointnet_forward.7} parent=47 // pred_check
        %p840 = pneg %p214
      $region50: #{pointnet_forward.7} parent=47 // pred_check_branch
        %842 = sbr.rel (%p840) target = $region52
      $region51: #{pointnet_forward.7} parent=47 // pred_region
        _
      $region52: #{pointnet_forward.7} parent=47 // pred_fallthru
        _
    $region48: #{pointnet_forward.7} parent=5 // pred_fallthru
      _
    %p843 = scmp.le.s32.totalorder 2, %s13
    // Predicated region
    $region53: #{pointnet_forward.7} parent=5 // pred_check
      %p844 = pneg %p843
    $region54: #{pointnet_forward.7} parent=5 // pred_check_branch
      %846 = sbr.rel (%p844) target = $region56
    $region55: #{pointnet_forward.7} parent=5 // pred_region
      %s847 = ssub.s32 %s13, 2
      // Predicated region
      $region57: #{pointnet_forward.7} parent=55 // pred_check
        %p848 = pneg %p220
      $region58: #{pointnet_forward.7} parent=55 // pred_check_branch
        %850 = sbr.rel (%p848) target = $region60
      $region59: #{pointnet_forward.7} parent=55 // pred_region
        %p851 = scmp.lt.s32.totalorder %s24, 1
        %s852 = scalar_select %p851, %s24, 1
        %p853 = scmp.lt.s32.totalorder %s25, 2
        %s854 = scalar_select %p853, %s25, 2
        %s855 = smul.addr %s852, 3
        %s856 = sadd.s32 %s854, %s855
        %s857 = smul.addr %s856, 4
        %s858 = scalar_lea.vmem %s7, %s857
      $region60: #{pointnet_forward.7} parent=55 // pred_fallthru
        _
    $region56: #{pointnet_forward.7} parent=5 // pred_fallthru
      _
  $region6: #{pointnet_forward.7} parent=0 // loop_footer
    %s17 = sadd.s32 1, %s13
  $region7: #{pointnet_forward.7} parent=0 // loop_footer_branch
    %12 = sbr.rel target = $region3
  $region8: #{pointnet_forward.7} parent=0 // loop_exit
    _

</llo_original>
